<compile_context>
chip_gen: v7x
topology: tpu7x:2x2x1
jax: 0.10.0
libtpu: 0.0.40
codegen_flags: <defaults>
</compile_context>

<pallas_src>
import functools

import jax
import jax.numpy as jnp
import numpy as np
from jax.experimental import pallas as pl
from jax.experimental.pallas import tpu as pltpu

# ----- mini-ViT config (vit_base_patch16_224 scaled down for a small demo) -----
IMG = 32          # image spatial size (224 in the real model)
PATCH = 16        # patch size (same as vit_base_patch16)
IN_CH = 3
EMBED_DIM = 32    # 768 in the real model
NUM_HEADS = 2     # 12 in the real model
HEAD_DIM = EMBED_DIM // NUM_HEADS
DEPTH = 2         # 12 in the real model
MLP_HIDDEN = 4 * EMBED_DIM
GRID = IMG // PATCH
N_PATCHES = GRID * GRID
N_TOKENS = N_PATCHES + 1
P_FLAT = IN_CH * PATCH * PATCH
LN_EPS = 1e-6
PACK_W = max(MLP_HIDDEN, 3 * EMBED_DIM, EMBED_DIM)   # = 128 packed-param width


def _layernorm(v, g, b):
    mu = jnp.mean(v, axis=-1, keepdims=True)
    var = jnp.mean(jnp.square(v - mu), axis=-1, keepdims=True)
    return (v - mu) * jax.lax.rsqrt(var + LN_EPS) * g + b


# ---------------------------------------------------------------------------
# Fused kernel: one grid step == B_BLK batch elements folded into the rows.
# Row layout of x: [B_BLK cls rows][B_BLK * N_PATCHES patch rows].
# ---------------------------------------------------------------------------
def _fused_vit_kernel(ptok_ref, pw_ref, misc_ref, mask_ref,
                      qkvw_ref, projw_ref, fc1w_ref, fc2w_ref, vecs_ref,
                      feat_ref, *, b_blk):
    R = b_blk * N_TOKENS

    # Patch embedding for ALL patch rows of this block in one matmul.
    pe = jnp.dot(ptok_ref[0], pw_ref[...],
                 preferred_element_type=jnp.float32)          # (B_BLK*N_PATCHES, D)

    tok_bias = misc_ref[0:R, :]                               # cls/pos/patch bias
    norm_g = misc_ref[R:R + 1, :]
    norm_b = misc_ref[R + 1:R + 2, :]

    # cls rows come purely from the token bias; patch rows = embed + bias.
    x = jnp.concatenate([tok_bias[0:b_blk, :],
                         tok_bias[b_blk:R, :] + pe], axis=0)  # (R, D)

    mask_bias = mask_ref[...]                                 # (R, R): 0 / -1e9

    scale = 1.0 / (HEAD_DIM ** 0.5)
    for d in range(DEPTH):                                    # static unroll
        lv = vecs_ref[d]                                      # (8, 128) packed params
        ln1_g = lv[0:1, 0:EMBED_DIM]
        ln1_b = lv[1:2, 0:EMBED_DIM]
        qkv_b = lv[2:3, 0:3 * EMBED_DIM]
        proj_b = lv[3:4, 0:EMBED_DIM]
        ln2_g = lv[4:5, 0:EMBED_DIM]
        ln2_b = lv[5:6, 0:EMBED_DIM]
        fc1_b = lv[6:7, 0:MLP_HIDDEN]
        fc2_b = lv[7:8, 0:EMBED_DIM]

        # ---- multi-head self attention (pre-LN), fused QKV matmul ----
        h = _layernorm(x, ln1_g, ln1_b)
        qkv = jnp.dot(h, qkvw_ref[d],
                      preferred_element_type=jnp.float32) + qkv_b   # (R, 3D)
        heads = []
        for hh in range(NUM_HEADS):                           # static unroll
            q = qkv[:, hh * HEAD_DIM:(hh + 1) * HEAD_DIM]
            k = qkv[:, EMBED_DIM + hh * HEAD_DIM:EMBED_DIM + (hh + 1) * HEAD_DIM]
            v = qkv[:, 2 * EMBED_DIM + hh * HEAD_DIM:
                       2 * EMBED_DIM + (hh + 1) * HEAD_DIM]
            s = jnp.dot(q, k.T, preferred_element_type=jnp.float32) * scale
            s = s + mask_bias                                 # block-diag over batch
            s = s - jnp.max(s, axis=-1, keepdims=True)
            p = jnp.exp(s)
            p = p * pl.reciprocal(jnp.sum(p, axis=-1, keepdims=True),
                                  approx=True)
            heads.append(jnp.dot(p, v, preferred_element_type=jnp.float32))
        ho = jnp.concatenate(heads, axis=-1)                  # (R, D) lane concat
        attn = jnp.dot(ho, projw_ref[d],
                       preferred_element_type=jnp.float32) + proj_b
        x = x + attn                                          # residual 1

        # ---- MLP (pre-LN) ----
        h2 = _layernorm(x, ln2_g, ln2_b)
        h2 = jnp.dot(h2, fc1w_ref[d],
                     preferred_element_type=jnp.float32) + fc1_b
        # TODO(synk): timm's vit_base uses exact-erf nn.GELU; tanh approx used
        # here for guaranteed Mosaic lowering (small numeric difference).
        h2 = jax.nn.gelu(h2, approximate=True)
        h2 = jnp.dot(h2, fc2w_ref[d],
                     preferred_element_type=jnp.float32) + fc2_b
        x = x + h2                                            # residual 2

    # Final LN only on the contiguous leading cls rows; single store to HBM.
    cls = x[0:b_blk, :]
    feat_ref[0] = _layernorm(cls, norm_g, norm_b)


def fused_vit(patches, params):
    """patches: (B, N_PATCHES, P_FLAT) flattened non-overlapping patches."""
    B = patches.shape[0]
    # Keep a 2-way "parallel" grid so v7x's two TensorCores both get work;
    # on v5e/v6e this is just two serial (well-amortized) steps.
    num_blocks = 2 if (B >= 2 and B % 2 == 0) else 1
    b_blk = B // num_blocks
    R = b_blk * N_TOKENS

    ptok = patches.reshape(num_blocks, b_blk * N_PATCHES, P_FLAT)

    # Token bias in cls-first row layout + final-norm params, one packed input.
    cls_bias = jnp.tile(params['cls'] + params['pos'][0:1], (b_blk, 1))
    patch_bias = jnp.tile(params['pos'][1:] + params['patch_b'], (b_blk, 1))
    misc = jnp.concatenate(
        [cls_bias, patch_bias, params['norm_g'], params['norm_b']], axis=0)

    # Block-diagonal additive attention mask (host precomputed, static).
    elem_id = np.concatenate(
        [np.arange(b_blk), np.repeat(np.arange(b_blk), N_PATCHES)])
    same = (elem_id[:, None] == elem_id[None, :]).astype(np.float32)
    mask_bias = jnp.asarray((same - 1.0) * 1e9)               # (R, R): 0 / -1e9

    # Pack all small per-layer vector params into one (DEPTH, 8, 128) array.
    def pad_w(a):
        return jnp.pad(a, ((0, 0), (0, PACK_W - a.shape[-1])))
    vecs = jnp.stack([pad_w(params['ln1_g']), pad_w(params['ln1_b']),
                      pad_w(params['qkv_b']), pad_w(params['proj_b']),
                      pad_w(params['ln2_g']), pad_w(params['ln2_b']),
                      pad_w(params['fc1_b']), pad_w(params['fc2_b'])], axis=1)

    def _const(shape):
        nd = len(shape)
        return pl.BlockSpec(shape, lambda g, _nd=nd: (0,) * _nd)

    kernel = functools.partial(_fused_vit_kernel, b_blk=b_blk)

    out = pl.pallas_call(
        kernel,
        out_shape=jax.ShapeDtypeStruct((num_blocks, b_blk, EMBED_DIM),
                                       jnp.float32),
        grid=(num_blocks,),
        in_specs=[
            pl.BlockSpec((1, b_blk * N_PATCHES, P_FLAT), lambda g: (g, 0, 0)),
            _const((P_FLAT, EMBED_DIM)),                      # patch_w
            _const((R + 2, EMBED_DIM)),                       # token bias + norm g/b
            _const((R, R)),                                   # attention mask bias
            _const((DEPTH, EMBED_DIM, 3 * EMBED_DIM)),        # fused qkv_w
            _const((DEPTH, EMBED_DIM, EMBED_DIM)),            # proj_w
            _const((DEPTH, EMBED_DIM, MLP_HIDDEN)),           # fc1_w
            _const((DEPTH, MLP_HIDDEN, EMBED_DIM)),           # fc2_w
            _const((DEPTH, 8, PACK_W)),                       # packed vector params
        ],
        out_specs=pl.BlockSpec((1, b_blk, EMBED_DIM), lambda g: (g, 0, 0)),
        compiler_params=pltpu.CompilerParams(
            dimension_semantics=("parallel",)),
    )(ptok, params['patch_w'], misc, mask_bias,
      params['qkv_w'], params['proj_w'], params['fc1_w'], params['fc2_w'], vecs)

    return out.reshape(B, EMBED_DIM)


# ---------------------------------------------------------------------------
# Parameters (deterministic init; synthetic, not a pretrained checkpoint)
# ---------------------------------------------------------------------------
def init_params(key):
    def nrm(k, shape):
        return 0.02 * jax.random.normal(k, shape, jnp.float32)

    keys = jax.random.split(key, 3 + DEPTH * 4)
    params = {
        'patch_w': nrm(keys[0], (P_FLAT, EMBED_DIM)),
        'patch_b': jnp.zeros((1, EMBED_DIM), jnp.float32),
        'cls': nrm(keys[1], (1, EMBED_DIM)),
        'pos': nrm(keys[2], (N_TOKENS, EMBED_DIM)),
        'norm_g': jnp.ones((1, EMBED_DIM), jnp.float32),
        'norm_b': jnp.zeros((1, EMBED_DIM), jnp.float32),
        'ln1_g': jnp.ones((DEPTH, EMBED_DIM), jnp.float32),
        'ln1_b': jnp.zeros((DEPTH, EMBED_DIM), jnp.float32),
        'ln2_g': jnp.ones((DEPTH, EMBED_DIM), jnp.float32),
        'ln2_b': jnp.zeros((DEPTH, EMBED_DIM), jnp.float32),
        'qkv_b': jnp.zeros((DEPTH, 3 * EMBED_DIM), jnp.float32),
        'proj_b': jnp.zeros((DEPTH, EMBED_DIM), jnp.float32),
        'fc1_b': jnp.zeros((DEPTH, MLP_HIDDEN), jnp.float32),
        'fc2_b': jnp.zeros((DEPTH, EMBED_DIM), jnp.float32),
    }
    qkv_w, proj_w, fc1_w, fc2_w = [], [], [], []
    for d in range(DEPTH):
        k0, k1, k2, k3 = keys[3 + 4 * d: 3 + 4 * (d + 1)]
        # columns laid out [q(h0,h1) | k(h0,h1) | v(h0,h1)] -> matches kernel slices
        qkv_w.append(nrm(k0, (EMBED_DIM, 3 * EMBED_DIM)))
        proj_w.append(nrm(k1, (EMBED_DIM, EMBED_DIM)))
        fc1_w.append(nrm(k2, (EMBED_DIM, MLP_HIDDEN)))
        fc2_w.append(nrm(k3, (MLP_HIDDEN, EMBED_DIM)))
    params['qkv_w'] = jnp.stack(qkv_w)
    params['proj_w'] = jnp.stack(proj_w)
    params['fc1_w'] = jnp.stack(fc1_w)
    params['fc2_w'] = jnp.stack(fc2_w)
    return params


# ---------------------------------------------------------------------------
# Forward pass (== feature_generator_adapt.forward)
# ---------------------------------------------------------------------------
def feature_generator_adapt_forward(x, params, gamma=1.0, beta=1.0):
    # x: [B, C, H, W] (NCHW, as in PyTorch)
    B = x.shape[0]
    # strided-conv patch embedding == non-overlapping patch extraction + matmul
    patches = x.reshape(B, IN_CH, GRID, PATCH, GRID, PATCH)
    patches = patches.transpose(0, 2, 4, 1, 3, 5)        # B, gy, gx, C, ph, pw
    patches = patches.reshape(B, N_PATCHES, P_FLAT)

    feat = fused_vit(patches, params)                    # (B, D) cls features

    # TODO(synk): the third_party gamma/beta adapter regularization loss of the
    # original forward_features is not publicly specified; returning 0.0.
    total_loss = jnp.float32(0.0) * gamma * beta
    return feat, total_loss


if __name__ == "__main__":
    key = jax.random.PRNGKey(0)
    k_param, k_x = jax.random.split(key)
    params = init_params(k_param)
    B = 8
    x = jax.random.normal(k_x, (B, IN_CH, IMG, IMG), jnp.float32)

    forward = jax.jit(feature_generator_adapt_forward)
    feat, total_loss = forward(x, params, 0.5, 0.5)
    jax.block_until_ready(feat)
    jax.block_until_ready(total_loss)
    assert feat.shape == (B, EMBED_DIM) and feat.dtype == jnp.float32
    assert total_loss.shape == ()
    print("KERNEL_OK")
</pallas_src>

<mosaic_0001>
module attributes {stable_mosaic.version = 11 : i64} {
  func.func @_fused_vit_kernel(%arg0: i32, %arg1: memref<1x16x768xf32, #tpu.memory_space<vmem>>, %arg2: memref<768x32xf32, #tpu.memory_space<vmem>>, %arg3: memref<22x32xf32, #tpu.memory_space<vmem>>, %arg4: memref<20x20xf32, #tpu.memory_space<vmem>>, %arg5: memref<2x32x96xf32, #tpu.memory_space<vmem>>, %arg6: memref<2x32x32xf32, #tpu.memory_space<vmem>>, %arg7: memref<2x32x128xf32, #tpu.memory_space<vmem>>, %arg8: memref<2x128x32xf32, #tpu.memory_space<vmem>>, %arg9: memref<2x8x128xf32, #tpu.memory_space<vmem>>, %arg10: memref<1x4x32xf32, #tpu.memory_space<vmem>>) attributes {dimension_semantics = [#tpu.dimension_semantics<parallel>], iteration_bounds = array<i64: 2>, scalar_prefetch = 0 : i64, scratch_operands = 0 : i64, tpu.core_type = #tpu.core_type<tc>, window_params = [{transform_indices = @transform_0, window_bounds = array<i64: 1, 16, 768>}, {pipeline_mode = #tpu.pipeline_mode<synchronous>, transform_indices = @transform_1, window_bounds = array<i64: 768, 32>}, {pipeline_mode = #tpu.pipeline_mode<synchronous>, transform_indices = @transform_2, window_bounds = array<i64: 22, 32>}, {pipeline_mode = #tpu.pipeline_mode<synchronous>, transform_indices = @transform_3, window_bounds = array<i64: 20, 20>}, {pipeline_mode = #tpu.pipeline_mode<synchronous>, transform_indices = @transform_4, window_bounds = array<i64: 2, 32, 96>}, {pipeline_mode = #tpu.pipeline_mode<synchronous>, transform_indices = @transform_5, window_bounds = array<i64: 2, 32, 32>}, {pipeline_mode = #tpu.pipeline_mode<synchronous>, transform_indices = @transform_6, window_bounds = array<i64: 2, 32, 128>}, {pipeline_mode = #tpu.pipeline_mode<synchronous>, transform_indices = @transform_7, window_bounds = array<i64: 2, 128, 32>}, {pipeline_mode = #tpu.pipeline_mode<synchronous>, transform_indices = @transform_8, window_bounds = array<i64: 2, 8, 128>}, {transform_indices = @transform_9, window_bounds = array<i64: 1, 4, 32>}]} {
    %c0 = arith.constant 0 : index
    %c0_0 = arith.constant 0 : index
    %c0_1 = arith.constant 0 : index
    %0 = vector.load %arg1[%c0, %c0_0, %c0_1] : memref<1x16x768xf32, #tpu.memory_space<vmem>>, vector<1x16x768xf32>
    %1 = vector.shape_cast %0 : vector<1x16x768xf32> to vector<16x768xf32>
    %c0_2 = arith.constant 0 : index
    %c0_3 = arith.constant 0 : index
    %2 = vector.load %arg2[%c0_2, %c0_3] : memref<768x32xf32, #tpu.memory_space<vmem>>, vector<768x32xf32>
    %cst = arith.constant dense<0.000000e+00> : vector<16x32xf32>
    %3 = tpu.matmul %1, %2, %cst {dimension_numbers = #tpu.dot_dimension_numbers<[1], [0], [0], [1], [0, 0, 1, 1], [], []>} : vector<16x768xf32>, vector<768x32xf32>, vector<16x32xf32> -> vector<16x32xf32>
    %c0_4 = arith.constant 0 : index
    %c0_5 = arith.constant 0 : index
    %4 = vector.load %arg3[%c0_4, %c0_5] : memref<22x32xf32, #tpu.memory_space<vmem>>, vector<20x32xf32>
    %c20 = arith.constant 20 : index
    %c0_6 = arith.constant 0 : index
    %5 = vector.load %arg3[%c20, %c0_6] : memref<22x32xf32, #tpu.memory_space<vmem>>, vector<1x32xf32>
    %c21 = arith.constant 21 : index
    %c0_7 = arith.constant 0 : index
    %6 = vector.load %arg3[%c21, %c0_7] : memref<22x32xf32, #tpu.memory_space<vmem>>, vector<1x32xf32>
    %7 = vector.extract_strided_slice %4 {offsets = [0, 0], sizes = [4, 32], strides = [1, 1]} : vector<20x32xf32> to vector<4x32xf32>
    %8 = vector.extract_strided_slice %4 {offsets = [4, 0], sizes = [16, 32], strides = [1, 1]} : vector<20x32xf32> to vector<16x32xf32>
    %9 = arith.addf %8, %3 : vector<16x32xf32>
    %10 = tpu.concatenate %7, %9 in 0 : vector<4x32xf32>, vector<16x32xf32> -> vector<20x32xf32>
    %c0_8 = arith.constant 0 : index
    %c0_9 = arith.constant 0 : index
    %11 = vector.load %arg4[%c0_8, %c0_9] : memref<20x20xf32, #tpu.memory_space<vmem>>, vector<20x20xf32>
    %c0_10 = arith.constant 0 : index
    %c0_11 = arith.constant 0 : index
    %c0_12 = arith.constant 0 : index
    %12 = vector.load %arg9[%c0_10, %c0_11, %c0_12] : memref<2x8x128xf32, #tpu.memory_space<vmem>>, vector<1x8x128xf32>
    %13 = vector.shape_cast %12 : vector<1x8x128xf32> to vector<8x128xf32>
    %14 = vector.extract_strided_slice %13 {offsets = [0, 0], sizes = [1, 32], strides = [1, 1]} : vector<8x128xf32> to vector<1x32xf32>
    %15 = vector.extract_strided_slice %13 {offsets = [1, 0], sizes = [1, 32], strides = [1, 1]} : vector<8x128xf32> to vector<1x32xf32>
    %16 = vector.extract_strided_slice %13 {offsets = [2, 0], sizes = [1, 96], strides = [1, 1]} : vector<8x128xf32> to vector<1x96xf32>
    %17 = vector.extract_strided_slice %13 {offsets = [3, 0], sizes = [1, 32], strides = [1, 1]} : vector<8x128xf32> to vector<1x32xf32>
    %18 = vector.extract_strided_slice %13 {offsets = [4, 0], sizes = [1, 32], strides = [1, 1]} : vector<8x128xf32> to vector<1x32xf32>
    %19 = vector.extract_strided_slice %13 {offsets = [5, 0], sizes = [1, 32], strides = [1, 1]} : vector<8x128xf32> to vector<1x32xf32>
    %20 = vector.extract_strided_slice %13 {offsets = [6, 0], sizes = [1, 128], strides = [1, 1]} : vector<8x128xf32> to vector<1x128xf32>
    %21 = vector.extract_strided_slice %13 {offsets = [7, 0], sizes = [1, 32], strides = [1, 1]} : vector<8x128xf32> to vector<1x32xf32>
    %cst_13 = arith.constant dense<0.000000e+00> : vector<20xf32>
    %22 = vector.multi_reduction <add>, %10, %cst_13 [1] : vector<20x32xf32> to vector<20xf32>
    %23 = vector.shape_cast %22 : vector<20xf32> to vector<20x1xf32>
    %cst_14 = arith.constant 3.200000e+01 : f32
    %24 = vector.broadcast %cst_14 : f32 to vector<20x1xf32>
    %25 = arith.divf %23, %24 : vector<20x1xf32>
    %26 = vector.broadcast %25 : vector<20x1xf32> to vector<20x32xf32>
    %27 = arith.subf %10, %26 : vector<20x32xf32>
    %28 = arith.mulf %27, %27 : vector<20x32xf32>
    %cst_15 = arith.constant dense<0.000000e+00> : vector<20xf32>
    %29 = vector.multi_reduction <add>, %28, %cst_15 [1] : vector<20x32xf32> to vector<20xf32>
    %30 = vector.shape_cast %29 : vector<20xf32> to vector<20x1xf32>
    %cst_16 = arith.constant 3.200000e+01 : f32
    %31 = vector.broadcast %cst_16 : f32 to vector<20x1xf32>
    %32 = arith.divf %30, %31 : vector<20x1xf32>
    %33 = vector.broadcast %25 : vector<20x1xf32> to vector<20x32xf32>
    %34 = arith.subf %10, %33 : vector<20x32xf32>
    %cst_17 = arith.constant 9.99999997E-7 : f32
    %35 = vector.broadcast %cst_17 : f32 to vector<20x1xf32>
    %36 = arith.addf %32, %35 : vector<20x1xf32>
    %37 = math.rsqrt %36 : vector<20x1xf32>
    %38 = vector.broadcast %37 : vector<20x1xf32> to vector<20x32xf32>
    %39 = arith.mulf %34, %38 : vector<20x32xf32>
    %40 = vector.broadcast %14 : vector<1x32xf32> to vector<20x32xf32>
    %41 = arith.mulf %39, %40 : vector<20x32xf32>
    %42 = vector.broadcast %15 : vector<1x32xf32> to vector<20x32xf32>
    %43 = arith.addf %41, %42 : vector<20x32xf32>
    %c0_18 = arith.constant 0 : index
    %c0_19 = arith.constant 0 : index
    %c0_20 = arith.constant 0 : index
    %44 = vector.load %arg5[%c0_18, %c0_19, %c0_20] : memref<2x32x96xf32, #tpu.memory_space<vmem>>, vector<1x32x96xf32>
    %45 = vector.shape_cast %44 : vector<1x32x96xf32> to vector<32x96xf32>
    %cst_21 = arith.constant dense<0.000000e+00> : vector<20x96xf32>
    %46 = tpu.matmul %43, %45, %cst_21 {dimension_numbers = #tpu.dot_dimension_numbers<[1], [0], [0], [1], [0, 0, 1, 1], [], []>} : vector<20x32xf32>, vector<32x96xf32>, vector<20x96xf32> -> vector<20x96xf32>
    %47 = vector.broadcast %16 : vector<1x96xf32> to vector<20x96xf32>
    %48 = arith.addf %46, %47 : vector<20x96xf32>
    %49 = vector.extract_strided_slice %48 {offsets = [0, 0], sizes = [20, 16], strides = [1, 1]} : vector<20x96xf32> to vector<20x16xf32>
    %50 = vector.extract_strided_slice %48 {offsets = [0, 32], sizes = [20, 16], strides = [1, 1]} : vector<20x96xf32> to vector<20x16xf32>
    %51 = vector.extract_strided_slice %48 {offsets = [0, 64], sizes = [20, 16], strides = [1, 1]} : vector<20x96xf32> to vector<20x16xf32>
    %52 = tpu.transpose %50, [1, 0] : vector<20x16xf32> -> vector<16x20xf32>
    %cst_22 = arith.constant dense<0.000000e+00> : vector<20x20xf32>
    %53 = tpu.matmul %49, %52, %cst_22 {dimension_numbers = #tpu.dot_dimension_numbers<[1], [0], [0], [1], [0, 0, 1, 1], [], []>} : vector<20x16xf32>, vector<16x20xf32>, vector<20x20xf32> -> vector<20x20xf32>
    %cst_23 = arith.constant 2.500000e-01 : f32
    %54 = vector.broadcast %cst_23 : f32 to vector<20x20xf32>
    %55 = arith.mulf %53, %54 : vector<20x20xf32>
    %56 = arith.addf %55, %11 : vector<20x20xf32>
    %cst_24 = arith.constant dense<0xFF800000> : vector<20xf32>
    %57 = vector.multi_reduction <maximumf>, %56, %cst_24 [1] : vector<20x20xf32> to vector<20xf32>
    %58 = vector.shape_cast %57 : vector<20xf32> to vector<20x1xf32>
    %59 = vector.broadcast %58 : vector<20x1xf32> to vector<20x20xf32>
    %60 = arith.subf %56, %59 : vector<20x20xf32>
    %61 = math.exp %60 : vector<20x20xf32>
    %cst_25 = arith.constant dense<0.000000e+00> : vector<20xf32>
    %62 = vector.multi_reduction <add>, %61, %cst_25 [1] : vector<20x20xf32> to vector<20xf32>
    %63 = vector.shape_cast %62 : vector<20xf32> to vector<20x1xf32>
    %64 = tpu.reciprocal %63 {approx = true} : vector<20x1xf32> -> vector<20x1xf32>
    %65 = vector.broadcast %64 : vector<20x1xf32> to vector<20x20xf32>
    %66 = arith.mulf %61, %65 : vector<20x20xf32>
    %cst_26 = arith.constant dense<0.000000e+00> : vector<20x16xf32>
    %67 = tpu.matmul %66, %51, %cst_26 {dimension_numbers = #tpu.dot_dimension_numbers<[1], [0], [0], [1], [0, 0, 1, 1], [], []>} : vector<20x20xf32>, vector<20x16xf32>, vector<20x16xf32> -> vector<20x16xf32>
    %68 = vector.extract_strided_slice %48 {offsets = [0, 16], sizes = [20, 16], strides = [1, 1]} : vector<20x96xf32> to vector<20x16xf32>
    %69 = vector.extract_strided_slice %48 {offsets = [0, 48], sizes = [20, 16], strides = [1, 1]} : vector<20x96xf32> to vector<20x16xf32>
    %70 = vector.extract_strided_slice %48 {offsets = [0, 80], sizes = [20, 16], strides = [1, 1]} : vector<20x96xf32> to vector<20x16xf32>
    %71 = tpu.transpose %69, [1, 0] : vector<20x16xf32> -> vector<16x20xf32>
    %cst_27 = arith.constant dense<0.000000e+00> : vector<20x20xf32>
    %72 = tpu.matmul %68, %71, %cst_27 {dimension_numbers = #tpu.dot_dimension_numbers<[1], [0], [0], [1], [0, 0, 1, 1], [], []>} : vector<20x16xf32>, vector<16x20xf32>, vector<20x20xf32> -> vector<20x20xf32>
    %cst_28 = arith.constant 2.500000e-01 : f32
    %73 = vector.broadcast %cst_28 : f32 to vector<20x20xf32>
    %74 = arith.mulf %72, %73 : vector<20x20xf32>
    %75 = arith.addf %74, %11 : vector<20x20xf32>
    %cst_29 = arith.constant dense<0xFF800000> : vector<20xf32>
    %76 = vector.multi_reduction <maximumf>, %75, %cst_29 [1] : vector<20x20xf32> to vector<20xf32>
    %77 = vector.shape_cast %76 : vector<20xf32> to vector<20x1xf32>
    %78 = vector.broadcast %77 : vector<20x1xf32> to vector<20x20xf32>
    %79 = arith.subf %75, %78 : vector<20x20xf32>
    %80 = math.exp %79 : vector<20x20xf32>
    %cst_30 = arith.constant dense<0.000000e+00> : vector<20xf32>
    %81 = vector.multi_reduction <add>, %80, %cst_30 [1] : vector<20x20xf32> to vector<20xf32>
    %82 = vector.shape_cast %81 : vector<20xf32> to vector<20x1xf32>
    %83 = tpu.reciprocal %82 {approx = true} : vector<20x1xf32> -> vector<20x1xf32>
    %84 = vector.broadcast %83 : vector<20x1xf32> to vector<20x20xf32>
    %85 = arith.mulf %80, %84 : vector<20x20xf32>
    %cst_31 = arith.constant dense<0.000000e+00> : vector<20x16xf32>
    %86 = tpu.matmul %85, %70, %cst_31 {dimension_numbers = #tpu.dot_dimension_numbers<[1], [0], [0], [1], [0, 0, 1, 1], [], []>} : vector<20x20xf32>, vector<20x16xf32>, vector<20x16xf32> -> vector<20x16xf32>
    %87 = tpu.concatenate %67, %86 in 1 : vector<20x16xf32>, vector<20x16xf32> -> vector<20x32xf32>
    %c0_32 = arith.constant 0 : index
    %c0_33 = arith.constant 0 : index
    %c0_34 = arith.constant 0 : index
    %88 = vector.load %arg6[%c0_32, %c0_33, %c0_34] : memref<2x32x32xf32, #tpu.memory_space<vmem>>, vector<1x32x32xf32>
    %89 = vector.shape_cast %88 : vector<1x32x32xf32> to vector<32x32xf32>
    %cst_35 = arith.constant dense<0.000000e+00> : vector<20x32xf32>
    %90 = tpu.matmul %87, %89, %cst_35 {dimension_numbers = #tpu.dot_dimension_numbers<[1], [0], [0], [1], [0, 0, 1, 1], [], []>} : vector<20x32xf32>, vector<32x32xf32>, vector<20x32xf32> -> vector<20x32xf32>
    %91 = vector.broadcast %17 : vector<1x32xf32> to vector<20x32xf32>
    %92 = arith.addf %90, %91 : vector<20x32xf32>
    %93 = arith.addf %10, %92 : vector<20x32xf32>
    %cst_36 = arith.constant dense<0.000000e+00> : vector<20xf32>
    %94 = vector.multi_reduction <add>, %93, %cst_36 [1] : vector<20x32xf32> to vector<20xf32>
    %95 = vector.shape_cast %94 : vector<20xf32> to vector<20x1xf32>
    %cst_37 = arith.constant 3.200000e+01 : f32
    %96 = vector.broadcast %cst_37 : f32 to vector<20x1xf32>
    %97 = arith.divf %95, %96 : vector<20x1xf32>
    %98 = vector.broadcast %97 : vector<20x1xf32> to vector<20x32xf32>
    %99 = arith.subf %93, %98 : vector<20x32xf32>
    %100 = arith.mulf %99, %99 : vector<20x32xf32>
    %cst_38 = arith.constant dense<0.000000e+00> : vector<20xf32>
    %101 = vector.multi_reduction <add>, %100, %cst_38 [1] : vector<20x32xf32> to vector<20xf32>
    %102 = vector.shape_cast %101 : vector<20xf32> to vector<20x1xf32>
    %cst_39 = arith.constant 3.200000e+01 : f32
    %103 = vector.broadcast %cst_39 : f32 to vector<20x1xf32>
    %104 = arith.divf %102, %103 : vector<20x1xf32>
    %105 = vector.broadcast %97 : vector<20x1xf32> to vector<20x32xf32>
    %106 = arith.subf %93, %105 : vector<20x32xf32>
    %cst_40 = arith.constant 9.99999997E-7 : f32
    %107 = vector.broadcast %cst_40 : f32 to vector<20x1xf32>
    %108 = arith.addf %104, %107 : vector<20x1xf32>
    %109 = math.rsqrt %108 : vector<20x1xf32>
    %110 = vector.broadcast %109 : vector<20x1xf32> to vector<20x32xf32>
    %111 = arith.mulf %106, %110 : vector<20x32xf32>
    %112 = vector.broadcast %18 : vector<1x32xf32> to vector<20x32xf32>
    %113 = arith.mulf %111, %112 : vector<20x32xf32>
    %114 = vector.broadcast %19 : vector<1x32xf32> to vector<20x32xf32>
    %115 = arith.addf %113, %114 : vector<20x32xf32>
    %c0_41 = arith.constant 0 : index
    %c0_42 = arith.constant 0 : index
    %c0_43 = arith.constant 0 : index
    %116 = vector.load %arg7[%c0_41, %c0_42, %c0_43] : memref<2x32x128xf32, #tpu.memory_space<vmem>>, vector<1x32x128xf32>
    %117 = vector.shape_cast %116 : vector<1x32x128xf32> to vector<32x128xf32>
    %cst_44 = arith.constant dense<0.000000e+00> : vector<20x128xf32>
    %118 = tpu.matmul %115, %117, %cst_44 {dimension_numbers = #tpu.dot_dimension_numbers<[1], [0], [0], [1], [0, 0, 1, 1], [], []>} : vector<20x32xf32>, vector<32x128xf32>, vector<20x128xf32> -> vector<20x128xf32>
    %119 = vector.broadcast %20 : vector<1x128xf32> to vector<20x128xf32>
    %120 = arith.addf %118, %119 : vector<20x128xf32>
    %121 = arith.mulf %120, %120 : vector<20x128xf32>
    %122 = arith.mulf %120, %121 : vector<20x128xf32>
    %cst_45 = arith.constant 4.471500e-02 : f32
    %123 = vector.broadcast %cst_45 : f32 to vector<20x128xf32>
    %124 = arith.mulf %123, %122 : vector<20x128xf32>
    %125 = arith.addf %120, %124 : vector<20x128xf32>
    %cst_46 = arith.constant 0.797884583 : f32
    %126 = vector.broadcast %cst_46 : f32 to vector<20x128xf32>
    %127 = arith.mulf %126, %125 : vector<20x128xf32>
    %128 = math.tanh %127 : vector<20x128xf32>
    %cst_47 = arith.constant 1.000000e+00 : f32
    %129 = vector.broadcast %cst_47 : f32 to vector<20x128xf32>
    %130 = arith.addf %129, %128 : vector<20x128xf32>
    %cst_48 = arith.constant 5.000000e-01 : f32
    %131 = vector.broadcast %cst_48 : f32 to vector<20x128xf32>
    %132 = arith.mulf %131, %130 : vector<20x128xf32>
    %133 = arith.mulf %120, %132 : vector<20x128xf32>
    %c0_49 = arith.constant 0 : index
    %c0_50 = arith.constant 0 : index
    %c0_51 = arith.constant 0 : index
    %134 = vector.load %arg8[%c0_49, %c0_50, %c0_51] : memref<2x128x32xf32, #tpu.memory_space<vmem>>, vector<1x128x32xf32>
    %135 = vector.shape_cast %134 : vector<1x128x32xf32> to vector<128x32xf32>
    %cst_52 = arith.constant dense<0.000000e+00> : vector<20x32xf32>
    %136 = tpu.matmul %133, %135, %cst_52 {dimension_numbers = #tpu.dot_dimension_numbers<[1], [0], [0], [1], [0, 0, 1, 1], [], []>} : vector<20x128xf32>, vector<128x32xf32>, vector<20x32xf32> -> vector<20x32xf32>
    %137 = vector.broadcast %21 : vector<1x32xf32> to vector<20x32xf32>
    %138 = arith.addf %136, %137 : vector<20x32xf32>
    %139 = arith.addf %93, %138 : vector<20x32xf32>
    %c1 = arith.constant 1 : index
    %c0_53 = arith.constant 0 : index
    %c0_54 = arith.constant 0 : index
    %140 = vector.load %arg9[%c1, %c0_53, %c0_54] : memref<2x8x128xf32, #tpu.memory_space<vmem>>, vector<1x8x128xf32>
    %141 = vector.shape_cast %140 : vector<1x8x128xf32> to vector<8x128xf32>
    %142 = vector.extract_strided_slice %141 {offsets = [0, 0], sizes = [1, 32], strides = [1, 1]} : vector<8x128xf32> to vector<1x32xf32>
    %143 = vector.extract_strided_slice %141 {offsets = [1, 0], sizes = [1, 32], strides = [1, 1]} : vector<8x128xf32> to vector<1x32xf32>
    %144 = vector.extract_strided_slice %141 {offsets = [2, 0], sizes = [1, 96], strides = [1, 1]} : vector<8x128xf32> to vector<1x96xf32>
    %145 = vector.extract_strided_slice %141 {offsets = [3, 0], sizes = [1, 32], strides = [1, 1]} : vector<8x128xf32> to vector<1x32xf32>
    %146 = vector.extract_strided_slice %141 {offsets = [4, 0], sizes = [1, 32], strides = [1, 1]} : vector<8x128xf32> to vector<1x32xf32>
    %147 = vector.extract_strided_slice %141 {offsets = [5, 0], sizes = [1, 32], strides = [1, 1]} : vector<8x128xf32> to vector<1x32xf32>
    %148 = vector.extract_strided_slice %141 {offsets = [6, 0], sizes = [1, 128], strides = [1, 1]} : vector<8x128xf32> to vector<1x128xf32>
    %149 = vector.extract_strided_slice %141 {offsets = [7, 0], sizes = [1, 32], strides = [1, 1]} : vector<8x128xf32> to vector<1x32xf32>
    %cst_55 = arith.constant dense<0.000000e+00> : vector<20xf32>
    %150 = vector.multi_reduction <add>, %139, %cst_55 [1] : vector<20x32xf32> to vector<20xf32>
    %151 = vector.shape_cast %150 : vector<20xf32> to vector<20x1xf32>
    %cst_56 = arith.constant 3.200000e+01 : f32
    %152 = vector.broadcast %cst_56 : f32 to vector<20x1xf32>
    %153 = arith.divf %151, %152 : vector<20x1xf32>
    %154 = vector.broadcast %153 : vector<20x1xf32> to vector<20x32xf32>
    %155 = arith.subf %139, %154 : vector<20x32xf32>
    %156 = arith.mulf %155, %155 : vector<20x32xf32>
    %cst_57 = arith.constant dense<0.000000e+00> : vector<20xf32>
    %157 = vector.multi_reduction <add>, %156, %cst_57 [1] : vector<20x32xf32> to vector<20xf32>
    %158 = vector.shape_cast %157 : vector<20xf32> to vector<20x1xf32>
    %cst_58 = arith.constant 3.200000e+01 : f32
    %159 = vector.broadcast %cst_58 : f32 to vector<20x1xf32>
    %160 = arith.divf %158, %159 : vector<20x1xf32>
    %161 = vector.broadcast %153 : vector<20x1xf32> to vector<20x32xf32>
    %162 = arith.subf %139, %161 : vector<20x32xf32>
    %cst_59 = arith.constant 9.99999997E-7 : f32
    %163 = vector.broadcast %cst_59 : f32 to vector<20x1xf32>
    %164 = arith.addf %160, %163 : vector<20x1xf32>
    %165 = math.rsqrt %164 : vector<20x1xf32>
    %166 = vector.broadcast %165 : vector<20x1xf32> to vector<20x32xf32>
    %167 = arith.mulf %162, %166 : vector<20x32xf32>
    %168 = vector.broadcast %142 : vector<1x32xf32> to vector<20x32xf32>
    %169 = arith.mulf %167, %168 : vector<20x32xf32>
    %170 = vector.broadcast %143 : vector<1x32xf32> to vector<20x32xf32>
    %171 = arith.addf %169, %170 : vector<20x32xf32>
    %c1_60 = arith.constant 1 : index
    %c0_61 = arith.constant 0 : index
    %c0_62 = arith.constant 0 : index
    %172 = vector.load %arg5[%c1_60, %c0_61, %c0_62] : memref<2x32x96xf32, #tpu.memory_space<vmem>>, vector<1x32x96xf32>
    %173 = vector.shape_cast %172 : vector<1x32x96xf32> to vector<32x96xf32>
    %cst_63 = arith.constant dense<0.000000e+00> : vector<20x96xf32>
    %174 = tpu.matmul %171, %173, %cst_63 {dimension_numbers = #tpu.dot_dimension_numbers<[1], [0], [0], [1], [0, 0, 1, 1], [], []>} : vector<20x32xf32>, vector<32x96xf32>, vector<20x96xf32> -> vector<20x96xf32>
    %175 = vector.broadcast %144 : vector<1x96xf32> to vector<20x96xf32>
    %176 = arith.addf %174, %175 : vector<20x96xf32>
    %177 = vector.extract_strided_slice %176 {offsets = [0, 0], sizes = [20, 16], strides = [1, 1]} : vector<20x96xf32> to vector<20x16xf32>
    %178 = vector.extract_strided_slice %176 {offsets = [0, 32], sizes = [20, 16], strides = [1, 1]} : vector<20x96xf32> to vector<20x16xf32>
    %179 = vector.extract_strided_slice %176 {offsets = [0, 64], sizes = [20, 16], strides = [1, 1]} : vector<20x96xf32> to vector<20x16xf32>
    %180 = tpu.transpose %178, [1, 0] : vector<20x16xf32> -> vector<16x20xf32>
    %cst_64 = arith.constant dense<0.000000e+00> : vector<20x20xf32>
    %181 = tpu.matmul %177, %180, %cst_64 {dimension_numbers = #tpu.dot_dimension_numbers<[1], [0], [0], [1], [0, 0, 1, 1], [], []>} : vector<20x16xf32>, vector<16x20xf32>, vector<20x20xf32> -> vector<20x20xf32>
    %cst_65 = arith.constant 2.500000e-01 : f32
    %182 = vector.broadcast %cst_65 : f32 to vector<20x20xf32>
    %183 = arith.mulf %181, %182 : vector<20x20xf32>
    %184 = arith.addf %183, %11 : vector<20x20xf32>
    %cst_66 = arith.constant dense<0xFF800000> : vector<20xf32>
    %185 = vector.multi_reduction <maximumf>, %184, %cst_66 [1] : vector<20x20xf32> to vector<20xf32>
    %186 = vector.shape_cast %185 : vector<20xf32> to vector<20x1xf32>
    %187 = vector.broadcast %186 : vector<20x1xf32> to vector<20x20xf32>
    %188 = arith.subf %184, %187 : vector<20x20xf32>
    %189 = math.exp %188 : vector<20x20xf32>
    %cst_67 = arith.constant dense<0.000000e+00> : vector<20xf32>
    %190 = vector.multi_reduction <add>, %189, %cst_67 [1] : vector<20x20xf32> to vector<20xf32>
    %191 = vector.shape_cast %190 : vector<20xf32> to vector<20x1xf32>
    %192 = tpu.reciprocal %191 {approx = true} : vector<20x1xf32> -> vector<20x1xf32>
    %193 = vector.broadcast %192 : vector<20x1xf32> to vector<20x20xf32>
    %194 = arith.mulf %189, %193 : vector<20x20xf32>
    %cst_68 = arith.constant dense<0.000000e+00> : vector<20x16xf32>
    %195 = tpu.matmul %194, %179, %cst_68 {dimension_numbers = #tpu.dot_dimension_numbers<[1], [0], [0], [1], [0, 0, 1, 1], [], []>} : vector<20x20xf32>, vector<20x16xf32>, vector<20x16xf32> -> vector<20x16xf32>
    %196 = vector.extract_strided_slice %176 {offsets = [0, 16], sizes = [20, 16], strides = [1, 1]} : vector<20x96xf32> to vector<20x16xf32>
    %197 = vector.extract_strided_slice %176 {offsets = [0, 48], sizes = [20, 16], strides = [1, 1]} : vector<20x96xf32> to vector<20x16xf32>
    %198 = vector.extract_strided_slice %176 {offsets = [0, 80], sizes = [20, 16], strides = [1, 1]} : vector<20x96xf32> to vector<20x16xf32>
    %199 = tpu.transpose %197, [1, 0] : vector<20x16xf32> -> vector<16x20xf32>
    %cst_69 = arith.constant dense<0.000000e+00> : vector<20x20xf32>
    %200 = tpu.matmul %196, %199, %cst_69 {dimension_numbers = #tpu.dot_dimension_numbers<[1], [0], [0], [1], [0, 0, 1, 1], [], []>} : vector<20x16xf32>, vector<16x20xf32>, vector<20x20xf32> -> vector<20x20xf32>
    %cst_70 = arith.constant 2.500000e-01 : f32
    %201 = vector.broadcast %cst_70 : f32 to vector<20x20xf32>
    %202 = arith.mulf %200, %201 : vector<20x20xf32>
    %203 = arith.addf %202, %11 : vector<20x20xf32>
    %cst_71 = arith.constant dense<0xFF800000> : vector<20xf32>
    %204 = vector.multi_reduction <maximumf>, %203, %cst_71 [1] : vector<20x20xf32> to vector<20xf32>
    %205 = vector.shape_cast %204 : vector<20xf32> to vector<20x1xf32>
    %206 = vector.broadcast %205 : vector<20x1xf32> to vector<20x20xf32>
    %207 = arith.subf %203, %206 : vector<20x20xf32>
    %208 = math.exp %207 : vector<20x20xf32>
    %cst_72 = arith.constant dense<0.000000e+00> : vector<20xf32>
    %209 = vector.multi_reduction <add>, %208, %cst_72 [1] : vector<20x20xf32> to vector<20xf32>
    %210 = vector.shape_cast %209 : vector<20xf32> to vector<20x1xf32>
    %211 = tpu.reciprocal %210 {approx = true} : vector<20x1xf32> -> vector<20x1xf32>
    %212 = vector.broadcast %211 : vector<20x1xf32> to vector<20x20xf32>
    %213 = arith.mulf %208, %212 : vector<20x20xf32>
    %cst_73 = arith.constant dense<0.000000e+00> : vector<20x16xf32>
    %214 = tpu.matmul %213, %198, %cst_73 {dimension_numbers = #tpu.dot_dimension_numbers<[1], [0], [0], [1], [0, 0, 1, 1], [], []>} : vector<20x20xf32>, vector<20x16xf32>, vector<20x16xf32> -> vector<20x16xf32>
    %215 = tpu.concatenate %195, %214 in 1 : vector<20x16xf32>, vector<20x16xf32> -> vector<20x32xf32>
    %c1_74 = arith.constant 1 : index
    %c0_75 = arith.constant 0 : index
    %c0_76 = arith.constant 0 : index
    %216 = vector.load %arg6[%c1_74, %c0_75, %c0_76] : memref<2x32x32xf32, #tpu.memory_space<vmem>>, vector<1x32x32xf32>
    %217 = vector.shape_cast %216 : vector<1x32x32xf32> to vector<32x32xf32>
    %cst_77 = arith.constant dense<0.000000e+00> : vector<20x32xf32>
    %218 = tpu.matmul %215, %217, %cst_77 {dimension_numbers = #tpu.dot_dimension_numbers<[1], [0], [0], [1], [0, 0, 1, 1], [], []>} : vector<20x32xf32>, vector<32x32xf32>, vector<20x32xf32> -> vector<20x32xf32>
    %219 = vector.broadcast %145 : vector<1x32xf32> to vector<20x32xf32>
    %220 = arith.addf %218, %219 : vector<20x32xf32>
    %221 = arith.addf %139, %220 : vector<20x32xf32>
    %cst_78 = arith.constant dense<0.000000e+00> : vector<20xf32>
    %222 = vector.multi_reduction <add>, %221, %cst_78 [1] : vector<20x32xf32> to vector<20xf32>
    %223 = vector.shape_cast %222 : vector<20xf32> to vector<20x1xf32>
    %cst_79 = arith.constant 3.200000e+01 : f32
    %224 = vector.broadcast %cst_79 : f32 to vector<20x1xf32>
    %225 = arith.divf %223, %224 : vector<20x1xf32>
    %226 = vector.broadcast %225 : vector<20x1xf32> to vector<20x32xf32>
    %227 = arith.subf %221, %226 : vector<20x32xf32>
    %228 = arith.mulf %227, %227 : vector<20x32xf32>
    %cst_80 = arith.constant dense<0.000000e+00> : vector<20xf32>
    %229 = vector.multi_reduction <add>, %228, %cst_80 [1] : vector<20x32xf32> to vector<20xf32>
    %230 = vector.shape_cast %229 : vector<20xf32> to vector<20x1xf32>
    %cst_81 = arith.constant 3.200000e+01 : f32
    %231 = vector.broadcast %cst_81 : f32 to vector<20x1xf32>
    %232 = arith.divf %230, %231 : vector<20x1xf32>
    %233 = vector.broadcast %225 : vector<20x1xf32> to vector<20x32xf32>
    %234 = arith.subf %221, %233 : vector<20x32xf32>
    %cst_82 = arith.constant 9.99999997E-7 : f32
    %235 = vector.broadcast %cst_82 : f32 to vector<20x1xf32>
    %236 = arith.addf %232, %235 : vector<20x1xf32>
    %237 = math.rsqrt %236 : vector<20x1xf32>
    %238 = vector.broadcast %237 : vector<20x1xf32> to vector<20x32xf32>
    %239 = arith.mulf %234, %238 : vector<20x32xf32>
    %240 = vector.broadcast %146 : vector<1x32xf32> to vector<20x32xf32>
    %241 = arith.mulf %239, %240 : vector<20x32xf32>
    %242 = vector.broadcast %147 : vector<1x32xf32> to vector<20x32xf32>
    %243 = arith.addf %241, %242 : vector<20x32xf32>
    %c1_83 = arith.constant 1 : index
    %c0_84 = arith.constant 0 : index
    %c0_85 = arith.constant 0 : index
    %244 = vector.load %arg7[%c1_83, %c0_84, %c0_85] : memref<2x32x128xf32, #tpu.memory_space<vmem>>, vector<1x32x128xf32>
    %245 = vector.shape_cast %244 : vector<1x32x128xf32> to vector<32x128xf32>
    %cst_86 = arith.constant dense<0.000000e+00> : vector<20x128xf32>
    %246 = tpu.matmul %243, %245, %cst_86 {dimension_numbers = #tpu.dot_dimension_numbers<[1], [0], [0], [1], [0, 0, 1, 1], [], []>} : vector<20x32xf32>, vector<32x128xf32>, vector<20x128xf32> -> vector<20x128xf32>
    %247 = vector.broadcast %148 : vector<1x128xf32> to vector<20x128xf32>
    %248 = arith.addf %246, %247 : vector<20x128xf32>
    %249 = arith.mulf %248, %248 : vector<20x128xf32>
    %250 = arith.mulf %248, %249 : vector<20x128xf32>
    %cst_87 = arith.constant 4.471500e-02 : f32
    %251 = vector.broadcast %cst_87 : f32 to vector<20x128xf32>
    %252 = arith.mulf %251, %250 : vector<20x128xf32>
    %253 = arith.addf %248, %252 : vector<20x128xf32>
    %cst_88 = arith.constant 0.797884583 : f32
    %254 = vector.broadcast %cst_88 : f32 to vector<20x128xf32>
    %255 = arith.mulf %254, %253 : vector<20x128xf32>
    %256 = math.tanh %255 : vector<20x128xf32>
    %cst_89 = arith.constant 1.000000e+00 : f32
    %257 = vector.broadcast %cst_89 : f32 to vector<20x128xf32>
    %258 = arith.addf %257, %256 : vector<20x128xf32>
    %cst_90 = arith.constant 5.000000e-01 : f32
    %259 = vector.broadcast %cst_90 : f32 to vector<20x128xf32>
    %260 = arith.mulf %259, %258 : vector<20x128xf32>
    %261 = arith.mulf %248, %260 : vector<20x128xf32>
    %c1_91 = arith.constant 1 : index
    %c0_92 = arith.constant 0 : index
    %c0_93 = arith.constant 0 : index
    %262 = vector.load %arg8[%c1_91, %c0_92, %c0_93] : memref<2x128x32xf32, #tpu.memory_space<vmem>>, vector<1x128x32xf32>
    %263 = vector.shape_cast %262 : vector<1x128x32xf32> to vector<128x32xf32>
    %cst_94 = arith.constant dense<0.000000e+00> : vector<20x32xf32>
    %264 = tpu.matmul %261, %263, %cst_94 {dimension_numbers = #tpu.dot_dimension_numbers<[1], [0], [0], [1], [0, 0, 1, 1], [], []>} : vector<20x128xf32>, vector<128x32xf32>, vector<20x32xf32> -> vector<20x32xf32>
    %265 = vector.broadcast %149 : vector<1x32xf32> to vector<20x32xf32>
    %266 = arith.addf %264, %265 : vector<20x32xf32>
    %267 = arith.addf %221, %266 : vector<20x32xf32>
    %268 = vector.extract_strided_slice %267 {offsets = [0, 0], sizes = [4, 32], strides = [1, 1]} : vector<20x32xf32> to vector<4x32xf32>
    %cst_95 = arith.constant dense<0.000000e+00> : vector<4xf32>
    %269 = vector.multi_reduction <add>, %268, %cst_95 [1] : vector<4x32xf32> to vector<4xf32>
    %270 = vector.shape_cast %269 : vector<4xf32> to vector<4x1xf32>
    %cst_96 = arith.constant 3.200000e+01 : f32
    %271 = vector.broadcast %cst_96 : f32 to vector<4x1xf32>
    %272 = arith.divf %270, %271 : vector<4x1xf32>
    %273 = vector.broadcast %272 : vector<4x1xf32> to vector<4x32xf32>
    %274 = arith.subf %268, %273 : vector<4x32xf32>
    %275 = arith.mulf %274, %274 : vector<4x32xf32>
    %cst_97 = arith.constant dense<0.000000e+00> : vector<4xf32>
    %276 = vector.multi_reduction <add>, %275, %cst_97 [1] : vector<4x32xf32> to vector<4xf32>
    %277 = vector.shape_cast %276 : vector<4xf32> to vector<4x1xf32>
    %cst_98 = arith.constant 3.200000e+01 : f32
    %278 = vector.broadcast %cst_98 : f32 to vector<4x1xf32>
    %279 = arith.divf %277, %278 : vector<4x1xf32>
    %280 = vector.broadcast %272 : vector<4x1xf32> to vector<4x32xf32>
    %281 = arith.subf %268, %280 : vector<4x32xf32>
    %cst_99 = arith.constant 9.99999997E-7 : f32
    %282 = vector.broadcast %cst_99 : f32 to vector<4x1xf32>
    %283 = arith.addf %279, %282 : vector<4x1xf32>
    %284 = math.rsqrt %283 : vector<4x1xf32>
    %285 = vector.broadcast %284 : vector<4x1xf32> to vector<4x32xf32>
    %286 = arith.mulf %281, %285 : vector<4x32xf32>
    %287 = vector.broadcast %5 : vector<1x32xf32> to vector<4x32xf32>
    %288 = arith.mulf %286, %287 : vector<4x32xf32>
    %289 = vector.broadcast %6 : vector<1x32xf32> to vector<4x32xf32>
    %290 = arith.addf %288, %289 : vector<4x32xf32>
    %c0_100 = arith.constant 0 : index
    %c0_101 = arith.constant 0 : index
    %c0_102 = arith.constant 0 : index
    %291 = vector.load %arg10[%c0_100, %c0_101, %c0_102] : memref<1x4x32xf32, #tpu.memory_space<vmem>>, vector<1x4x32xf32>
    %292 = vector.shape_cast %291 : vector<1x4x32xf32> to vector<4x32xf32>
    %293 = vector.shape_cast %290 : vector<4x32xf32> to vector<1x4x32xf32>
    tpu.vector_store %arg10[%c0_100, %c0_101, %c0_102], %293 {strides = array<i32>} : memref<1x4x32xf32, #tpu.memory_space<vmem>>, vector<1x4x32xf32>,
    return
  }
  func.func @transform_0(%arg0: i32) -> (i32, i32, i32) {
    %c0_i32 = arith.constant 0 : i32
    %c0_i32_0 = arith.constant 0 : i32
    %c0_i32_1 = arith.constant 0 : i32
    return %arg0, %c0_i32, %c0_i32_0 : i32, i32, i32
  }
  func.func @transform_1(%arg0: i32) -> (i32, i32) {
    %c0_i32 = arith.constant 0 : i32
    %c0_i32_0 = arith.constant 0 : i32
    %c0_i32_1 = arith.constant 0 : i32
    return %c0_i32, %c0_i32_0 : i32, i32
  }
  func.func @transform_2(%arg0: i32) -> (i32, i32) {
    %c0_i32 = arith.constant 0 : i32
    %c0_i32_0 = arith.constant 0 : i32
    %c0_i32_1 = arith.constant 0 : i32
    return %c0_i32, %c0_i32_0 : i32, i32
  }
  func.func @transform_3(%arg0: i32) -> (i32, i32) {
    %c0_i32 = arith.constant 0 : i32
    %c0_i32_0 = arith.constant 0 : i32
    %c0_i32_1 = arith.constant 0 : i32
    return %c0_i32, %c0_i32_0 : i32, i32
  }
  func.func @transform_4(%arg0: i32) -> (i32, i32, i32) {
    %c0_i32 = arith.constant 0 : i32
    %c0_i32_0 = arith.constant 0 : i32
    %c0_i32_1 = arith.constant 0 : i32
    %c0_i32_2 = arith.constant 0 : i32
    return %c0_i32, %c0_i32_0, %c0_i32_1 : i32, i32, i32
  }
  func.func @transform_5(%arg0: i32) -> (i32, i32, i32) {
    %c0_i32 = arith.constant 0 : i32
    %c0_i32_0 = arith.constant 0 : i32
    %c0_i32_1 = arith.constant 0 : i32
    %c0_i32_2 = arith.constant 0 : i32
    return %c0_i32, %c0_i32_0, %c0_i32_1 : i32, i32, i32
  }
  func.func @transform_6(%arg0: i32) -> (i32, i32, i32) {
    %c0_i32 = arith.constant 0 : i32
    %c0_i32_0 = arith.constant 0 : i32
    %c0_i32_1 = arith.constant 0 : i32
    %c0_i32_2 = arith.constant 0 : i32
    return %c0_i32, %c0_i32_0, %c0_i32_1 : i32, i32, i32
  }
  func.func @transform_7(%arg0: i32) -> (i32, i32, i32) {
    %c0_i32 = arith.constant 0 : i32
    %c0_i32_0 = arith.constant 0 : i32
    %c0_i32_1 = arith.constant 0 : i32
    %c0_i32_2 = arith.constant 0 : i32
    return %c0_i32, %c0_i32_0, %c0_i32_1 : i32, i32, i32
  }
  func.func @transform_8(%arg0: i32) -> (i32, i32, i32) {
    %c0_i32 = arith.constant 0 : i32
    %c0_i32_0 = arith.constant 0 : i32
    %c0_i32_1 = arith.constant 0 : i32
    %c0_i32_2 = arith.constant 0 : i32
    return %c0_i32, %c0_i32_0, %c0_i32_1 : i32, i32, i32
  }
  func.func @transform_9(%arg0: i32) -> (i32, i32, i32) {
    %c0_i32 = arith.constant 0 : i32
    %c0_i32_0 = arith.constant 0 : i32
    %c0_i32_1 = arith.constant 0 : i32
    return %arg0, %c0_i32, %c0_i32_0 : i32, i32, i32
  }
}

</mosaic_0001>

<llo_original>
// kernel: feature_generator_adapt_forward.1
$region0: #{feature_generator_adapt_forward.1}
  #allocation0 [shape = 'u32[]', space=smem, size = 0x4, offset = 0x4, fixed_abs, tag = 'smem constant byte address 0x4 - core index']
  #allocation1 [shape = 'u32[144,128]{1,0:T(1,128)}', space=vmem, size = 0x12000, scoped, tag = 'internal scratch']
  %s0 = inlined_call_operand.vmem [shape: f32[2,16,768], index: 0, kind: input, shape index: {}]
  %s1 = inlined_call_operand.vmem [shape: f32[768,32], index: 1, kind: input, shape index: {}]
  %s2 = inlined_call_operand.vmem [shape: f32[22,32], index: 2, kind: input, shape index: {}]
  %s3 = inlined_call_operand.vmem [shape: f32[20,20], index: 3, kind: input, shape index: {}]
  %s4 = inlined_call_operand.vmem [shape: f32[2,32,96], index: 4, kind: input, shape index: {}]
  %s5 = inlined_call_operand.vmem [shape: f32[2,32,32], index: 5, kind: input, shape index: {}]
  %s6 = inlined_call_operand.vmem [shape: f32[2,32,128], index: 6, kind: input, shape index: {}]
  %s7 = inlined_call_operand.vmem [shape: f32[2,128,32], index: 7, kind: input, shape index: {}]
  %s8 = inlined_call_operand.vmem [shape: f32[2,8,128], index: 8, kind: input, shape index: {}]
  %s9 = inlined_call_operand.hbm [shape: f32[2,4,32], index: 9, kind: output, shape index: {}]
  %s10 = sld [smem:[#allocation0]]
  $region69: #{feature_generator_adapt_forward.1} parent=0
    _
  %s12 = ssub.s32 1, %s10
  %s13 = scalar_select 0, %s12, %s10
  $region1: #{feature_generator_adapt_forward.1} parent=0
    #allocation2 [shape = 'u8[4096]{0}', space=vmem, size = 0x1000, scoped, tag = 'output window, operand 0']
    #allocation3 [shape = 's32[2]{0}', space=sflag, size = 0x8, scoped, tag = 'scoped memory for feature_generator_adapt_forward.1']
    %14 = vsyncpa [#allocation3], 0
    %s15 = scalar_lea.sflag [#allocation3], 1
    %16 = vsyncpa %s15, 0
    loop: start=0, step=1, limit=4
    $region2: #{feature_generator_adapt_forward.1} parent=1 // loop_pre_header
      _
    $region3: #{feature_generator_adapt_forward.1} parent=1 // loop_header
      %s18 = sphi 0, %s22
      %p19 = scmp.ge.s32.totalorder %s18, 4
      %s28 = sphi 0, %s30
      %s31 = sphi 0, %s28
      %s32 = sphi 0, %s31
      %s48 = sphi 0, %s32
      %s52 = sphi 0, %s52
      %s54 = sphi 0, %s52
      %s55 = sphi 0, %s54
      %s69 = sphi 0, %s55
      %s73 = sphi 0, %s73
      %s75 = sphi 0, %s73
      %s76 = sphi 0, %s75
      %s90 = sphi 0, %s76
      %s94 = sphi 0, %s94
      %s96 = sphi 0, %s94
      %s97 = sphi 0, %s96
      %s111 = sphi 0, %s97
      %s115 = sphi 0, %s115
      %s117 = sphi 0, %s115
      %s118 = sphi 0, %s117
      %s132 = sphi 0, %s118
      %s136 = sphi 0, %s136
      %s138 = sphi 0, %s136
      %s139 = sphi 0, %s138
      %s153 = sphi 0, %s139
      %s157 = sphi 0, %s157
      %s159 = sphi 0, %s157
      %s160 = sphi 0, %s159
      %s174 = sphi 0, %s160
      %s178 = sphi 0, %s178
      %s180 = sphi 0, %s178
      %s181 = sphi 0, %s180
      %s195 = sphi 0, %s181
      %s199 = sphi 0, %s199
      %s201 = sphi 0, %s199
      %s202 = sphi 0, %s201
      %s216 = sphi 0, %s202
      %s222 = sphi 0, %s224
      %s225 = sphi 0, %s222
      %s226 = sphi 0, %s225
      %s242 = sphi 0, %s226
    $region4: #{feature_generator_adapt_forward.1} parent=1 // loop_header_branch
      %21 = sbr.rel (%p19) target = $region8
    $region5: #{feature_generator_adapt_forward.1} parent=1 // loop_body
      %s23 = ssub.s32 %s18, 1
      %s24 = ssub.s32 %s18, 2
      %s25 = sadd.s32 %s18, 1
      %s26 = ssub.s32 %s18, %s25
      %p27 = scmp.eq.s32.totalorder %s26, 0
      %s29 = sadd.s32 %s28, 1
      %s30 = scalar_select %p27, %s28, %s29
      %p33 = pneg %p27
      %p34 = scmp.eq.s32.totalorder %s18, 1
      %p35 = por %p33, %p34
      %p36 = scmp.ne.s32.totalorder %s28, %s31
      %p37 = scmp.eq.s32.totalorder %s18, 0
      %p38 = por %p36, %p37
      %p39 = scmp.ne.s32.totalorder %s28, %s31
      %p40 = scmp.eq.s32.totalorder %s23, 1
      %p41 = por %p39, %p40
      %p42 = scmp.ne.s32.totalorder %s31, %s32
      %p43 = scmp.eq.s32.totalorder %s23, 0
      %p44 = por %p42, %p43
      %p45 = scmp.ne.s32.totalorder %s31, %s32
      %p46 = scmp.eq.s32.totalorder %s24, 1
      %p47 = por %p45, %p46
      %p49 = scmp.ne.s32.totalorder %s32, %s48
      %p50 = scmp.eq.s32.totalorder %s24, 0
      %p51 = por %p49, %p50
      %s53 = sadd.s32 %s52, 1
      %p56 = scmp.eq.s32.totalorder %s18, 1
      %p57 = scmp.ne.s32.totalorder %s52, %s54
      %p58 = scmp.eq.s32.totalorder %s18, 0
      %p59 = por %p57, %p58
      %p60 = scmp.ne.s32.totalorder %s52, %s54
      %p61 = scmp.eq.s32.totalorder %s23, 1
      %p62 = por %p60, %p61
      %p63 = scmp.ne.s32.totalorder %s54, %s55
      %p64 = scmp.eq.s32.totalorder %s23, 0
      %p65 = por %p63, %p64
      %p66 = scmp.ne.s32.totalorder %s54, %s55
      %p67 = scmp.eq.s32.totalorder %s24, 1
      %p68 = por %p66, %p67
      %p70 = scmp.ne.s32.totalorder %s55, %s69
      %p71 = scmp.eq.s32.totalorder %s24, 0
      %p72 = por %p70, %p71
      %s74 = sadd.s32 %s73, 1
      %p77 = scmp.eq.s32.totalorder %s18, 1
      %p78 = scmp.ne.s32.totalorder %s73, %s75
      %p79 = scmp.eq.s32.totalorder %s18, 0
      %p80 = por %p78, %p79
      %p81 = scmp.ne.s32.totalorder %s73, %s75
      %p82 = scmp.eq.s32.totalorder %s23, 1
      %p83 = por %p81, %p82
      %p84 = scmp.ne.s32.totalorder %s75, %s76
      %p85 = scmp.eq.s32.totalorder %s23, 0
      %p86 = por %p84, %p85
      %p87 = scmp.ne.s32.totalorder %s75, %s76
      %p88 = scmp.eq.s32.totalorder %s24, 1
      %p89 = por %p87, %p88
      %p91 = scmp.ne.s32.totalorder %s76, %s90
      %p92 = scmp.eq.s32.totalorder %s24, 0
      %p93 = por %p91, %p92
      %s95 = sadd.s32 %s94, 1
      %p98 = scmp.eq.s32.totalorder %s18, 1
      %p99 = scmp.ne.s32.totalorder %s94, %s96
      %p100 = scmp.eq.s32.totalorder %s18, 0
      %p101 = por %p99, %p100
      %p102 = scmp.ne.s32.totalorder %s94, %s96
      %p103 = scmp.eq.s32.totalorder %s23, 1
      %p104 = por %p102, %p103
      %p105 = scmp.ne.s32.totalorder %s96, %s97
      %p106 = scmp.eq.s32.totalorder %s23, 0
      %p107 = por %p105, %p106
      %p108 = scmp.ne.s32.totalorder %s96, %s97
      %p109 = scmp.eq.s32.totalorder %s24, 1
      %p110 = por %p108, %p109
      %p112 = scmp.ne.s32.totalorder %s97, %s111
      %p113 = scmp.eq.s32.totalorder %s24, 0
      %p114 = por %p112, %p113
      %s116 = sadd.s32 %s115, 1
      %p119 = scmp.eq.s32.totalorder %s18, 1
      %p120 = scmp.ne.s32.totalorder %s115, %s117
      %p121 = scmp.eq.s32.totalorder %s18, 0
      %p122 = por %p120, %p121
      %p123 = scmp.ne.s32.totalorder %s115, %s117
      %p124 = scmp.eq.s32.totalorder %s23, 1
      %p125 = por %p123, %p124
      %p126 = scmp.ne.s32.totalorder %s117, %s118
      %p127 = scmp.eq.s32.totalorder %s23, 0
      %p128 = por %p126, %p127
      %p129 = scmp.ne.s32.totalorder %s117, %s118
      %p130 = scmp.eq.s32.totalorder %s24, 1
      %p131 = por %p129, %p130
      %p133 = scmp.ne.s32.totalorder %s118, %s132
      %p134 = scmp.eq.s32.totalorder %s24, 0
      %p135 = por %p133, %p134
      %s137 = sadd.s32 %s136, 1
      %p140 = scmp.eq.s32.totalorder %s18, 1
      %p141 = scmp.ne.s32.totalorder %s136, %s138
      %p142 = scmp.eq.s32.totalorder %s18, 0
      %p143 = por %p141, %p142
      %p144 = scmp.ne.s32.totalorder %s136, %s138
      %p145 = scmp.eq.s32.totalorder %s23, 1
      %p146 = por %p144, %p145
      %p147 = scmp.ne.s32.totalorder %s138, %s139
      %p148 = scmp.eq.s32.totalorder %s23, 0
      %p149 = por %p147, %p148
      %p150 = scmp.ne.s32.totalorder %s138, %s139
      %p151 = scmp.eq.s32.totalorder %s24, 1
      %p152 = por %p150, %p151
      %p154 = scmp.ne.s32.totalorder %s139, %s153
      %p155 = scmp.eq.s32.totalorder %s24, 0
      %p156 = por %p154, %p155
      %s158 = sadd.s32 %s157, 1
      %p161 = scmp.eq.s32.totalorder %s18, 1
      %p162 = scmp.ne.s32.totalorder %s157, %s159
      %p163 = scmp.eq.s32.totalorder %s18, 0
      %p164 = por %p162, %p163
      %p165 = scmp.ne.s32.totalorder %s157, %s159
      %p166 = scmp.eq.s32.totalorder %s23, 1
      %p167 = por %p165, %p166
      %p168 = scmp.ne.s32.totalorder %s159, %s160
      %p169 = scmp.eq.s32.totalorder %s23, 0
      %p170 = por %p168, %p169
      %p171 = scmp.ne.s32.totalorder %s159, %s160
      %p172 = scmp.eq.s32.totalorder %s24, 1
      %p173 = por %p171, %p172
      %p175 = scmp.ne.s32.totalorder %s160, %s174
      %p176 = scmp.eq.s32.totalorder %s24, 0
      %p177 = por %p175, %p176
      %s179 = sadd.s32 %s178, 1
      %p182 = scmp.eq.s32.totalorder %s18, 1
      %p183 = scmp.ne.s32.totalorder %s178, %s180
      %p184 = scmp.eq.s32.totalorder %s18, 0
      %p185 = por %p183, %p184
      %p186 = scmp.ne.s32.totalorder %s178, %s180
      %p187 = scmp.eq.s32.totalorder %s23, 1
      %p188 = por %p186, %p187
      %p189 = scmp.ne.s32.totalorder %s180, %s181
      %p190 = scmp.eq.s32.totalorder %s23, 0
      %p191 = por %p189, %p190
      %p192 = scmp.ne.s32.totalorder %s180, %s181
      %p193 = scmp.eq.s32.totalorder %s24, 1
      %p194 = por %p192, %p193
      %p196 = scmp.ne.s32.totalorder %s181, %s195
      %p197 = scmp.eq.s32.totalorder %s24, 0
      %p198 = por %p196, %p197
      %s200 = sadd.s32 %s199, 1
      %p203 = scmp.eq.s32.totalorder %s18, 1
      %p204 = scmp.ne.s32.totalorder %s199, %s201
      %p205 = scmp.eq.s32.totalorder %s18, 0
      %p206 = por %p204, %p205
      %p207 = scmp.ne.s32.totalorder %s199, %s201
      %p208 = scmp.eq.s32.totalorder %s23, 1
      %p209 = por %p207, %p208
      %p210 = scmp.ne.s32.totalorder %s201, %s202
      %p211 = scmp.eq.s32.totalorder %s23, 0
      %p212 = por %p210, %p211
      %p213 = scmp.ne.s32.totalorder %s201, %s202
      %p214 = scmp.eq.s32.totalorder %s24, 1
      %p215 = por %p213, %p214
      %p217 = scmp.ne.s32.totalorder %s202, %s216
      %p218 = scmp.eq.s32.totalorder %s24, 0
      %p219 = por %p217, %p218
      %s220 = ssub.s32 %s18, %s25
      %p221 = scmp.eq.s32.totalorder %s220, 0
      %s223 = sadd.s32 %s222, 1
      %s224 = scalar_select %p221, %s222, %s223
      %p227 = pneg %p221
      %p228 = scmp.eq.s32.totalorder %s18, 1
      %p229 = por %p227, %p228
      %p230 = scmp.ne.s32.totalorder %s222, %s225
      %p231 = scmp.eq.s32.totalorder %s18, 0
      %p232 = por %p230, %p231
      %p233 = scmp.ne.s32.totalorder %s222, %s225
      %p234 = scmp.eq.s32.totalorder %s23, 1
      %p235 = por %p233, %p234
      %p236 = scmp.ne.s32.totalorder %s225, %s226
      %p237 = scmp.eq.s32.totalorder %s23, 0
      %p238 = por %p236, %p237
      %p239 = scmp.ne.s32.totalorder %s225, %s226
      %p240 = scmp.eq.s32.totalorder %s24, 1
      %p241 = por %p239, %p240
      %p243 = scmp.ne.s32.totalorder %s226, %s242
      %p244 = scmp.eq.s32.totalorder %s24, 0
      %p245 = por %p243, %p244
      %p246 = scmp.le.s32.totalorder 1, %s18
      %p247 = scmp.lt.s32.totalorder %s18, 3
      %p248 = pnand %p246, %p247
      %p249 = pneg %p248
      // Predicated region
      $region9: #{feature_generator_adapt_forward.1} parent=5 // pred_check
        _
      $region10: #{feature_generator_adapt_forward.1} parent=5 // pred_check_branch
        %251 = sbr.rel (%p248) target = $region12
      $region11: #{feature_generator_adapt_forward.1} parent=5 // pred_region
        %s252 = ssub.s32 %s18, 1
        // Predicated region
        $region13: #{feature_generator_adapt_forward.1} parent=11 // pred_check
          %p253 = pneg %p65
        $region14: #{feature_generator_adapt_forward.1} parent=11 // pred_check_branch
          %255 = sbr.rel (%p253) target = $region16
        $region15: #{feature_generator_adapt_forward.1} parent=11 // pred_region
          _
        $region16: #{feature_generator_adapt_forward.1} parent=11 // pred_fallthru
          _
        // Predicated region
        $region17: #{feature_generator_adapt_forward.1} parent=11 // pred_check
          %p256 = pneg %p86
        $region18: #{feature_generator_adapt_forward.1} parent=11 // pred_check_branch
          %258 = sbr.rel (%p256) target = $region20
        $region19: #{feature_generator_adapt_forward.1} parent=11 // pred_region
          _
        $region20: #{feature_generator_adapt_forward.1} parent=11 // pred_fallthru
          _
        // Predicated region
        $region21: #{feature_generator_adapt_forward.1} parent=11 // pred_check
          %p259 = pneg %p107
        $region22: #{feature_generator_adapt_forward.1} parent=11 // pred_check_branch
          %261 = sbr.rel (%p259) target = $region24
        $region23: #{feature_generator_adapt_forward.1} parent=11 // pred_region
          _
        $region24: #{feature_generator_adapt_forward.1} parent=11 // pred_fallthru
          _
        // Predicated region
        $region25: #{feature_generator_adapt_forward.1} parent=11 // pred_check
          %p262 = pneg %p128
        $region26: #{feature_generator_adapt_forward.1} parent=11 // pred_check_branch
          %264 = sbr.rel (%p262) target = $region28
        $region27: #{feature_generator_adapt_forward.1} parent=11 // pred_region
          _
        $region28: #{feature_generator_adapt_forward.1} parent=11 // pred_fallthru
          _
        // Predicated region
        $region29: #{feature_generator_adapt_forward.1} parent=11 // pred_check
          %p265 = pneg %p149
        $region30: #{feature_generator_adapt_forward.1} parent=11 // pred_check_branch
          %267 = sbr.rel (%p265) target = $region32
        $region31: #{feature_generator_adapt_forward.1} parent=11 // pred_region
          _
        $region32: #{feature_generator_adapt_forward.1} parent=11 // pred_fallthru
          _
        // Predicated region
        $region33: #{feature_generator_adapt_forward.1} parent=11 // pred_check
          %p268 = pneg %p170
        $region34: #{feature_generator_adapt_forward.1} parent=11 // pred_check_branch
          %270 = sbr.rel (%p268) target = $region36
        $region35: #{feature_generator_adapt_forward.1} parent=11 // pred_region
          _
        $region36: #{feature_generator_adapt_forward.1} parent=11 // pred_fallthru
          _
        // Predicated region
        $region37: #{feature_generator_adapt_forward.1} parent=11 // pred_check
          %p271 = pneg %p191
        $region38: #{feature_generator_adapt_forward.1} parent=11 // pred_check_branch
          %273 = sbr.rel (%p271) target = $region40
        $region39: #{feature_generator_adapt_forward.1} parent=11 // pred_region
          _
        $region40: #{feature_generator_adapt_forward.1} parent=11 // pred_fallthru
          _
        // Predicated region
        $region41: #{feature_generator_adapt_forward.1} parent=11 // pred_check
          %p274 = pneg %p212
        $region42: #{feature_generator_adapt_forward.1} parent=11 // pred_check_branch
          %276 = sbr.rel (%p274) target = $region44
        $region43: #{feature_generator_adapt_forward.1} parent=11 // pred_region
          _
        $region44: #{feature_generator_adapt_forward.1} parent=11 // pred_fallthru
          _
      $region12: #{feature_generator_adapt_forward.1} parent=5 // pred_fallthru
        _
      %p277 = scmp.lt.s32.totalorder %s18, 2
      // Predicated region
      $region45: #{feature_generator_adapt_forward.1} parent=5 // pred_check
        %p278 = pneg %p277
      $region46: #{feature_generator_adapt_forward.1} parent=5 // pred_check_branch
        %280 = sbr.rel (%p278) target = $region48
      $region47: #{feature_generator_adapt_forward.1} parent=5 // pred_region
        // Predicated region
        $region49: #{feature_generator_adapt_forward.1} parent=47 // pred_check
          %p281 = pneg %p38
        $region50: #{feature_generator_adapt_forward.1} parent=47 // pred_check_branch
          %283 = sbr.rel (%p281) target = $region52
        $region51: #{feature_generator_adapt_forward.1} parent=47 // pred_region
          %p284 = scmp.lt.s32.totalorder %s18, 1
          %s285 = scalar_select %p284, %s18, 1
          %s286 = smul.addr %s285, 12
          %s287 = smul.addr %s286, 8
          %s288 = scalar_lea.vmem %s0, %s287
        $region52: #{feature_generator_adapt_forward.1} parent=47 // pred_fallthru
          _
      $region48: #{feature_generator_adapt_forward.1} parent=5 // pred_fallthru
        _
      %p289 = scmp.le.s32.totalorder 1, %s18
      %p290 = scmp.lt.s32.totalorder %s18, 3
      %p291 = pnand %p289, %p290
      %p292 = pneg %p291
      // Predicated region
      $region53: #{feature_generator_adapt_forward.1} parent=5 // pred_check
        _
      $region54: #{feature_generator_adapt_forward.1} parent=5 // pred_check_branch
        %294 = sbr.rel (%p291) target = $region56
      $region55: #{feature_generator_adapt_forward.1} parent=5 // pred_region
        %s295 = ssub.s32 %s18, 1
        %p296 = scmp.lt.s32.totalorder %s23, 1
        %s297 = scalar_select %p296, %s23, 1
        %s298 = smul.addr %s297, 12
        %s299 = smul.addr %s298, 8
        %s300 = scalar_lea.vmem %s0, %s299
        %p301 = pneg %p44
        %p302 = pneg %p41
        %p303 = pneg %p65
        %p304 = pneg %p62
        %p305 = pneg %p86
        %p306 = pneg %p83
        %p307 = pneg %p107
        %p308 = pneg %p104
        %p309 = pneg %p128
        %p310 = pneg %p125
        %p311 = pneg %p149
        %p312 = pneg %p146
        %p313 = pneg %p170
        %p314 = pneg %p167
        %p315 = pneg %p191
        %p316 = pneg %p188
        %p317 = pneg %p212
        %p318 = pneg %p209
        %p319 = pneg %p238
        %p320 = pneg %p235
        %s321 = sand.u32 %s225, 1
        %s322 = scalar_lea.sflag [#allocation3], %s321
        %s323 = sand.u32 %s225, 1
        %s324 = smul.addr %s323, 4
        %s325 = scalar_lea.vmem [#allocation2], %s324
        %p326 = scmp.lt.s32.totalorder %s23, 1
        %s327 = scalar_select %p326, %s23, 1
        %s328 = smul.addr %s327, 12
        %s329 = smul.addr %s328, 8
        %s330 = scalar_lea.vmem %s0, %s329
        %v331 = vld [vmem:[%s330] sm:$0xff]
        %v332 = vld [vmem:[%s330 + $0x8] sm:$0xff]
        %v333 = vld [vmem:[%s330 + $0x10] sm:$0xff]
        %v334 = vld [vmem:[%s330 + $0x18] sm:$0xff]
        %v335 = vld [vmem:[%s330 + $0x20] sm:$0xff]
        %v336 = vld [vmem:[%s330 + $0x28] sm:$0xff]
        %v337 = vld [vmem:[%s330 + $0x30] sm:$0xff]
        %v338 = vld [vmem:[%s330 + $0x38] sm:$0xff]
        %v339 = vld [vmem:[%s330 + $0x40] sm:$0xff]
        %v340 = vld [vmem:[%s330 + $0x48] sm:$0xff]
        %v341 = vld [vmem:[%s330 + $0x50] sm:$0xff]
        %v342 = vld [vmem:[%s330 + $0x58] sm:$0xff]
        %v343 = vld [vmem:[%s1] sm:$0xff]
        %v344 = vld [vmem:[%s1 + $0x8] sm:$0xff]
        %v345 = vld [vmem:[%s1 + $0x10] sm:$0xff]
        %v346 = vld [vmem:[%s1 + $0x18] sm:$0xff]
        %v347 = vld [vmem:[%s1 + $0x20] sm:$0xff]
        %v348 = vld [vmem:[%s1 + $0x28] sm:$0xff]
        %v349 = vld [vmem:[%s1 + $0x30] sm:$0xff]
        %v350 = vld [vmem:[%s1 + $0x38] sm:$0xff]
        %v351 = vld [vmem:[%s1 + $0x40] sm:$0xff]
        %v352 = vld [vmem:[%s1 + $0x48] sm:$0xff]
        %v353 = vld [vmem:[%s1 + $0x50] sm:$0xff]
        %v354 = vld [vmem:[%s1 + $0x58] sm:$0xff]
        %v355 = vld [vmem:[%s1 + $0x60] sm:$0xff]
        %v356 = vld [vmem:[%s1 + $0x68] sm:$0xff]
        %v357 = vld [vmem:[%s1 + $0x70] sm:$0xff]
        %v358 = vld [vmem:[%s1 + $0x78] sm:$0xff]
        %v359 = vld [vmem:[%s1 + $0x80] sm:$0xff]
        %v360 = vld [vmem:[%s1 + $0x88] sm:$0xff]
        %v361 = vld [vmem:[%s1 + $0x90] sm:$0xff]
        %v362 = vld [vmem:[%s1 + $0x98] sm:$0xff]
        %v363 = vld [vmem:[%s1 + $0xa0] sm:$0xff]
        %v364 = vld [vmem:[%s1 + $0xa8] sm:$0xff]
        %v365 = vld [vmem:[%s1 + $0xb0] sm:$0xff]
        %v366 = vld [vmem:[%s1 + $0xb8] sm:$0xff]
        %v367 = vld [vmem:[%s1 + $0xc0] sm:$0xff]
        %v368 = vld [vmem:[%s1 + $0xc8] sm:$0xff]
        %v369 = vld [vmem:[%s1 + $0xd0] sm:$0xff]
        %v370 = vld [vmem:[%s1 + $0xd8] sm:$0xff]
        %v371 = vld [vmem:[%s1 + $0xe0] sm:$0xff]
        %v372 = vld [vmem:[%s1 + $0xe8] sm:$0xff]
        %v373 = vld [vmem:[%s1 + $0xf0] sm:$0xff]
        %v374 = vld [vmem:[%s1 + $0xf8] sm:$0xff]
        %v375 = vld [vmem:[%s1 + $0x100] sm:$0xff]
        %v376 = vld [vmem:[%s1 + $0x108] sm:$0xff]
        %v377 = vld [vmem:[%s1 + $0x110] sm:$0xff]
        %v378 = vld [vmem:[%s1 + $0x118] sm:$0xff]
        %v379 = vld [vmem:[%s1 + $0x120] sm:$0xff]
        %v380 = vld [vmem:[%s1 + $0x128] sm:$0xff]
        %v381 = vld [vmem:[%s1 + $0x130] sm:$0xff]
        %v382 = vld [vmem:[%s1 + $0x138] sm:$0xff]
        %v383 = vld [vmem:[%s1 + $0x140] sm:$0xff]
        %v384 = vld [vmem:[%s1 + $0x148] sm:$0xff]
        %v385 = vld [vmem:[%s1 + $0x150] sm:$0xff]
        %v386 = vld [vmem:[%s1 + $0x158] sm:$0xff]
        %v387 = vld [vmem:[%s1 + $0x160] sm:$0xff]
        %v388 = vld [vmem:[%s1 + $0x168] sm:$0xff]
        %v389 = vld [vmem:[%s1 + $0x170] sm:$0xff]
        %v390 = vld [vmem:[%s1 + $0x178] sm:$0xff]
        %v391 = vld [vmem:[%s1 + $0x180] sm:$0xff]
        %v392 = vld [vmem:[%s1 + $0x188] sm:$0xff]
        %v393 = vld [vmem:[%s1 + $0x190] sm:$0xff]
        %v394 = vld [vmem:[%s1 + $0x198] sm:$0xff]
        %v395 = vld [vmem:[%s1 + $0x1a0] sm:$0xff]
        %v396 = vld [vmem:[%s1 + $0x1a8] sm:$0xff]
        %v397 = vld [vmem:[%s1 + $0x1b0] sm:$0xff]
        %v398 = vld [vmem:[%s1 + $0x1b8] sm:$0xff]
        %v399 = vld [vmem:[%s1 + $0x1c0] sm:$0xff]
        %v400 = vld [vmem:[%s1 + $0x1c8] sm:$0xff]
        %v401 = vld [vmem:[%s1 + $0x1d0] sm:$0xff]
        %v402 = vld [vmem:[%s1 + $0x1d8] sm:$0xff]
        %v403 = vld [vmem:[%s1 + $0x1e0] sm:$0xff]
        %v404 = vld [vmem:[%s1 + $0x1e8] sm:$0xff]
        %v405 = vld [vmem:[%s1 + $0x1f0] sm:$0xff]
        %v406 = vld [vmem:[%s1 + $0x1f8] sm:$0xff]
        %v407 = vld [vmem:[%s1 + $0x200] sm:$0xff]
        %v408 = vld [vmem:[%s1 + $0x208] sm:$0xff]
        %v409 = vld [vmem:[%s1 + $0x210] sm:$0xff]
        %v410 = vld [vmem:[%s1 + $0x218] sm:$0xff]
        %v411 = vld [vmem:[%s1 + $0x220] sm:$0xff]
        %v412 = vld [vmem:[%s1 + $0x228] sm:$0xff]
        %v413 = vld [vmem:[%s1 + $0x230] sm:$0xff]
        %v414 = vld [vmem:[%s1 + $0x238] sm:$0xff]
        %v415 = vld [vmem:[%s1 + $0x240] sm:$0xff]
        %v416 = vld [vmem:[%s1 + $0x248] sm:$0xff]
        %v417 = vld [vmem:[%s1 + $0x250] sm:$0xff]
        %v418 = vld [vmem:[%s1 + $0x258] sm:$0xff]
        %v419 = vld [vmem:[%s1 + $0x260] sm:$0xff]
        %v420 = vld [vmem:[%s1 + $0x268] sm:$0xff]
        %v421 = vld [vmem:[%s1 + $0x270] sm:$0xff]
        %v422 = vld [vmem:[%s1 + $0x278] sm:$0xff]
        %v423 = vld [vmem:[%s1 + $0x280] sm:$0xff]
        %v424 = vld [vmem:[%s1 + $0x288] sm:$0xff]
        %v425 = vld [vmem:[%s1 + $0x290] sm:$0xff]
        %v426 = vld [vmem:[%s1 + $0x298] sm:$0xff]
        %v427 = vld [vmem:[%s1 + $0x2a0] sm:$0xff]
        %v428 = vld [vmem:[%s1 + $0x2a8] sm:$0xff]
        %v429 = vld [vmem:[%s1 + $0x2b0] sm:$0xff]
        %v430 = vld [vmem:[%s1 + $0x2b8] sm:$0xff]
        %v431 = vld [vmem:[%s1 + $0x2c0] sm:$0xff]
        %v432 = vld [vmem:[%s1 + $0x2c8] sm:$0xff]
        %v433 = vld [vmem:[%s1 + $0x2d0] sm:$0xff]
        %v434 = vld [vmem:[%s1 + $0x2d8] sm:$0xff]
        %v435 = vld [vmem:[%s1 + $0x2e0] sm:$0xff]
        %v436 = vld [vmem:[%s1 + $0x2e8] sm:$0xff]
        %v437 = vld [vmem:[%s1 + $0x2f0] sm:$0xff]
        %v438 = vld [vmem:[%s1 + $0x2f8] sm:$0xff]
        %439 = vmatprep.subr.mxu0 0.0
        %440 = vmatpush1.msra.mxu0 %v343
        %441 = vmatprep.subr.mxu0 0.0
        %442 = vmatpush1.msra.mxu0 %v344
        %443 = vmatprep.subr.mxu0 0.0
        %444 = vmatpush1.msra.mxu0 %v345
        %445 = vmatprep.subr.mxu0 0.0
        %446 = vmatpush1.msra.mxu0 %v346
        %447 = vmatprep.subr.mxu0 0.0
        %448 = vmatpush1.msra.mxu0 %v347
        %449 = vmatprep.subr.mxu0 0.0
        %450 = vmatpush1.msra.mxu0 %v348
        %451 = vmatprep.subr.mxu0 0.0
        %452 = vmatpush1.msra.mxu0 %v349
        %453 = vmatprep.subr.mxu0 0.0
        %454 = vmatpush1.msra.mxu0 %v350
        %455 = vmatprep.subr.mxu0 0.0
        %456 = vmatpush1.msra.mxu0 %v351
        %457 = vmatprep.subr.mxu0 0.0
        %458 = vmatpush1.msra.mxu0 %v352
        %459 = vmatprep.subr.mxu0 0.0
        %460 = vmatpush1.msra.mxu0 %v353
        %461 = vmatprep.subr.mxu0 0.0
        %462 = vmatpush1.msra.mxu0 %v354
        %463 = vmatprep.subr.mxu0 0.0
        %464 = vmatpush1.msra.mxu0 %v355
        %465 = vmatprep.subr.mxu0 0.0
        %466 = vmatpush1.msra.mxu0 %v356
        %467 = vmatprep.subr.mxu0 0.0
        %468 = vmatpush1.msra.mxu0 %v357
        %469 = vmatprep.subr.mxu0 0.0
        %470 = vmatpush1.msra.mxu0 %v358
        %471 = vmatprep.subr.mxu0 0.0
        %472 = vmatpush1.msra.mxu0 %v359
        %473 = vmatprep.subr.mxu0 0.0
        %474 = vmatpush1.msra.mxu0 %v360
        %475 = vmatprep.subr.mxu0 0.0
        %476 = vmatpush1.msra.mxu0 %v361
        %477 = vmatprep.subr.mxu0 0.0
        %478 = vmatpush1.msra.mxu0 %v362
        %479 = vmatprep.subr.mxu0 0.0
        %480 = vmatpush1.msra.mxu0 %v363
        %481 = vmatprep.subr.mxu0 0.0
        %482 = vmatpush1.msra.mxu0 %v364
        %483 = vmatprep.subr.mxu0 0.0
        %484 = vmatpush1.msra.mxu0 %v365
        %485 = vmatprep.subr.mxu0 0.0
        %486 = vmatpush1.msra.mxu0 %v366
        %487 = vmatprep.subr.mxu0 0.0
        %488 = vmatpush1.msra.mxu0 %v367
        %489 = vmatprep.subr.mxu0 0.0
        %490 = vmatpush1.msra.mxu0 %v368
        %491 = vmatprep.subr.mxu0 0.0
        %492 = vmatpush1.msra.mxu0 %v369
        %493 = vmatprep.subr.mxu0 0.0
        %494 = vmatpush1.msra.mxu0 %v370
        %495 = vmatprep.subr.mxu0 0.0
        %496 = vmatpush1.msra.mxu0 %v371
        %497 = vmatprep.subr.mxu0 0.0
        %498 = vmatpush1.msra.mxu0 %v372
        %499 = vmatprep.subr.mxu0 0.0
        %500 = vmatpush1.msra.mxu0 %v373
        %501 = vmatprep.subr.mxu0 0.0
        %502 = vmatpush1.msra.mxu0 %v374
        %503 = vmatprep.mubr.f32.mxu0 %v332
        %504 = vmatmul.mubr.f32.gmra.mrb[0].mxu0 %v331
        %v505 = vpop.f32.mrb[0].mxu0
        %v506 = vadd.f32 0.0, %v505
        %v507 = vpop.f32.mrb[0].mxu0
        %508 = vmatprep.mubr.f32.mxu0 %v338
        %509 = vmatmul.mubr.f32.gmra.mrb[0].mxu0 %v337
        %v510 = vpop.f32.mrb[0].mxu0
        %v511 = vadd.f32 0.0, %v510
        %v512 = vpop.f32.mrb[0].mxu0
        %513 = vdwg.mxu0
        %514 = vmatprep.subr.mxu0 0.0
        %515 = vmatpush1.msra.mxu0 %v375
        %516 = vmatprep.subr.mxu0 0.0
        %517 = vmatpush1.msra.mxu0 %v376
        %518 = vmatprep.subr.mxu0 0.0
        %519 = vmatpush1.msra.mxu0 %v377
        %520 = vmatprep.subr.mxu0 0.0
        %521 = vmatpush1.msra.mxu0 %v378
        %522 = vmatprep.subr.mxu0 0.0
        %523 = vmatpush1.msra.mxu0 %v379
        %524 = vmatprep.subr.mxu0 0.0
        %525 = vmatpush1.msra.mxu0 %v380
        %526 = vmatprep.subr.mxu0 0.0
        %527 = vmatpush1.msra.mxu0 %v381
        %528 = vmatprep.subr.mxu0 0.0
        %529 = vmatpush1.msra.mxu0 %v382
        %530 = vmatprep.subr.mxu0 0.0
        %531 = vmatpush1.msra.mxu0 %v383
        %532 = vmatprep.subr.mxu0 0.0
        %533 = vmatpush1.msra.mxu0 %v384
        %534 = vmatprep.subr.mxu0 0.0
        %535 = vmatpush1.msra.mxu0 %v385
        %536 = vmatprep.subr.mxu0 0.0
        %537 = vmatpush1.msra.mxu0 %v386
        %538 = vmatprep.subr.mxu0 0.0
        %539 = vmatpush1.msra.mxu0 %v387
        %540 = vmatprep.subr.mxu0 0.0
        %541 = vmatpush1.msra.mxu0 %v388
        %542 = vmatprep.subr.mxu0 0.0
        %543 = vmatpush1.msra.mxu0 %v389
        %544 = vmatprep.subr.mxu0 0.0
        %545 = vmatpush1.msra.mxu0 %v390
        %546 = vmatprep.subr.mxu0 0.0
        %547 = vmatpush1.msra.mxu0 %v391
        %548 = vmatprep.subr.mxu0 0.0
        %549 = vmatpush1.msra.mxu0 %v392
        %550 = vmatprep.subr.mxu0 0.0
        %551 = vmatpush1.msra.mxu0 %v393
        %552 = vmatprep.subr.mxu0 0.0
        %553 = vmatpush1.msra.mxu0 %v394
        %554 = vmatprep.subr.mxu0 0.0
        %555 = vmatpush1.msra.mxu0 %v395
        %556 = vmatprep.subr.mxu0 0.0
        %557 = vmatpush1.msra.mxu0 %v396
        %558 = vmatprep.subr.mxu0 0.0
        %559 = vmatpush1.msra.mxu0 %v397
        %560 = vmatprep.subr.mxu0 0.0
        %561 = vmatpush1.msra.mxu0 %v398
        %562 = vmatprep.subr.mxu0 0.0
        %563 = vmatpush1.msra.mxu0 %v399
        %564 = vmatprep.subr.mxu0 0.0
        %565 = vmatpush1.msra.mxu0 %v400
        %566 = vmatprep.subr.mxu0 0.0
        %567 = vmatpush1.msra.mxu0 %v401
        %568 = vmatprep.subr.mxu0 0.0
        %569 = vmatpush1.msra.mxu0 %v402
        %570 = vmatprep.subr.mxu0 0.0
        %571 = vmatpush1.msra.mxu0 %v403
        %572 = vmatprep.subr.mxu0 0.0
        %573 = vmatpush1.msra.mxu0 %v404
        %574 = vmatprep.subr.mxu0 0.0
        %575 = vmatpush1.msra.mxu0 %v405
        %576 = vmatprep.subr.mxu0 0.0
        %577 = vmatpush1.msra.mxu0 %v406
        %578 = vmatprep.mubr.f32.mxu0 %v334
        %579 = vmatmul.mubr.f32.gmra.mrb[0].mxu0 %v333
        %v580 = vpop.f32.mrb[0].mxu0
        %v581 = vadd.f32 %v506, %v580
        %v582 = vpop.f32.mrb[0].mxu0
        %583 = vmatprep.mubr.f32.mxu0 %v340
        %584 = vmatmul.mubr.f32.gmra.mrb[0].mxu0 %v339
        %v585 = vpop.f32.mrb[0].mxu0
        %v586 = vadd.f32 %v511, %v585
        %v587 = vpop.f32.mrb[0].mxu0
        %588 = vdwg.mxu0
        %589 = vmatprep.subr.mxu0 0.0
        %590 = vmatpush1.msra.mxu0 %v407
        %591 = vmatprep.subr.mxu0 0.0
        %592 = vmatpush1.msra.mxu0 %v408
        %593 = vmatprep.subr.mxu0 0.0
        %594 = vmatpush1.msra.mxu0 %v409
        %595 = vmatprep.subr.mxu0 0.0
        %596 = vmatpush1.msra.mxu0 %v410
        %597 = vmatprep.subr.mxu0 0.0
        %598 = vmatpush1.msra.mxu0 %v411
        %599 = vmatprep.subr.mxu0 0.0
        %600 = vmatpush1.msra.mxu0 %v412
        %601 = vmatprep.subr.mxu0 0.0
        %602 = vmatpush1.msra.mxu0 %v413
        %603 = vmatprep.subr.mxu0 0.0
        %604 = vmatpush1.msra.mxu0 %v414
        %605 = vmatprep.subr.mxu0 0.0
        %606 = vmatpush1.msra.mxu0 %v415
        %607 = vmatprep.subr.mxu0 0.0
        %608 = vmatpush1.msra.mxu0 %v416
        %609 = vmatprep.subr.mxu0 0.0
        %610 = vmatpush1.msra.mxu0 %v417
        %611 = vmatprep.subr.mxu0 0.0
        %612 = vmatpush1.msra.mxu0 %v418
        %613 = vmatprep.subr.mxu0 0.0
        %614 = vmatpush1.msra.mxu0 %v419
        %615 = vmatprep.subr.mxu0 0.0
        %616 = vmatpush1.msra.mxu0 %v420
        %617 = vmatprep.subr.mxu0 0.0
        %618 = vmatpush1.msra.mxu0 %v421
        %619 = vmatprep.subr.mxu0 0.0
        %620 = vmatpush1.msra.mxu0 %v422
        %621 = vmatprep.subr.mxu0 0.0
        %622 = vmatpush1.msra.mxu0 %v423
        %623 = vmatprep.subr.mxu0 0.0
        %624 = vmatpush1.msra.mxu0 %v424
        %625 = vmatprep.subr.mxu0 0.0
        %626 = vmatpush1.msra.mxu0 %v425
        %627 = vmatprep.subr.mxu0 0.0
        %628 = vmatpush1.msra.mxu0 %v426
        %629 = vmatprep.subr.mxu0 0.0
        %630 = vmatpush1.msra.mxu0 %v427
        %631 = vmatprep.subr.mxu0 0.0
        %632 = vmatpush1.msra.mxu0 %v428
        %633 = vmatprep.subr.mxu0 0.0
        %634 = vmatpush1.msra.mxu0 %v429
        %635 = vmatprep.subr.mxu0 0.0
        %636 = vmatpush1.msra.mxu0 %v430
        %637 = vmatprep.subr.mxu0 0.0
        %638 = vmatpush1.msra.mxu0 %v431
        %639 = vmatprep.subr.mxu0 0.0
        %640 = vmatpush1.msra.mxu0 %v432
        %641 = vmatprep.subr.mxu0 0.0
        %642 = vmatpush1.msra.mxu0 %v433
        %643 = vmatprep.subr.mxu0 0.0
        %644 = vmatpush1.msra.mxu0 %v434
        %645 = vmatprep.subr.mxu0 0.0
        %646 = vmatpush1.msra.mxu0 %v435
        %647 = vmatprep.subr.mxu0 0.0
        %648 = vmatpush1.msra.mxu0 %v436
        %649 = vmatprep.subr.mxu0 0.0
        %650 = vmatpush1.msra.mxu0 %v437
        %651 = vmatprep.subr.mxu0 0.0
        %652 = vmatpush1.msra.mxu0 %v438
        %653 = vmatprep.mubr.f32.mxu0 %v336
        %654 = vmatmul.mubr.f32.gmra.mrb[0].mxu0 %v335
        %v655 = vpop.f32.mrb[0].mxu0
        %v656 = vadd.f32 %v581, %v655
        %v657 = vpop.f32.mrb[0].mxu0
        %658 = vmatprep.mubr.f32.mxu0 %v342
        %659 = vmatmul.mubr.f32.gmra.mrb[0].mxu0 %v341
        %v660 = vpop.f32.mrb[0].mxu0
        %v661 = vadd.f32 %v586, %v660
        %v662 = vpop.f32.mrb[0].mxu0
        %663 = vdwg.mxu0
        %v664 = vld [vmem:[%s2] sm:$0xff]
        %v665 = vld [vmem:[%s2 + $0x8] sm:$0xff]
        %v666 = vld [vmem:[%s2 + $0x10] sm:$0xf]
        %v667 = vld [vmem:[%s2 + $0x14] sm:$0x1]
        %v668 = vld [vmem:[%s2 + $0x15] sm:$0x1]
        %vm671 = vcmask 1043456
        %v672 = vrot.slane %v656, 4
        %v673 = vrot.slane %v661, 4
        %v674 = vsel %vm671, %v672, %v673
        %v678 = vadd.f32 %v664, %v672
        %v679 = vadd.f32 %v665, %v674
        %v680 = vadd.f32 %v666, %v673
        %v681 = vsel %vm671, %v664, %v678
        %v682 = vld [vmem:[%s3] sm:$0xff]
        %v683 = vld [vmem:[%s3 + $0x8] sm:$0xff]
        %v684 = vld [vmem:[%s3 + $0x10] sm:$0xf]
        %v685 = vld [vmem:[%s8] sm:$0xff]
        %vm686 = vcmask 261120
        %v687 = vsel %vm686, %v681, 0.0
        %688 = vadd.xlane.f32.xlu0 %v687
        %v689 = vpop.xlane.xlu0 %688
        %v690 = vsel %vm686, %v679, 0.0
        %691 = vadd.xlane.f32.xlu0 %v690
        %v692 = vpop.xlane.xlu0 %691
        %vm693 = vcmask 257024
        %v694 = vsel %vm693, %v680, 0.0
        %695 = vadd.xlane.f32.xlu0 %v694
        %v696 = vpop.xlane.xlu0 %695
        %v697 = vrcp.pop 32.0
        %v698 = vmul.f32 %v689, %v697
        %v699 = vmul.f32 %v692, %v697
        %v700 = vmul.f32 %v696, %v697
        %v701 = vsub.f32 %v681, %v698
        %v702 = vsub.f32 %v679, %v699
        %v703 = vsub.f32 %v680, %v700
        %v704 = vmul.f32 %v701, %v701
        %v705 = vmul.f32 %v702, %v702
        %v706 = vmul.f32 %v703, %v703
        %v707 = vsel %vm686, %v704, 0.0
        %708 = vadd.xlane.f32.xlu0 %v707
        %v709 = vpop.xlane.xlu0 %708
        %v710 = vsel %vm686, %v705, 0.0
        %711 = vadd.xlane.f32.xlu0 %v710
        %v712 = vpop.xlane.xlu0 %711
        %v713 = vsel %vm693, %v706, 0.0
        %714 = vadd.xlane.f32.xlu0 %v713
        %v715 = vpop.xlane.xlu0 %714
        %v716 = vmul.f32 %v709, %v697
        %v717 = vmul.f32 %v712, %v697
        %v718 = vmul.f32 %v715, %v697
        %v719 = vadd.f32 %v716, 1e-06
        %v720 = vadd.f32 %v717, 1e-06
        %v721 = vadd.f32 %v718, 1e-06
        %v722 = vrsqrt.pop %v719
        %v723 = vrsqrt.pop %v720
        %v724 = vrsqrt.pop %v721
        %v725 = vmul.f32 %v701, %v722
        %v726 = vmul.f32 %v702, %v723
        %v727 = vmul.f32 %v703, %v724
        %v728 = vlaneseq
        %v729 = vshrl.u32 %v728, 7
        %v730 = vsub.s32 0, %v729
        %v731 = vrot.slane %v685, %v730
        %v732 = vmul.f32 %v725, %v731
        %v733 = vmul.f32 %v726, %v731
        %v734 = vmul.f32 %v727, %v731
        %v735 = vlaneseq
        %v736 = vshrl.u32 %v735, 7
        %v737 = vsub.s32 1, %v736
        %v738 = vrot.slane %v685, %v737
        %v739 = vadd.f32 %v732, %v738
        %v740 = vadd.f32 %v733, %v738
        %v741 = vadd.f32 %v734, %v738
        %v742 = vld [vmem:[%s4] sm:$0xff]
        %v743 = vld [vmem:[%s4 + $0x8] sm:$0xff]
        %v744 = vld [vmem:[%s4 + $0x10] sm:$0xff]
        %v745 = vld [vmem:[%s4 + $0x18] sm:$0xff]
        %v746 = vlaneseq
        %v747 = vshrl.u32 %v746, 7
        %v748 = vsub.s32 2, %v747
        %v749 = vrot.slane %v685, %v748
        %v751 = vsel %vm686, %v739, 0
        %v754 = vsel %vm686, %v740, 0
        %v757 = vsel %vm686, %v741, 0
        %759 = vmatprep.subr.mxu0 0.0
        %760 = vmatpush1.msra.mxu0 %v742
        %761 = vmatprep.subr.mxu0 0.0
        %762 = vmatpush1.msra.mxu0 %v743
        %763 = vmatprep.subr.mxu0 0.0
        %764 = vmatpush1.msra.mxu0 %v744
        %765 = vmatprep.subr.mxu0 0.0
        %766 = vmatpush1.msra.mxu0 %v745
        %767 = vmatprep.subr.mxu0 0.0
        %768 = vmatpush1.msra.mxu0 0.0
        %769 = vmatprep.subr.mxu0 0.0
        %770 = vmatpush1.msra.mxu0 0.0
        %771 = vmatprep.subr.mxu0 0.0
        %772 = vmatpush1.msra.mxu0 0.0
        %773 = vmatprep.subr.mxu0 0.0
        %774 = vmatpush1.msra.mxu0 0.0
        %775 = vmatprep.subr.mxu0 0.0
        %776 = vmatpush1.msra.mxu0 0.0
        %777 = vmatprep.subr.mxu0 0.0
        %778 = vmatpush1.msra.mxu0 0.0
        %779 = vmatprep.subr.mxu0 0.0
        %780 = vmatpush1.msra.mxu0 0.0
        %781 = vmatprep.subr.mxu0 0.0
        %782 = vmatpush1.msra.mxu0 0.0
        %783 = vmatprep.subr.mxu0 0.0
        %784 = vmatpush1.msra.mxu0 0.0
        %785 = vmatprep.subr.mxu0 0.0
        %786 = vmatpush1.msra.mxu0 0.0
        %787 = vmatprep.subr.mxu0 0.0
        %788 = vmatpush1.msra.mxu0 0.0
        %789 = vmatprep.subr.mxu0 0.0
        %790 = vmatpush1.msra.mxu0 0.0
        %791 = vmatprep.subr.mxu0 0.0
        %792 = vmatpush1.msra.mxu0 0.0
        %793 = vmatprep.subr.mxu0 0.0
        %794 = vmatpush1.msra.mxu0 0.0
        %795 = vmatprep.subr.mxu0 0.0
        %796 = vmatpush1.msra.mxu0 0.0
        %797 = vmatprep.subr.mxu0 0.0
        %798 = vmatpush1.msra.mxu0 0.0
        %799 = vmatprep.subr.mxu0 0.0
        %800 = vmatpush1.msra.mxu0 0.0
        %801 = vmatprep.subr.mxu0 0.0
        %802 = vmatpush1.msra.mxu0 0.0
        %803 = vmatprep.subr.mxu0 0.0
        %804 = vmatpush1.msra.mxu0 0.0
        %805 = vmatprep.subr.mxu0 0.0
        %806 = vmatpush1.msra.mxu0 0.0
        %807 = vmatprep.subr.mxu0 0.0
        %808 = vmatpush1.msra.mxu0 0.0
        %809 = vmatprep.subr.mxu0 0.0
        %810 = vmatpush1.msra.mxu0 0.0
        %811 = vmatprep.subr.mxu0 0.0
        %812 = vmatpush1.msra.mxu0 0.0
        %813 = vmatprep.subr.mxu0 0.0
        %814 = vmatpush1.msra.mxu0 0.0
        %815 = vmatprep.subr.mxu0 0.0
        %816 = vmatpush1.msra.mxu0 0.0
        %817 = vmatprep.subr.mxu0 0.0
        %818 = vmatpush1.msra.mxu0 0.0
        %819 = vmatprep.subr.mxu0 0.0
        %820 = vmatpush1.msra.mxu0 0.0
        %821 = vmatprep.subr.mxu0 0.0
        %822 = vmatpush1.msra.mxu0 0.0
        %823 = vmatprep.mubr.f32.mxu0 0.0
        %824 = vmatmul.mubr.f32.gmra.mrb[0].mxu0 %v751
        %v825 = vpop.f32.mrb[0].mxu0
        %v826 = vadd.f32 %v749, %v825
        %v827 = vpop.f32.mrb[0].mxu0
        %828 = vmatprep.mubr.f32.mxu0 0.0
        %829 = vmatmul.mubr.f32.gmra.mrb[0].mxu0 %v754
        %v830 = vpop.f32.mrb[0].mxu0
        %v831 = vadd.f32 %v749, %v830
        %v832 = vpop.f32.mrb[0].mxu0
        %833 = vmatprep.mubr.f32.mxu0 0.0
        %834 = vmatmul.mubr.f32.gmra.mrb[0].mxu0 %v757
        %v835 = vpop.f32.mrb[0].mxu0
        %v836 = vadd.f32 %v749, %v835
        %v837 = vpop.f32.mrb[0].mxu0
        %838 = vdwg.mxu0
        %842 = vrot.lane.b32.xlu0 %v826, 96
        %v843 = vpop.permute.xlu0 %842
        %844 = vrot.lane.b32.xlu0 %v831, 96
        %v845 = vpop.permute.xlu0 %844
        %846 = vrot.lane.b32.xlu0 %v836, 96
        %v847 = vpop.permute.xlu0 %846
        %vm848 = vcmask 130048
        %v849 = vsel %vm848, %v826, 0
        %v851 = vsel %vm848, %v831, 0
        %v853 = vsel %vm848, %v836, 0
        %v855 = vsel %vm848, %v843, 0
        %v857 = vsel %vm848, %v845, 0
        %v859 = vsel %vm848, %v847, 0
        %861 = vmatprep.subr.mxu0 0.0
        %862 = vmatpush1.xpose.msra.mxu0 %v855
        %863 = vmatprep.subr.mxu0 0.0
        %864 = vmatpush1.xpose.msra.mxu0 %v857
        %865 = vmatprep.subr.mxu0 0.0
        %866 = vmatpush1.xpose.msra.mxu0 %v859
        %867 = vmatprep.subr.mxu0 0.0
        %868 = vmatpush1.xpose.msra.mxu0 0.0
        %869 = vmatprep.subr.mxu0 0.0
        %870 = vmatpush1.xpose.msra.mxu0 0.0
        %871 = vmatprep.subr.mxu0 0.0
        %872 = vmatpush1.xpose.msra.mxu0 0.0
        %873 = vmatprep.subr.mxu0 0.0
        %874 = vmatpush1.xpose.msra.mxu0 0.0
        %875 = vmatprep.subr.mxu0 0.0
        %876 = vmatpush1.xpose.msra.mxu0 0.0
        %877 = vmatprep.subr.mxu0 0.0
        %878 = vmatpush1.xpose.msra.mxu0 0.0
        %879 = vmatprep.subr.mxu0 0.0
        %880 = vmatpush1.xpose.msra.mxu0 0.0
        %881 = vmatprep.subr.mxu0 0.0
        %882 = vmatpush1.xpose.msra.mxu0 0.0
        %883 = vmatprep.subr.mxu0 0.0
        %884 = vmatpush1.xpose.msra.mxu0 0.0
        %885 = vmatprep.subr.mxu0 0.0
        %886 = vmatpush1.xpose.msra.mxu0 0.0
        %887 = vmatprep.subr.mxu0 0.0
        %888 = vmatpush1.xpose.msra.mxu0 0.0
        %889 = vmatprep.subr.mxu0 0.0
        %890 = vmatpush1.xpose.msra.mxu0 0.0
        %891 = vmatprep.subr.mxu0 0.0
        %892 = vmatpush1.xpose.msra.mxu0 0.0
        %893 = vmatprep.subr.mxu0 0.0
        %894 = vmatpush1.xpose.msra.mxu0 0.0
        %895 = vmatprep.subr.mxu0 0.0
        %896 = vmatpush1.xpose.msra.mxu0 0.0
        %897 = vmatprep.subr.mxu0 0.0
        %898 = vmatpush1.xpose.msra.mxu0 0.0
        %899 = vmatprep.subr.mxu0 0.0
        %900 = vmatpush1.xpose.msra.mxu0 0.0
        %901 = vmatprep.subr.mxu0 0.0
        %902 = vmatpush1.xpose.msra.mxu0 0.0
        %903 = vmatprep.subr.mxu0 0.0
        %904 = vmatpush1.xpose.msra.mxu0 0.0
        %905 = vmatprep.subr.mxu0 0.0
        %906 = vmatpush1.xpose.msra.mxu0 0.0
        %907 = vmatprep.subr.mxu0 0.0
        %908 = vmatpush1.xpose.msra.mxu0 0.0
        %909 = vmatprep.subr.mxu0 0.0
        %910 = vmatpush1.xpose.msra.mxu0 0.0
        %911 = vmatprep.subr.mxu0 0.0
        %912 = vmatpush1.xpose.msra.mxu0 0.0
        %913 = vmatprep.subr.mxu0 0.0
        %914 = vmatpush1.xpose.msra.mxu0 0.0
        %915 = vmatprep.subr.mxu0 0.0
        %916 = vmatpush1.xpose.msra.mxu0 0.0
        %917 = vmatprep.subr.mxu0 0.0
        %918 = vmatpush1.xpose.msra.mxu0 0.0
        %919 = vmatprep.subr.mxu0 0.0
        %920 = vmatpush1.xpose.msra.mxu0 0.0
        %921 = vmatprep.subr.mxu0 0.0
        %922 = vmatpush1.xpose.msra.mxu0 0.0
        %923 = vmatprep.subr.mxu0 0.0
        %924 = vmatpush1.xpose.msra.mxu0 0.0
        %925 = vmatprep.mubr.f32.mxu0 0.0
        %926 = vmatmul.mubr.f32.gmra.mrb[0].mxu0 %v849
        %v927 = vpop.f32.mrb[0].mxu0
        %v928 = vadd.f32 0.0, %v927
        %v929 = vpop.f32.mrb[0].mxu0
        %930 = vmatprep.mubr.f32.mxu0 0.0
        %931 = vmatmul.mubr.f32.gmra.mrb[0].mxu0 %v851
        %v932 = vpop.f32.mrb[0].mxu0
        %v933 = vadd.f32 0.0, %v932
        %v934 = vpop.f32.mrb[0].mxu0
        %935 = vmatprep.mubr.f32.mxu0 0.0
        %936 = vmatmul.mubr.f32.gmra.mrb[0].mxu0 %v853
        %v937 = vpop.f32.mrb[0].mxu0
        %v938 = vadd.f32 0.0, %v937
        %v939 = vpop.f32.mrb[0].mxu0
        %940 = vdwg.mxu0
        %v941 = vmul.f32 %v928, 0.25
        %v942 = vmul.f32 %v933, 0.25
        %v943 = vmul.f32 %v938, 0.25
        %v944 = vadd.f32 %v941, %v682
        %v945 = vadd.f32 %v942, %v683
        %v946 = vadd.f32 %v943, %v684
        %vm947 = vcmask 162816
        %v948 = vsel %vm947, %v944, -inf
        %949 = vmax.xlane.f32.xlu0 %v948
        %v950 = vpop.xlane.xlu0 %949
        %v951 = vsel %vm947, %v945, -inf
        %952 = vmax.xlane.f32.xlu0 %v951
        %v953 = vpop.xlane.xlu0 %952
        %vm954 = vcmask 158720
        %v955 = vsel %vm954, %v946, -inf
        %956 = vmax.xlane.f32.xlu0 %v955
        %v957 = vpop.xlane.xlu0 %956
        %v958 = vsub.f32 %v944, %v950
        %v959 = vsub.f32 %v945, %v953
        %v960 = vsub.f32 %v946, %v957
        %v961 = vmul.f32 %v958, 1.442695
        %v962 = vpow.pop %v961
        %v963 = vmul.f32 %v959, 1.442695
        %v964 = vpow.pop %v963
        %v965 = vmul.f32 %v960, 1.442695
        %v966 = vpow.pop %v965
        %v967 = vsel %vm947, %v962, 0.0
        %968 = vadd.xlane.f32.xlu0 %v967
        %v969 = vpop.xlane.xlu0 %968
        %v970 = vsel %vm947, %v964, 0.0
        %971 = vadd.xlane.f32.xlu0 %v970
        %v972 = vpop.xlane.xlu0 %971
        %v973 = vsel %vm954, %v966, 0.0
        %974 = vadd.xlane.f32.xlu0 %v973
        %v975 = vpop.xlane.xlu0 %974
        %v976 = vrcp.pop %v969
        %v977 = vrcp.pop %v972
        %v978 = vrcp.pop %v975
        %v979 = vmul.f32 %v962, %v976
        %v980 = vmul.f32 %v964, %v977
        %v981 = vmul.f32 %v966, %v978
        %982 = vrot.lane.b32.xlu0 %v826, 64
        %v983 = vpop.permute.xlu0 %982
        %984 = vrot.lane.b32.xlu0 %v831, 64
        %v985 = vpop.permute.xlu0 %984
        %986 = vrot.lane.b32.xlu0 %v836, 64
        %v987 = vpop.permute.xlu0 %986
        %v991 = vsel %vm947, %v979, 0
        %v994 = vsel %vm947, %v980, 0
        %v997 = vsel %vm947, %v981, 0
        %v999 = vsel %vm671, %v987, 0
        %1001 = vmatprep.subr.mxu0 0.0
        %1002 = vmatpush1.msra.mxu0 %v983
        %1003 = vmatprep.subr.mxu0 0.0
        %1004 = vmatpush1.msra.mxu0 %v985
        %1005 = vmatprep.subr.mxu0 0.0
        %1006 = vmatpush1.msra.mxu0 %v999
        %1007 = vmatprep.subr.mxu0 0.0
        %1008 = vmatpush1.msra.mxu0 0.0
        %1009 = vmatprep.subr.mxu0 0.0
        %1010 = vmatpush1.msra.mxu0 0.0
        %1011 = vmatprep.subr.mxu0 0.0
        %1012 = vmatpush1.msra.mxu0 0.0
        %1013 = vmatprep.subr.mxu0 0.0
        %1014 = vmatpush1.msra.mxu0 0.0
        %1015 = vmatprep.subr.mxu0 0.0
        %1016 = vmatpush1.msra.mxu0 0.0
        %1017 = vmatprep.subr.mxu0 0.0
        %1018 = vmatpush1.msra.mxu0 0.0
        %1019 = vmatprep.subr.mxu0 0.0
        %1020 = vmatpush1.msra.mxu0 0.0
        %1021 = vmatprep.subr.mxu0 0.0
        %1022 = vmatpush1.msra.mxu0 0.0
        %1023 = vmatprep.subr.mxu0 0.0
        %1024 = vmatpush1.msra.mxu0 0.0
        %1025 = vmatprep.subr.mxu0 0.0
        %1026 = vmatpush1.msra.mxu0 0.0
        %1027 = vmatprep.subr.mxu0 0.0
        %1028 = vmatpush1.msra.mxu0 0.0
        %1029 = vmatprep.subr.mxu0 0.0
        %1030 = vmatpush1.msra.mxu0 0.0
        %1031 = vmatprep.subr.mxu0 0.0
        %1032 = vmatpush1.msra.mxu0 0.0
        %1033 = vmatprep.subr.mxu0 0.0
        %1034 = vmatpush1.msra.mxu0 0.0
        %1035 = vmatprep.subr.mxu0 0.0
        %1036 = vmatpush1.msra.mxu0 0.0
        %1037 = vmatprep.subr.mxu0 0.0
        %1038 = vmatpush1.msra.mxu0 0.0
        %1039 = vmatprep.subr.mxu0 0.0
        %1040 = vmatpush1.msra.mxu0 0.0
        %1041 = vmatprep.subr.mxu0 0.0
        %1042 = vmatpush1.msra.mxu0 0.0
        %1043 = vmatprep.subr.mxu0 0.0
        %1044 = vmatpush1.msra.mxu0 0.0
        %1045 = vmatprep.subr.mxu0 0.0
        %1046 = vmatpush1.msra.mxu0 0.0
        %1047 = vmatprep.subr.mxu0 0.0
        %1048 = vmatpush1.msra.mxu0 0.0
        %1049 = vmatprep.subr.mxu0 0.0
        %1050 = vmatpush1.msra.mxu0 0.0
        %1051 = vmatprep.subr.mxu0 0.0
        %1052 = vmatpush1.msra.mxu0 0.0
        %1053 = vmatprep.subr.mxu0 0.0
        %1054 = vmatpush1.msra.mxu0 0.0
        %1055 = vmatprep.subr.mxu0 0.0
        %1056 = vmatpush1.msra.mxu0 0.0
        %1057 = vmatprep.subr.mxu0 0.0
        %1058 = vmatpush1.msra.mxu0 0.0
        %1059 = vmatprep.subr.mxu0 0.0
        %1060 = vmatpush1.msra.mxu0 0.0
        %1061 = vmatprep.subr.mxu0 0.0
        %1062 = vmatpush1.msra.mxu0 0.0
        %1063 = vmatprep.subr.mxu0 0.0
        %1064 = vmatpush1.msra.mxu0 0.0
        %1065 = vmatprep.mubr.f32.mxu0 0.0
        %1066 = vmatmul.mubr.f32.gmra.mrb[0].mxu0 %v991
        %v1067 = vpop.f32.mrb[0].mxu0
        %v1068 = vadd.f32 0.0, %v1067
        %v1069 = vpop.f32.mrb[0].mxu0
        %1070 = vmatprep.mubr.f32.mxu0 0.0
        %1071 = vmatmul.mubr.f32.gmra.mrb[0].mxu0 %v994
        %v1072 = vpop.f32.mrb[0].mxu0
        %v1073 = vadd.f32 0.0, %v1072
        %v1074 = vpop.f32.mrb[0].mxu0
        %1075 = vmatprep.mubr.f32.mxu0 0.0
        %1076 = vmatmul.mubr.f32.gmra.mrb[0].mxu0 %v997
        %v1077 = vpop.f32.mrb[0].mxu0
        %v1078 = vadd.f32 0.0, %v1077
        %v1079 = vpop.f32.mrb[0].mxu0
        %1080 = vdwg.mxu0
        %1081 = vrot.lane.b32.xlu0 %v826, 112
        %v1082 = vpop.permute.xlu0 %1081
        %1083 = vrot.lane.b32.xlu0 %v831, 112
        %v1084 = vpop.permute.xlu0 %1083
        %1085 = vrot.lane.b32.xlu0 %v836, 112
        %v1086 = vpop.permute.xlu0 %1085
        %1087 = vrot.lane.b32.xlu0 %v826, 80
        %v1088 = vpop.permute.xlu0 %1087
        %1089 = vrot.lane.b32.xlu0 %v831, 80
        %v1090 = vpop.permute.xlu0 %1089
        %1091 = vrot.lane.b32.xlu0 %v836, 80
        %v1092 = vpop.permute.xlu0 %1091
        %v1093 = vsel %vm848, %v1082, 0
        %v1095 = vsel %vm848, %v1084, 0
        %v1097 = vsel %vm848, %v1086, 0
        %v1099 = vsel %vm848, %v1088, 0
        %v1101 = vsel %vm848, %v1090, 0
        %v1103 = vsel %vm848, %v1092, 0
        %1105 = vmatprep.subr.mxu0 0.0
        %1106 = vmatpush1.xpose.msra.mxu0 %v1099
        %1107 = vmatprep.subr.mxu0 0.0
        %1108 = vmatpush1.xpose.msra.mxu0 %v1101
        %1109 = vmatprep.subr.mxu0 0.0
        %1110 = vmatpush1.xpose.msra.mxu0 %v1103
        %1111 = vmatprep.subr.mxu0 0.0
        %1112 = vmatpush1.xpose.msra.mxu0 0.0
        %1113 = vmatprep.subr.mxu0 0.0
        %1114 = vmatpush1.xpose.msra.mxu0 0.0
        %1115 = vmatprep.subr.mxu0 0.0
        %1116 = vmatpush1.xpose.msra.mxu0 0.0
        %1117 = vmatprep.subr.mxu0 0.0
        %1118 = vmatpush1.xpose.msra.mxu0 0.0
        %1119 = vmatprep.subr.mxu0 0.0
        %1120 = vmatpush1.xpose.msra.mxu0 0.0
        %1121 = vmatprep.subr.mxu0 0.0
        %1122 = vmatpush1.xpose.msra.mxu0 0.0
        %1123 = vmatprep.subr.mxu0 0.0
        %1124 = vmatpush1.xpose.msra.mxu0 0.0
        %1125 = vmatprep.subr.mxu0 0.0
        %1126 = vmatpush1.xpose.msra.mxu0 0.0
        %1127 = vmatprep.subr.mxu0 0.0
        %1128 = vmatpush1.xpose.msra.mxu0 0.0
        %1129 = vmatprep.subr.mxu0 0.0
        %1130 = vmatpush1.xpose.msra.mxu0 0.0
        %1131 = vmatprep.subr.mxu0 0.0
        %1132 = vmatpush1.xpose.msra.mxu0 0.0
        %1133 = vmatprep.subr.mxu0 0.0
        %1134 = vmatpush1.xpose.msra.mxu0 0.0
        %1135 = vmatprep.subr.mxu0 0.0
        %1136 = vmatpush1.xpose.msra.mxu0 0.0
        %1137 = vmatprep.subr.mxu0 0.0
        %1138 = vmatpush1.xpose.msra.mxu0 0.0
        %1139 = vmatprep.subr.mxu0 0.0
        %1140 = vmatpush1.xpose.msra.mxu0 0.0
        %1141 = vmatprep.subr.mxu0 0.0
        %1142 = vmatpush1.xpose.msra.mxu0 0.0
        %1143 = vmatprep.subr.mxu0 0.0
        %1144 = vmatpush1.xpose.msra.mxu0 0.0
        %1145 = vmatprep.subr.mxu0 0.0
        %1146 = vmatpush1.xpose.msra.mxu0 0.0
        %1147 = vmatprep.subr.mxu0 0.0
        %1148 = vmatpush1.xpose.msra.mxu0 0.0
        %1149 = vmatprep.subr.mxu0 0.0
        %1150 = vmatpush1.xpose.msra.mxu0 0.0
        %1151 = vmatprep.subr.mxu0 0.0
        %1152 = vmatpush1.xpose.msra.mxu0 0.0
        %1153 = vmatprep.subr.mxu0 0.0
        %1154 = vmatpush1.xpose.msra.mxu0 0.0
        %1155 = vmatprep.subr.mxu0 0.0
        %1156 = vmatpush1.xpose.msra.mxu0 0.0
        %1157 = vmatprep.subr.mxu0 0.0
        %1158 = vmatpush1.xpose.msra.mxu0 0.0
        %1159 = vmatprep.subr.mxu0 0.0
        %1160 = vmatpush1.xpose.msra.mxu0 0.0
        %1161 = vmatprep.subr.mxu0 0.0
        %1162 = vmatpush1.xpose.msra.mxu0 0.0
        %1163 = vmatprep.subr.mxu0 0.0
        %1164 = vmatpush1.xpose.msra.mxu0 0.0
        %1165 = vmatprep.subr.mxu0 0.0
        %1166 = vmatpush1.xpose.msra.mxu0 0.0
        %1167 = vmatprep.subr.mxu0 0.0
        %1168 = vmatpush1.xpose.msra.mxu0 0.0
        %1169 = vmatprep.mubr.f32.mxu0 0.0
        %1170 = vmatmul.mubr.f32.gmra.mrb[0].mxu0 %v1093
        %v1171 = vpop.f32.mrb[0].mxu0
        %v1172 = vadd.f32 0.0, %v1171
        %v1173 = vpop.f32.mrb[0].mxu0
        %1174 = vmatprep.mubr.f32.mxu0 0.0
        %1175 = vmatmul.mubr.f32.gmra.mrb[0].mxu0 %v1095
        %v1176 = vpop.f32.mrb[0].mxu0
        %v1177 = vadd.f32 0.0, %v1176
        %v1178 = vpop.f32.mrb[0].mxu0
        %1179 = vmatprep.mubr.f32.mxu0 0.0
        %1180 = vmatmul.mubr.f32.gmra.mrb[0].mxu0 %v1097
        %v1181 = vpop.f32.mrb[0].mxu0
        %v1182 = vadd.f32 0.0, %v1181
        %v1183 = vpop.f32.mrb[0].mxu0
        %1184 = vdwg.mxu0
        %v1185 = vmul.f32 %v1172, 0.25
        %v1186 = vmul.f32 %v1177, 0.25
        %v1187 = vmul.f32 %v1182, 0.25
        %v1188 = vadd.f32 %v1185, %v682
        %v1189 = vadd.f32 %v1186, %v683
        %v1190 = vadd.f32 %v1187, %v684
        %v1191 = vsel %vm947, %v1188, -inf
        %1192 = vmax.xlane.f32.xlu0 %v1191
        %v1193 = vpop.xlane.xlu0 %1192
        %v1194 = vsel %vm947, %v1189, -inf
        %1195 = vmax.xlane.f32.xlu0 %v1194
        %v1196 = vpop.xlane.xlu0 %1195
        %v1197 = vsel %vm954, %v1190, -inf
        %1198 = vmax.xlane.f32.xlu0 %v1197
        %v1199 = vpop.xlane.xlu0 %1198
        %v1200 = vsub.f32 %v1188, %v1193
        %v1201 = vsub.f32 %v1189, %v1196
        %v1202 = vsub.f32 %v1190, %v1199
        %v1203 = vmul.f32 %v1200, 1.442695
        %v1204 = vpow.pop %v1203
        %v1205 = vmul.f32 %v1201, 1.442695
        %v1206 = vpow.pop %v1205
        %v1207 = vmul.f32 %v1202, 1.442695
        %v1208 = vpow.pop %v1207
        %v1209 = vsel %vm947, %v1204, 0.0
        %1210 = vadd.xlane.f32.xlu0 %v1209
        %v1211 = vpop.xlane.xlu0 %1210
        %v1212 = vsel %vm947, %v1206, 0.0
        %1213 = vadd.xlane.f32.xlu0 %v1212
        %v1214 = vpop.xlane.xlu0 %1213
        %v1215 = vsel %vm954, %v1208, 0.0
        %1216 = vadd.xlane.f32.xlu0 %v1215
        %v1217 = vpop.xlane.xlu0 %1216
        %v1218 = vrcp.pop %v1211
        %v1219 = vrcp.pop %v1214
        %v1220 = vrcp.pop %v1217
        %v1221 = vmul.f32 %v1204, %v1218
        %v1222 = vmul.f32 %v1206, %v1219
        %v1223 = vmul.f32 %v1208, %v1220
        %1224 = vrot.lane.b32.xlu0 %v826, 48
        %v1225 = vpop.permute.xlu0 %1224
        %1226 = vrot.lane.b32.xlu0 %v831, 48
        %v1227 = vpop.permute.xlu0 %1226
        %1228 = vrot.lane.b32.xlu0 %v836, 48
        %v1229 = vpop.permute.xlu0 %1228
        %v1233 = vsel %vm947, %v1221, 0
        %v1236 = vsel %vm947, %v1222, 0
        %v1239 = vsel %vm947, %v1223, 0
        %v1241 = vsel %vm671, %v1229, 0
        %1243 = vmatprep.subr.mxu0 0.0
        %1244 = vmatpush1.msra.mxu0 %v1225
        %1245 = vmatprep.subr.mxu0 0.0
        %1246 = vmatpush1.msra.mxu0 %v1227
        %1247 = vmatprep.subr.mxu0 0.0
        %1248 = vmatpush1.msra.mxu0 %v1241
        %1249 = vmatprep.subr.mxu0 0.0
        %1250 = vmatpush1.msra.mxu0 0.0
        %1251 = vmatprep.subr.mxu0 0.0
        %1252 = vmatpush1.msra.mxu0 0.0
        %1253 = vmatprep.subr.mxu0 0.0
        %1254 = vmatpush1.msra.mxu0 0.0
        %1255 = vmatprep.subr.mxu0 0.0
        %1256 = vmatpush1.msra.mxu0 0.0
        %1257 = vmatprep.subr.mxu0 0.0
        %1258 = vmatpush1.msra.mxu0 0.0
        %1259 = vmatprep.subr.mxu0 0.0
        %1260 = vmatpush1.msra.mxu0 0.0
        %1261 = vmatprep.subr.mxu0 0.0
        %1262 = vmatpush1.msra.mxu0 0.0
        %1263 = vmatprep.subr.mxu0 0.0
        %1264 = vmatpush1.msra.mxu0 0.0
        %1265 = vmatprep.subr.mxu0 0.0
        %1266 = vmatpush1.msra.mxu0 0.0
        %1267 = vmatprep.subr.mxu0 0.0
        %1268 = vmatpush1.msra.mxu0 0.0
        %1269 = vmatprep.subr.mxu0 0.0
        %1270 = vmatpush1.msra.mxu0 0.0
        %1271 = vmatprep.subr.mxu0 0.0
        %1272 = vmatpush1.msra.mxu0 0.0
        %1273 = vmatprep.subr.mxu0 0.0
        %1274 = vmatpush1.msra.mxu0 0.0
        %1275 = vmatprep.subr.mxu0 0.0
        %1276 = vmatpush1.msra.mxu0 0.0
        %1277 = vmatprep.subr.mxu0 0.0
        %1278 = vmatpush1.msra.mxu0 0.0
        %1279 = vmatprep.subr.mxu0 0.0
        %1280 = vmatpush1.msra.mxu0 0.0
        %1281 = vmatprep.subr.mxu0 0.0
        %1282 = vmatpush1.msra.mxu0 0.0
        %1283 = vmatprep.subr.mxu0 0.0
        %1284 = vmatpush1.msra.mxu0 0.0
        %1285 = vmatprep.subr.mxu0 0.0
        %1286 = vmatpush1.msra.mxu0 0.0
        %1287 = vmatprep.subr.mxu0 0.0
        %1288 = vmatpush1.msra.mxu0 0.0
        %1289 = vmatprep.subr.mxu0 0.0
        %1290 = vmatpush1.msra.mxu0 0.0
        %1291 = vmatprep.subr.mxu0 0.0
        %1292 = vmatpush1.msra.mxu0 0.0
        %1293 = vmatprep.subr.mxu0 0.0
        %1294 = vmatpush1.msra.mxu0 0.0
        %1295 = vmatprep.subr.mxu0 0.0
        %1296 = vmatpush1.msra.mxu0 0.0
        %1297 = vmatprep.subr.mxu0 0.0
        %1298 = vmatpush1.msra.mxu0 0.0
        %1299 = vmatprep.subr.mxu0 0.0
        %1300 = vmatpush1.msra.mxu0 0.0
        %1301 = vmatprep.subr.mxu0 0.0
        %1302 = vmatpush1.msra.mxu0 0.0
        %1303 = vmatprep.subr.mxu0 0.0
        %1304 = vmatpush1.msra.mxu0 0.0
        %1305 = vmatprep.subr.mxu0 0.0
        %1306 = vmatpush1.msra.mxu0 0.0
        %1307 = vmatprep.mubr.f32.mxu0 0.0
        %1308 = vmatmul.mubr.f32.gmra.mrb[0].mxu0 %v1233
        %v1309 = vpop.f32.mrb[0].mxu0
        %v1310 = vadd.f32 0.0, %v1309
        %v1311 = vpop.f32.mrb[0].mxu0
        %1312 = vmatprep.mubr.f32.mxu0 0.0
        %1313 = vmatmul.mubr.f32.gmra.mrb[0].mxu0 %v1236
        %v1314 = vpop.f32.mrb[0].mxu0
        %v1315 = vadd.f32 0.0, %v1314
        %v1316 = vpop.f32.mrb[0].mxu0
        %1317 = vmatprep.mubr.f32.mxu0 0.0
        %1318 = vmatmul.mubr.f32.gmra.mrb[0].mxu0 %v1239
        %v1319 = vpop.f32.mrb[0].mxu0
        %v1320 = vadd.f32 0.0, %v1319
        %v1321 = vpop.f32.mrb[0].mxu0
        %1322 = vdwg.mxu0
        %1326 = vrot.lane.b32.xlu0 %v1310, 16
        %v1327 = vpop.permute.xlu0 %1326
        %1328 = vrot.lane.b32.xlu0 %v1315, 16
        %v1329 = vpop.permute.xlu0 %1328
        %1330 = vrot.lane.b32.xlu0 %v1320, 16
        %v1331 = vpop.permute.xlu0 %1330
        %v1335 = vsel %vm848, %v1068, %v1327
        %v1336 = vsel %vm848, %v1073, %v1329
        %v1337 = vsel %vm848, %v1078, %v1331
        %v1338 = vld [vmem:[%s5] sm:$0xff]
        %v1339 = vld [vmem:[%s5 + $0x8] sm:$0xff]
        %v1340 = vld [vmem:[%s5 + $0x10] sm:$0xff]
        %v1341 = vld [vmem:[%s5 + $0x18] sm:$0xff]
        %v1342 = vlaneseq
        %v1343 = vshrl.u32 %v1342, 7
        %v1344 = vsub.s32 3, %v1343
        %v1345 = vrot.slane %v685, %v1344
        %v1347 = vsel %vm686, %v1335, 0
        %v1350 = vsel %vm686, %v1336, 0
        %v1353 = vsel %vm686, %v1337, 0
        %1355 = vmatprep.subr.mxu0 0.0
        %1356 = vmatpush1.msra.mxu0 %v1338
        %1357 = vmatprep.subr.mxu0 0.0
        %1358 = vmatpush1.msra.mxu0 %v1339
        %1359 = vmatprep.subr.mxu0 0.0
        %1360 = vmatpush1.msra.mxu0 %v1340
        %1361 = vmatprep.subr.mxu0 0.0
        %1362 = vmatpush1.msra.mxu0 %v1341
        %1363 = vmatprep.subr.mxu0 0.0
        %1364 = vmatpush1.msra.mxu0 0.0
        %1365 = vmatprep.subr.mxu0 0.0
        %1366 = vmatpush1.msra.mxu0 0.0
        %1367 = vmatprep.subr.mxu0 0.0
        %1368 = vmatpush1.msra.mxu0 0.0
        %1369 = vmatprep.subr.mxu0 0.0
        %1370 = vmatpush1.msra.mxu0 0.0
        %1371 = vmatprep.subr.mxu0 0.0
        %1372 = vmatpush1.msra.mxu0 0.0
        %1373 = vmatprep.subr.mxu0 0.0
        %1374 = vmatpush1.msra.mxu0 0.0
        %1375 = vmatprep.subr.mxu0 0.0
        %1376 = vmatpush1.msra.mxu0 0.0
        %1377 = vmatprep.subr.mxu0 0.0
        %1378 = vmatpush1.msra.mxu0 0.0
        %1379 = vmatprep.subr.mxu0 0.0
        %1380 = vmatpush1.msra.mxu0 0.0
        %1381 = vmatprep.subr.mxu0 0.0
        %1382 = vmatpush1.msra.mxu0 0.0
        %1383 = vmatprep.subr.mxu0 0.0
        %1384 = vmatpush1.msra.mxu0 0.0
        %1385 = vmatprep.subr.mxu0 0.0
        %1386 = vmatpush1.msra.mxu0 0.0
        %1387 = vmatprep.subr.mxu0 0.0
        %1388 = vmatpush1.msra.mxu0 0.0
        %1389 = vmatprep.subr.mxu0 0.0
        %1390 = vmatpush1.msra.mxu0 0.0
        %1391 = vmatprep.subr.mxu0 0.0
        %1392 = vmatpush1.msra.mxu0 0.0
        %1393 = vmatprep.subr.mxu0 0.0
        %1394 = vmatpush1.msra.mxu0 0.0
        %1395 = vmatprep.subr.mxu0 0.0
        %1396 = vmatpush1.msra.mxu0 0.0
        %1397 = vmatprep.subr.mxu0 0.0
        %1398 = vmatpush1.msra.mxu0 0.0
        %1399 = vmatprep.subr.mxu0 0.0
        %1400 = vmatpush1.msra.mxu0 0.0
        %1401 = vmatprep.subr.mxu0 0.0
        %1402 = vmatpush1.msra.mxu0 0.0
        %1403 = vmatprep.subr.mxu0 0.0
        %1404 = vmatpush1.msra.mxu0 0.0
        %1405 = vmatprep.subr.mxu0 0.0
        %1406 = vmatpush1.msra.mxu0 0.0
        %1407 = vmatprep.subr.mxu0 0.0
        %1408 = vmatpush1.msra.mxu0 0.0
        %1409 = vmatprep.subr.mxu0 0.0
        %1410 = vmatpush1.msra.mxu0 0.0
        %1411 = vmatprep.subr.mxu0 0.0
        %1412 = vmatpush1.msra.mxu0 0.0
        %1413 = vmatprep.subr.mxu0 0.0
        %1414 = vmatpush1.msra.mxu0 0.0
        %1415 = vmatprep.subr.mxu0 0.0
        %1416 = vmatpush1.msra.mxu0 0.0
        %1417 = vmatprep.subr.mxu0 0.0
        %1418 = vmatpush1.msra.mxu0 0.0
        %1419 = vmatprep.mubr.f32.mxu0 0.0
        %1420 = vmatmul.mubr.f32.gmra.mrb[0].mxu0 %v1347
        %v1421 = vpop.f32.mrb[0].mxu0
        %v1422 = vadd.f32 %v1345, %v1421
        %v1423 = vpop.f32.mrb[0].mxu0
        %1424 = vmatprep.mubr.f32.mxu0 0.0
        %1425 = vmatmul.mubr.f32.gmra.mrb[0].mxu0 %v1350
        %v1426 = vpop.f32.mrb[0].mxu0
        %v1427 = vadd.f32 %v1345, %v1426
        %v1428 = vpop.f32.mrb[0].mxu0
        %1429 = vmatprep.mubr.f32.mxu0 0.0
        %1430 = vmatmul.mubr.f32.gmra.mrb[0].mxu0 %v1353
        %v1431 = vpop.f32.mrb[0].mxu0
        %v1432 = vadd.f32 %v1345, %v1431
        %v1433 = vpop.f32.mrb[0].mxu0
        %1434 = vdwg.mxu0
        %v1435 = vadd.f32 %v681, %v1422
        %v1436 = vadd.f32 %v679, %v1427
        %v1437 = vadd.f32 %v680, %v1432
        %v1438 = vsel %vm686, %v1435, 0.0
        %1439 = vadd.xlane.f32.xlu0 %v1438
        %v1440 = vpop.xlane.xlu0 %1439
        %v1441 = vsel %vm686, %v1436, 0.0
        %1442 = vadd.xlane.f32.xlu0 %v1441
        %v1443 = vpop.xlane.xlu0 %1442
        %v1444 = vsel %vm693, %v1437, 0.0
        %1445 = vadd.xlane.f32.xlu0 %v1444
        %v1446 = vpop.xlane.xlu0 %1445
        %v1447 = vmul.f32 %v1440, %v697
        %v1448 = vmul.f32 %v1443, %v697
        %v1449 = vmul.f32 %v1446, %v697
        %v1450 = vsub.f32 %v1435, %v1447
        %v1451 = vsub.f32 %v1436, %v1448
        %v1452 = vsub.f32 %v1437, %v1449
        %v1453 = vmul.f32 %v1450, %v1450
        %v1454 = vmul.f32 %v1451, %v1451
        %v1455 = vmul.f32 %v1452, %v1452
        %v1456 = vsel %vm686, %v1453, 0.0
        %1457 = vadd.xlane.f32.xlu0 %v1456
        %v1458 = vpop.xlane.xlu0 %1457
        %v1459 = vsel %vm686, %v1454, 0.0
        %1460 = vadd.xlane.f32.xlu0 %v1459
        %v1461 = vpop.xlane.xlu0 %1460
        %v1462 = vsel %vm693, %v1455, 0.0
        %1463 = vadd.xlane.f32.xlu0 %v1462
        %v1464 = vpop.xlane.xlu0 %1463
        %v1465 = vmul.f32 %v1458, %v697
        %v1466 = vmul.f32 %v1461, %v697
        %v1467 = vmul.f32 %v1464, %v697
        %v1468 = vadd.f32 %v1465, 1e-06
        %v1469 = vadd.f32 %v1466, 1e-06
        %v1470 = vadd.f32 %v1467, 1e-06
        %v1471 = vrsqrt.pop %v1468
        %v1472 = vrsqrt.pop %v1469
        %v1473 = vrsqrt.pop %v1470
        %v1474 = vmul.f32 %v1450, %v1471
        %v1475 = vmul.f32 %v1451, %v1472
        %v1476 = vmul.f32 %v1452, %v1473
        %v1477 = vlaneseq
        %v1478 = vshrl.u32 %v1477, 7
        %v1479 = vsub.s32 4, %v1478
        %v1480 = vrot.slane %v685, %v1479
        %v1481 = vmul.f32 %v1474, %v1480
        %v1482 = vmul.f32 %v1475, %v1480
        %v1483 = vmul.f32 %v1476, %v1480
        %v1484 = vlaneseq
        %v1485 = vshrl.u32 %v1484, 7
        %v1486 = vsub.s32 5, %v1485
        %v1487 = vrot.slane %v685, %v1486
        %v1488 = vadd.f32 %v1481, %v1487
        %v1489 = vadd.f32 %v1482, %v1487
        %v1490 = vadd.f32 %v1483, %v1487
        %v1491 = vld [vmem:[%s6] sm:$0xff]
        %v1492 = vld [vmem:[%s6 + $0x8] sm:$0xff]
        %v1493 = vld [vmem:[%s6 + $0x10] sm:$0xff]
        %v1494 = vld [vmem:[%s6 + $0x18] sm:$0xff]
        %v1495 = vlaneseq
        %v1496 = vshrl.u32 %v1495, 7
        %v1497 = vsub.s32 6, %v1496
        %v1498 = vrot.slane %v685, %v1497
        %v1500 = vsel %vm686, %v1488, 0
        %v1503 = vsel %vm686, %v1489, 0
        %v1506 = vsel %vm686, %v1490, 0
        %1508 = vmatprep.subr.mxu0 0.0
        %1509 = vmatpush1.msra.mxu0 %v1491
        %1510 = vmatprep.subr.mxu0 0.0
        %1511 = vmatpush1.msra.mxu0 %v1492
        %1512 = vmatprep.subr.mxu0 0.0
        %1513 = vmatpush1.msra.mxu0 %v1493
        %1514 = vmatprep.subr.mxu0 0.0
        %1515 = vmatpush1.msra.mxu0 %v1494
        %1516 = vmatprep.subr.mxu0 0.0
        %1517 = vmatpush1.msra.mxu0 0.0
        %1518 = vmatprep.subr.mxu0 0.0
        %1519 = vmatpush1.msra.mxu0 0.0
        %1520 = vmatprep.subr.mxu0 0.0
        %1521 = vmatpush1.msra.mxu0 0.0
        %1522 = vmatprep.subr.mxu0 0.0
        %1523 = vmatpush1.msra.mxu0 0.0
        %1524 = vmatprep.subr.mxu0 0.0
        %1525 = vmatpush1.msra.mxu0 0.0
        %1526 = vmatprep.subr.mxu0 0.0
        %1527 = vmatpush1.msra.mxu0 0.0
        %1528 = vmatprep.subr.mxu0 0.0
        %1529 = vmatpush1.msra.mxu0 0.0
        %1530 = vmatprep.subr.mxu0 0.0
        %1531 = vmatpush1.msra.mxu0 0.0
        %1532 = vmatprep.subr.mxu0 0.0
        %1533 = vmatpush1.msra.mxu0 0.0
        %1534 = vmatprep.subr.mxu0 0.0
        %1535 = vmatpush1.msra.mxu0 0.0
        %1536 = vmatprep.subr.mxu0 0.0
        %1537 = vmatpush1.msra.mxu0 0.0
        %1538 = vmatprep.subr.mxu0 0.0
        %1539 = vmatpush1.msra.mxu0 0.0
        %1540 = vmatprep.subr.mxu0 0.0
        %1541 = vmatpush1.msra.mxu0 0.0
        %1542 = vmatprep.subr.mxu0 0.0
        %1543 = vmatpush1.msra.mxu0 0.0
        %1544 = vmatprep.subr.mxu0 0.0
        %1545 = vmatpush1.msra.mxu0 0.0
        %1546 = vmatprep.subr.mxu0 0.0
        %1547 = vmatpush1.msra.mxu0 0.0
        %1548 = vmatprep.subr.mxu0 0.0
        %1549 = vmatpush1.msra.mxu0 0.0
        %1550 = vmatprep.subr.mxu0 0.0
        %1551 = vmatpush1.msra.mxu0 0.0
        %1552 = vmatprep.subr.mxu0 0.0
        %1553 = vmatpush1.msra.mxu0 0.0
        %1554 = vmatprep.subr.mxu0 0.0
        %1555 = vmatpush1.msra.mxu0 0.0
        %1556 = vmatprep.subr.mxu0 0.0
        %1557 = vmatpush1.msra.mxu0 0.0
        %1558 = vmatprep.subr.mxu0 0.0
        %1559 = vmatpush1.msra.mxu0 0.0
        %1560 = vmatprep.subr.mxu0 0.0
        %1561 = vmatpush1.msra.mxu0 0.0
        %1562 = vmatprep.subr.mxu0 0.0
        %1563 = vmatpush1.msra.mxu0 0.0
        %1564 = vmatprep.subr.mxu0 0.0
        %1565 = vmatpush1.msra.mxu0 0.0
        %1566 = vmatprep.subr.mxu0 0.0
        %1567 = vmatpush1.msra.mxu0 0.0
        %1568 = vmatprep.subr.mxu0 0.0
        %1569 = vmatpush1.msra.mxu0 0.0
        %1570 = vmatprep.subr.mxu0 0.0
        %1571 = vmatpush1.msra.mxu0 0.0
        %1572 = vmatprep.mubr.f32.mxu0 0.0
        %1573 = vmatmul.mubr.f32.gmra.mrb[0].mxu0 %v1500
        %v1574 = vpop.f32.mrb[0].mxu0
        %v1575 = vadd.f32 %v1498, %v1574
        %v1576 = vpop.f32.mrb[0].mxu0
        %1577 = vmatprep.mubr.f32.mxu0 0.0
        %1578 = vmatmul.mubr.f32.gmra.mrb[0].mxu0 %v1503
        %v1579 = vpop.f32.mrb[0].mxu0
        %v1580 = vadd.f32 %v1498, %v1579
        %v1581 = vpop.f32.mrb[0].mxu0
        %1582 = vmatprep.mubr.f32.mxu0 0.0
        %1583 = vmatmul.mubr.f32.gmra.mrb[0].mxu0 %v1506
        %v1584 = vpop.f32.mrb[0].mxu0
        %v1585 = vadd.f32 %v1498, %v1584
        %v1586 = vpop.f32.mrb[0].mxu0
        %1587 = vdwg.mxu0
        %v1588 = vmul.f32 %v1575, %v1575
        %v1589 = vmul.f32 %v1580, %v1580
        %v1590 = vmul.f32 %v1585, %v1585
        %v1591 = vmul.f32 %v1575, %v1588
        %v1592 = vmul.f32 %v1580, %v1589
        %v1593 = vmul.f32 %v1585, %v1590
        %v1594 = vmul.f32 %v1591, 0.044715
        %v1595 = vmul.f32 %v1592, 0.044715
        %v1596 = vmul.f32 %v1593, 0.044715
        %v1597 = vadd.f32 %v1575, %v1594
        %v1598 = vadd.f32 %v1580, %v1595
        %v1599 = vadd.f32 %v1585, %v1596
        %v1600 = vmul.f32 %v1597, 0.7978846
        %v1601 = vmul.f32 %v1598, 0.7978846
        %v1602 = vmul.f32 %v1599, 0.7978846
        %v1603 = vtanh.pop %v1600
        %v1604 = vtanh.pop %v1601
        %v1605 = vtanh.pop %v1602
        %v1606 = vadd.f32 %v1603, 1.0
        %v1607 = vadd.f32 %v1604, 1.0
        %v1608 = vadd.f32 %v1605, 1.0
        %v1609 = vmul.f32 %v1606, 0.5
        %v1610 = vmul.f32 %v1607, 0.5
        %v1611 = vmul.f32 %v1608, 0.5
        %v1612 = vmul.f32 %v1575, %v1609
        %v1613 = vmul.f32 %v1580, %v1610
        %v1614 = vmul.f32 %v1585, %v1611
        %v1615 = vld [vmem:[%s7] sm:$0xff]
        %v1616 = vld [vmem:[%s7 + $0x8] sm:$0xff]
        %v1617 = vld [vmem:[%s7 + $0x10] sm:$0xff]
        %v1618 = vld [vmem:[%s7 + $0x18] sm:$0xff]
        %v1619 = vld [vmem:[%s7 + $0x20] sm:$0xff]
        %v1620 = vld [vmem:[%s7 + $0x28] sm:$0xff]
        %v1621 = vld [vmem:[%s7 + $0x30] sm:$0xff]
        %v1622 = vld [vmem:[%s7 + $0x38] sm:$0xff]
        %v1623 = vld [vmem:[%s7 + $0x40] sm:$0xff]
        %v1624 = vld [vmem:[%s7 + $0x48] sm:$0xff]
        %v1625 = vld [vmem:[%s7 + $0x50] sm:$0xff]
        %v1626 = vld [vmem:[%s7 + $0x58] sm:$0xff]
        %v1627 = vld [vmem:[%s7 + $0x60] sm:$0xff]
        %v1628 = vld [vmem:[%s7 + $0x68] sm:$0xff]
        %v1629 = vld [vmem:[%s7 + $0x70] sm:$0xff]
        %v1630 = vld [vmem:[%s7 + $0x78] sm:$0xff]
        %v1631 = vlaneseq
        %v1632 = vshrl.u32 %v1631, 7
        %v1633 = vsub.s32 7, %v1632
        %v1634 = vrot.slane %v685, %v1633
        %1635 = vmatprep.subr.mxu0 0.0
        %1636 = vmatpush1.msra.mxu0 %v1615
        %1637 = vmatprep.subr.mxu0 0.0
        %1638 = vmatpush1.msra.mxu0 %v1616
        %1639 = vmatprep.subr.mxu0 0.0
        %1640 = vmatpush1.msra.mxu0 %v1617
        %1641 = vmatprep.subr.mxu0 0.0
        %1642 = vmatpush1.msra.mxu0 %v1618
        %1643 = vmatprep.subr.mxu0 0.0
        %1644 = vmatpush1.msra.mxu0 %v1619
        %1645 = vmatprep.subr.mxu0 0.0
        %1646 = vmatpush1.msra.mxu0 %v1620
        %1647 = vmatprep.subr.mxu0 0.0
        %1648 = vmatpush1.msra.mxu0 %v1621
        %1649 = vmatprep.subr.mxu0 0.0
        %1650 = vmatpush1.msra.mxu0 %v1622
        %1651 = vmatprep.subr.mxu0 0.0
        %1652 = vmatpush1.msra.mxu0 %v1623
        %1653 = vmatprep.subr.mxu0 0.0
        %1654 = vmatpush1.msra.mxu0 %v1624
        %1655 = vmatprep.subr.mxu0 0.0
        %1656 = vmatpush1.msra.mxu0 %v1625
        %1657 = vmatprep.subr.mxu0 0.0
        %1658 = vmatpush1.msra.mxu0 %v1626
        %1659 = vmatprep.subr.mxu0 0.0
        %1660 = vmatpush1.msra.mxu0 %v1627
        %1661 = vmatprep.subr.mxu0 0.0
        %1662 = vmatpush1.msra.mxu0 %v1628
        %1663 = vmatprep.subr.mxu0 0.0
        %1664 = vmatpush1.msra.mxu0 %v1629
        %1665 = vmatprep.subr.mxu0 0.0
        %1666 = vmatpush1.msra.mxu0 %v1630
        %1667 = vmatprep.subr.mxu0 0.0
        %1668 = vmatpush1.msra.mxu0 0.0
        %1669 = vmatprep.subr.mxu0 0.0
        %1670 = vmatpush1.msra.mxu0 0.0
        %1671 = vmatprep.subr.mxu0 0.0
        %1672 = vmatpush1.msra.mxu0 0.0
        %1673 = vmatprep.subr.mxu0 0.0
        %1674 = vmatpush1.msra.mxu0 0.0
        %1675 = vmatprep.subr.mxu0 0.0
        %1676 = vmatpush1.msra.mxu0 0.0
        %1677 = vmatprep.subr.mxu0 0.0
        %1678 = vmatpush1.msra.mxu0 0.0
        %1679 = vmatprep.subr.mxu0 0.0
        %1680 = vmatpush1.msra.mxu0 0.0
        %1681 = vmatprep.subr.mxu0 0.0
        %1682 = vmatpush1.msra.mxu0 0.0
        %1683 = vmatprep.subr.mxu0 0.0
        %1684 = vmatpush1.msra.mxu0 0.0
        %1685 = vmatprep.subr.mxu0 0.0
        %1686 = vmatpush1.msra.mxu0 0.0
        %1687 = vmatprep.subr.mxu0 0.0
        %1688 = vmatpush1.msra.mxu0 0.0
        %1689 = vmatprep.subr.mxu0 0.0
        %1690 = vmatpush1.msra.mxu0 0.0
        %1691 = vmatprep.subr.mxu0 0.0
        %1692 = vmatpush1.msra.mxu0 0.0
        %1693 = vmatprep.subr.mxu0 0.0
        %1694 = vmatpush1.msra.mxu0 0.0
        %1695 = vmatprep.subr.mxu0 0.0
        %1696 = vmatpush1.msra.mxu0 0.0
        %1697 = vmatprep.subr.mxu0 0.0
        %1698 = vmatpush1.msra.mxu0 0.0
        %1699 = vmatprep.mubr.f32.mxu0 0.0
        %1700 = vmatmul.mubr.f32.gmra.mrb[0].mxu0 %v1612
        %v1701 = vpop.f32.mrb[0].mxu0
        %v1702 = vadd.f32 %v1634, %v1701
        %v1703 = vpop.f32.mrb[0].mxu0
        %1704 = vmatprep.mubr.f32.mxu0 0.0
        %1705 = vmatmul.mubr.f32.gmra.mrb[0].mxu0 %v1613
        %v1706 = vpop.f32.mrb[0].mxu0
        %v1707 = vadd.f32 %v1634, %v1706
        %v1708 = vpop.f32.mrb[0].mxu0
        %1709 = vmatprep.mubr.f32.mxu0 0.0
        %1710 = vmatmul.mubr.f32.gmra.mrb[0].mxu0 %v1614
        %v1711 = vpop.f32.mrb[0].mxu0
        %v1712 = vadd.f32 %v1634, %v1711
        %v1713 = vpop.f32.mrb[0].mxu0
        %1714 = vdwg.mxu0
        %v1715 = vadd.f32 %v1435, %v1702
        %v1716 = vadd.f32 %v1436, %v1707
        %v1717 = vadd.f32 %v1437, %v1712
        %s1718 = scalar_lea.vmem %s8, 8
        %v1719 = vld [vmem:[%s1718] sm:$0xff]
        %v1720 = vsel %vm686, %v1715, 0.0
        %1721 = vadd.xlane.f32.xlu0 %v1720
        %v1722 = vpop.xlane.xlu0 %1721
        %v1723 = vsel %vm686, %v1716, 0.0
        %1724 = vadd.xlane.f32.xlu0 %v1723
        %v1725 = vpop.xlane.xlu0 %1724
        %v1726 = vsel %vm693, %v1717, 0.0
        %1727 = vadd.xlane.f32.xlu0 %v1726
        %v1728 = vpop.xlane.xlu0 %1727
        %v1729 = vmul.f32 %v1722, %v697
        %v1730 = vmul.f32 %v1725, %v697
        %v1731 = vmul.f32 %v1728, %v697
        %v1732 = vsub.f32 %v1715, %v1729
        %v1733 = vsub.f32 %v1716, %v1730
        %v1734 = vsub.f32 %v1717, %v1731
        %v1735 = vmul.f32 %v1732, %v1732
        %v1736 = vmul.f32 %v1733, %v1733
        %v1737 = vmul.f32 %v1734, %v1734
        %v1738 = vsel %vm686, %v1735, 0.0
        %1739 = vadd.xlane.f32.xlu0 %v1738
        %v1740 = vpop.xlane.xlu0 %1739
        %v1741 = vsel %vm686, %v1736, 0.0
        %1742 = vadd.xlane.f32.xlu0 %v1741
        %v1743 = vpop.xlane.xlu0 %1742
        %v1744 = vsel %vm693, %v1737, 0.0
        %1745 = vadd.xlane.f32.xlu0 %v1744
        %v1746 = vpop.xlane.xlu0 %1745
        %v1747 = vmul.f32 %v1740, %v697
        %v1748 = vmul.f32 %v1743, %v697
        %v1749 = vmul.f32 %v1746, %v697
        %v1750 = vadd.f32 %v1747, 1e-06
        %v1751 = vadd.f32 %v1748, 1e-06
        %v1752 = vadd.f32 %v1749, 1e-06
        %v1753 = vrsqrt.pop %v1750
        %v1754 = vrsqrt.pop %v1751
        %v1755 = vrsqrt.pop %v1752
        %v1756 = vmul.f32 %v1732, %v1753
        %v1757 = vmul.f32 %v1733, %v1754
        %v1758 = vmul.f32 %v1734, %v1755
        %v1759 = vlaneseq
        %v1760 = vshrl.u32 %v1759, 7
        %v1761 = vsub.s32 0, %v1760
        %v1762 = vrot.slane %v1719, %v1761
        %v1763 = vmul.f32 %v1756, %v1762
        %v1764 = vmul.f32 %v1757, %v1762
        %v1765 = vmul.f32 %v1758, %v1762
        %v1766 = vlaneseq
        %v1767 = vshrl.u32 %v1766, 7
        %v1768 = vsub.s32 1, %v1767
        %v1769 = vrot.slane %v1719, %v1768
        %v1770 = vadd.f32 %v1763, %v1769
        %v1771 = vadd.f32 %v1764, %v1769
        %v1772 = vadd.f32 %v1765, %v1769
        %s1773 = scalar_lea.vmem %s4, 32
        %v1774 = vld [vmem:[%s1773] sm:$0xff]
        %v1775 = vld [vmem:[%s1773 + $0x8] sm:$0xff]
        %v1776 = vld [vmem:[%s1773 + $0x10] sm:$0xff]
        %v1777 = vld [vmem:[%s1773 + $0x18] sm:$0xff]
        %v1778 = vlaneseq
        %v1779 = vshrl.u32 %v1778, 7
        %v1780 = vsub.s32 2, %v1779
        %v1781 = vrot.slane %v1719, %v1780
        %v1783 = vsel %vm686, %v1770, 0
        %v1786 = vsel %vm686, %v1771, 0
        %v1789 = vsel %vm686, %v1772, 0
        %1791 = vmatprep.subr.mxu0 0.0
        %1792 = vmatpush1.msra.mxu0 %v1774
        %1793 = vmatprep.subr.mxu0 0.0
        %1794 = vmatpush1.msra.mxu0 %v1775
        %1795 = vmatprep.subr.mxu0 0.0
        %1796 = vmatpush1.msra.mxu0 %v1776
        %1797 = vmatprep.subr.mxu0 0.0
        %1798 = vmatpush1.msra.mxu0 %v1777
        %1799 = vmatprep.subr.mxu0 0.0
        %1800 = vmatpush1.msra.mxu0 0.0
        %1801 = vmatprep.subr.mxu0 0.0
        %1802 = vmatpush1.msra.mxu0 0.0
        %1803 = vmatprep.subr.mxu0 0.0
        %1804 = vmatpush1.msra.mxu0 0.0
        %1805 = vmatprep.subr.mxu0 0.0
        %1806 = vmatpush1.msra.mxu0 0.0
        %1807 = vmatprep.subr.mxu0 0.0
        %1808 = vmatpush1.msra.mxu0 0.0
        %1809 = vmatprep.subr.mxu0 0.0
        %1810 = vmatpush1.msra.mxu0 0.0
        %1811 = vmatprep.subr.mxu0 0.0
        %1812 = vmatpush1.msra.mxu0 0.0
        %1813 = vmatprep.subr.mxu0 0.0
        %1814 = vmatpush1.msra.mxu0 0.0
        %1815 = vmatprep.subr.mxu0 0.0
        %1816 = vmatpush1.msra.mxu0 0.0
        %1817 = vmatprep.subr.mxu0 0.0
        %1818 = vmatpush1.msra.mxu0 0.0
        %1819 = vmatprep.subr.mxu0 0.0
        %1820 = vmatpush1.msra.mxu0 0.0
        %1821 = vmatprep.subr.mxu0 0.0
        %1822 = vmatpush1.msra.mxu0 0.0
        %1823 = vmatprep.subr.mxu0 0.0
        %1824 = vmatpush1.msra.mxu0 0.0
        %1825 = vmatprep.subr.mxu0 0.0
        %1826 = vmatpush1.msra.mxu0 0.0
        %1827 = vmatprep.subr.mxu0 0.0
        %1828 = vmatpush1.msra.mxu0 0.0
        %1829 = vmatprep.subr.mxu0 0.0
        %1830 = vmatpush1.msra.mxu0 0.0
        %1831 = vmatprep.subr.mxu0 0.0
        %1832 = vmatpush1.msra.mxu0 0.0
        %1833 = vmatprep.subr.mxu0 0.0
        %1834 = vmatpush1.msra.mxu0 0.0
        %1835 = vmatprep.subr.mxu0 0.0
        %1836 = vmatpush1.msra.mxu0 0.0
        %1837 = vmatprep.subr.mxu0 0.0
        %1838 = vmatpush1.msra.mxu0 0.0
        %1839 = vmatprep.subr.mxu0 0.0
        %1840 = vmatpush1.msra.mxu0 0.0
        %1841 = vmatprep.subr.mxu0 0.0
        %1842 = vmatpush1.msra.mxu0 0.0
        %1843 = vmatprep.subr.mxu0 0.0
        %1844 = vmatpush1.msra.mxu0 0.0
        %1845 = vmatprep.subr.mxu0 0.0
        %1846 = vmatpush1.msra.mxu0 0.0
        %1847 = vmatprep.subr.mxu0 0.0
        %1848 = vmatpush1.msra.mxu0 0.0
        %1849 = vmatprep.subr.mxu0 0.0
        %1850 = vmatpush1.msra.mxu0 0.0
        %1851 = vmatprep.subr.mxu0 0.0
        %1852 = vmatpush1.msra.mxu0 0.0
        %1853 = vmatprep.subr.mxu0 0.0
        %1854 = vmatpush1.msra.mxu0 0.0
        %1855 = vmatprep.mubr.f32.mxu0 0.0
        %1856 = vmatmul.mubr.f32.gmra.mrb[0].mxu0 %v1783
        %v1857 = vpop.f32.mrb[0].mxu0
        %v1858 = vadd.f32 %v1781, %v1857
        %v1859 = vpop.f32.mrb[0].mxu0
        %1860 = vmatprep.mubr.f32.mxu0 0.0
        %1861 = vmatmul.mubr.f32.gmra.mrb[0].mxu0 %v1786
        %v1862 = vpop.f32.mrb[0].mxu0
        %v1863 = vadd.f32 %v1781, %v1862
        %v1864 = vpop.f32.mrb[0].mxu0
        %1865 = vmatprep.mubr.f32.mxu0 0.0
        %1866 = vmatmul.mubr.f32.gmra.mrb[0].mxu0 %v1789
        %v1867 = vpop.f32.mrb[0].mxu0
        %v1868 = vadd.f32 %v1781, %v1867
        %v1869 = vpop.f32.mrb[0].mxu0
        %1870 = vdwg.mxu0
        %1874 = vrot.lane.b32.xlu0 %v1858, 96
        %v1875 = vpop.permute.xlu0 %1874
        %1876 = vrot.lane.b32.xlu0 %v1863, 96
        %v1877 = vpop.permute.xlu0 %1876
        %1878 = vrot.lane.b32.xlu0 %v1868, 96
        %v1879 = vpop.permute.xlu0 %1878
        %v1880 = vsel %vm848, %v1858, 0
        %v1882 = vsel %vm848, %v1863, 0
        %v1884 = vsel %vm848, %v1868, 0
        %v1886 = vsel %vm848, %v1875, 0
        %v1888 = vsel %vm848, %v1877, 0
        %v1890 = vsel %vm848, %v1879, 0
        %1892 = vmatprep.subr.mxu0 0.0
        %1893 = vmatpush1.xpose.msra.mxu0 %v1886
        %1894 = vmatprep.subr.mxu0 0.0
        %1895 = vmatpush1.xpose.msra.mxu0 %v1888
        %1896 = vmatprep.subr.mxu0 0.0
        %1897 = vmatpush1.xpose.msra.mxu0 %v1890
        %1898 = vmatprep.subr.mxu0 0.0
        %1899 = vmatpush1.xpose.msra.mxu0 0.0
        %1900 = vmatprep.subr.mxu0 0.0
        %1901 = vmatpush1.xpose.msra.mxu0 0.0
        %1902 = vmatprep.subr.mxu0 0.0
        %1903 = vmatpush1.xpose.msra.mxu0 0.0
        %1904 = vmatprep.subr.mxu0 0.0
        %1905 = vmatpush1.xpose.msra.mxu0 0.0
        %1906 = vmatprep.subr.mxu0 0.0
        %1907 = vmatpush1.xpose.msra.mxu0 0.0
        %1908 = vmatprep.subr.mxu0 0.0
        %1909 = vmatpush1.xpose.msra.mxu0 0.0
        %1910 = vmatprep.subr.mxu0 0.0
        %1911 = vmatpush1.xpose.msra.mxu0 0.0
        %1912 = vmatprep.subr.mxu0 0.0
        %1913 = vmatpush1.xpose.msra.mxu0 0.0
        %1914 = vmatprep.subr.mxu0 0.0
        %1915 = vmatpush1.xpose.msra.mxu0 0.0
        %1916 = vmatprep.subr.mxu0 0.0
        %1917 = vmatpush1.xpose.msra.mxu0 0.0
        %1918 = vmatprep.subr.mxu0 0.0
        %1919 = vmatpush1.xpose.msra.mxu0 0.0
        %1920 = vmatprep.subr.mxu0 0.0
        %1921 = vmatpush1.xpose.msra.mxu0 0.0
        %1922 = vmatprep.subr.mxu0 0.0
        %1923 = vmatpush1.xpose.msra.mxu0 0.0
        %1924 = vmatprep.subr.mxu0 0.0
        %1925 = vmatpush1.xpose.msra.mxu0 0.0
        %1926 = vmatprep.subr.mxu0 0.0
        %1927 = vmatpush1.xpose.msra.mxu0 0.0
        %1928 = vmatprep.subr.mxu0 0.0
        %1929 = vmatpush1.xpose.msra.mxu0 0.0
        %1930 = vmatprep.subr.mxu0 0.0
        %1931 = vmatpush1.xpose.msra.mxu0 0.0
        %1932 = vmatprep.subr.mxu0 0.0
        %1933 = vmatpush1.xpose.msra.mxu0 0.0
        %1934 = vmatprep.subr.mxu0 0.0
        %1935 = vmatpush1.xpose.msra.mxu0 0.0
        %1936 = vmatprep.subr.mxu0 0.0
        %1937 = vmatpush1.xpose.msra.mxu0 0.0
        %1938 = vmatprep.subr.mxu0 0.0
        %1939 = vmatpush1.xpose.msra.mxu0 0.0
        %1940 = vmatprep.subr.mxu0 0.0
        %1941 = vmatpush1.xpose.msra.mxu0 0.0
        %1942 = vmatprep.subr.mxu0 0.0
        %1943 = vmatpush1.xpose.msra.mxu0 0.0
        %1944 = vmatprep.subr.mxu0 0.0
        %1945 = vmatpush1.xpose.msra.mxu0 0.0
        %1946 = vmatprep.subr.mxu0 0.0
        %1947 = vmatpush1.xpose.msra.mxu0 0.0
        %1948 = vmatprep.subr.mxu0 0.0
        %1949 = vmatpush1.xpose.msra.mxu0 0.0
        %1950 = vmatprep.subr.mxu0 0.0
        %1951 = vmatpush1.xpose.msra.mxu0 0.0
        %1952 = vmatprep.subr.mxu0 0.0
        %1953 = vmatpush1.xpose.msra.mxu0 0.0
        %1954 = vmatprep.subr.mxu0 0.0
        %1955 = vmatpush1.xpose.msra.mxu0 0.0
        %1956 = vmatprep.mubr.f32.mxu0 0.0
        %1957 = vmatmul.mubr.f32.gmra.mrb[0].mxu0 %v1880
        %v1958 = vpop.f32.mrb[0].mxu0
        %v1959 = vadd.f32 0.0, %v1958
        %v1960 = vpop.f32.mrb[0].mxu0
        %1961 = vmatprep.mubr.f32.mxu0 0.0
        %1962 = vmatmul.mubr.f32.gmra.mrb[0].mxu0 %v1882
        %v1963 = vpop.f32.mrb[0].mxu0
        %v1964 = vadd.f32 0.0, %v1963
        %v1965 = vpop.f32.mrb[0].mxu0
        %1966 = vmatprep.mubr.f32.mxu0 0.0
        %1967 = vmatmul.mubr.f32.gmra.mrb[0].mxu0 %v1884
        %v1968 = vpop.f32.mrb[0].mxu0
        %v1969 = vadd.f32 0.0, %v1968
        %v1970 = vpop.f32.mrb[0].mxu0
        %1971 = vdwg.mxu0
        %v1972 = vmul.f32 %v1959, 0.25
        %v1973 = vmul.f32 %v1964, 0.25
        %v1974 = vmul.f32 %v1969, 0.25
        %v1975 = vadd.f32 %v1972, %v682
        %v1976 = vadd.f32 %v1973, %v683
        %v1977 = vadd.f32 %v1974, %v684
        %v1978 = vsel %vm947, %v1975, -inf
        %1979 = vmax.xlane.f32.xlu0 %v1978
        %v1980 = vpop.xlane.xlu0 %1979
        %v1981 = vsel %vm947, %v1976, -inf
        %1982 = vmax.xlane.f32.xlu0 %v1981
        %v1983 = vpop.xlane.xlu0 %1982
        %v1984 = vsel %vm954, %v1977, -inf
        %1985 = vmax.xlane.f32.xlu0 %v1984
        %v1986 = vpop.xlane.xlu0 %1985
        %v1987 = vsub.f32 %v1975, %v1980
        %v1988 = vsub.f32 %v1976, %v1983
        %v1989 = vsub.f32 %v1977, %v1986
        %v1990 = vmul.f32 %v1987, 1.442695
        %v1991 = vpow.pop %v1990
        %v1992 = vmul.f32 %v1988, 1.442695
        %v1993 = vpow.pop %v1992
        %v1994 = vmul.f32 %v1989, 1.442695
        %v1995 = vpow.pop %v1994
        %v1996 = vsel %vm947, %v1991, 0.0
        %1997 = vadd.xlane.f32.xlu0 %v1996
        %v1998 = vpop.xlane.xlu0 %1997
        %v1999 = vsel %vm947, %v1993, 0.0
        %2000 = vadd.xlane.f32.xlu0 %v1999
        %v2001 = vpop.xlane.xlu0 %2000
        %v2002 = vsel %vm954, %v1995, 0.0
        %2003 = vadd.xlane.f32.xlu0 %v2002
        %v2004 = vpop.xlane.xlu0 %2003
        %v2005 = vrcp.pop %v1998
        %v2006 = vrcp.pop %v2001
        %v2007 = vrcp.pop %v2004
        %v2008 = vmul.f32 %v1991, %v2005
        %v2009 = vmul.f32 %v1993, %v2006
        %v2010 = vmul.f32 %v1995, %v2007
        %2011 = vrot.lane.b32.xlu0 %v1858, 64
        %v2012 = vpop.permute.xlu0 %2011
        %2013 = vrot.lane.b32.xlu0 %v1863, 64
        %v2014 = vpop.permute.xlu0 %2013
        %2015 = vrot.lane.b32.xlu0 %v1868, 64
        %v2016 = vpop.permute.xlu0 %2015
        %v2020 = vsel %vm947, %v2008, 0
        %v2023 = vsel %vm947, %v2009, 0
        %v2026 = vsel %vm947, %v2010, 0
        %v2028 = vsel %vm671, %v2016, 0
        %2030 = vmatprep.subr.mxu0 0.0
        %2031 = vmatpush1.msra.mxu0 %v2012
        %2032 = vmatprep.subr.mxu0 0.0
        %2033 = vmatpush1.msra.mxu0 %v2014
        %2034 = vmatprep.subr.mxu0 0.0
        %2035 = vmatpush1.msra.mxu0 %v2028
        %2036 = vmatprep.subr.mxu0 0.0
        %2037 = vmatpush1.msra.mxu0 0.0
        %2038 = vmatprep.subr.mxu0 0.0
        %2039 = vmatpush1.msra.mxu0 0.0
        %2040 = vmatprep.subr.mxu0 0.0
        %2041 = vmatpush1.msra.mxu0 0.0
        %2042 = vmatprep.subr.mxu0 0.0
        %2043 = vmatpush1.msra.mxu0 0.0
        %2044 = vmatprep.subr.mxu0 0.0
        %2045 = vmatpush1.msra.mxu0 0.0
        %2046 = vmatprep.subr.mxu0 0.0
        %2047 = vmatpush1.msra.mxu0 0.0
        %2048 = vmatprep.subr.mxu0 0.0
        %2049 = vmatpush1.msra.mxu0 0.0
        %2050 = vmatprep.subr.mxu0 0.0
        %2051 = vmatpush1.msra.mxu0 0.0
        %2052 = vmatprep.subr.mxu0 0.0
        %2053 = vmatpush1.msra.mxu0 0.0
        %2054 = vmatprep.subr.mxu0 0.0
        %2055 = vmatpush1.msra.mxu0 0.0
        %2056 = vmatprep.subr.mxu0 0.0
        %2057 = vmatpush1.msra.mxu0 0.0
        %2058 = vmatprep.subr.mxu0 0.0
        %2059 = vmatpush1.msra.mxu0 0.0
        %2060 = vmatprep.subr.mxu0 0.0
        %2061 = vmatpush1.msra.mxu0 0.0
        %2062 = vmatprep.subr.mxu0 0.0
        %2063 = vmatpush1.msra.mxu0 0.0
        %2064 = vmatprep.subr.mxu0 0.0
        %2065 = vmatpush1.msra.mxu0 0.0
        %2066 = vmatprep.subr.mxu0 0.0
        %2067 = vmatpush1.msra.mxu0 0.0
        %2068 = vmatprep.subr.mxu0 0.0
        %2069 = vmatpush1.msra.mxu0 0.0
        %2070 = vmatprep.subr.mxu0 0.0
        %2071 = vmatpush1.msra.mxu0 0.0
        %2072 = vmatprep.subr.mxu0 0.0
        %2073 = vmatpush1.msra.mxu0 0.0
        %2074 = vmatprep.subr.mxu0 0.0
        %2075 = vmatpush1.msra.mxu0 0.0
        %2076 = vmatprep.subr.mxu0 0.0
        %2077 = vmatpush1.msra.mxu0 0.0
        %2078 = vmatprep.subr.mxu0 0.0
        %2079 = vmatpush1.msra.mxu0 0.0
        %2080 = vmatprep.subr.mxu0 0.0
        %2081 = vmatpush1.msra.mxu0 0.0
        %2082 = vmatprep.subr.mxu0 0.0
        %2083 = vmatpush1.msra.mxu0 0.0
        %2084 = vmatprep.subr.mxu0 0.0
        %2085 = vmatpush1.msra.mxu0 0.0
        %2086 = vmatprep.subr.mxu0 0.0
        %2087 = vmatpush1.msra.mxu0 0.0
        %2088 = vmatprep.subr.mxu0 0.0
        %2089 = vmatpush1.msra.mxu0 0.0
        %2090 = vmatprep.subr.mxu0 0.0
        %2091 = vmatpush1.msra.mxu0 0.0
        %2092 = vmatprep.subr.mxu0 0.0
        %2093 = vmatpush1.msra.mxu0 0.0
        %2094 = vmatprep.mubr.f32.mxu0 0.0
        %2095 = vmatmul.mubr.f32.gmra.mrb[0].mxu0 %v2020
        %v2096 = vpop.f32.mrb[0].mxu0
        %v2097 = vadd.f32 0.0, %v2096
        %v2098 = vpop.f32.mrb[0].mxu0
        %2099 = vmatprep.mubr.f32.mxu0 0.0
        %2100 = vmatmul.mubr.f32.gmra.mrb[0].mxu0 %v2023
        %v2101 = vpop.f32.mrb[0].mxu0
        %v2102 = vadd.f32 0.0, %v2101
        %v2103 = vpop.f32.mrb[0].mxu0
        %2104 = vmatprep.mubr.f32.mxu0 0.0
        %2105 = vmatmul.mubr.f32.gmra.mrb[0].mxu0 %v2026
        %v2106 = vpop.f32.mrb[0].mxu0
        %v2107 = vadd.f32 0.0, %v2106
        %v2108 = vpop.f32.mrb[0].mxu0
        %2109 = vdwg.mxu0
        %2110 = vrot.lane.b32.xlu0 %v1858, 112
        %v2111 = vpop.permute.xlu0 %2110
        %2112 = vrot.lane.b32.xlu0 %v1863, 112
        %v2113 = vpop.permute.xlu0 %2112
        %2114 = vrot.lane.b32.xlu0 %v1868, 112
        %v2115 = vpop.permute.xlu0 %2114
        %2116 = vrot.lane.b32.xlu0 %v1858, 80
        %v2117 = vpop.permute.xlu0 %2116
        %2118 = vrot.lane.b32.xlu0 %v1863, 80
        %v2119 = vpop.permute.xlu0 %2118
        %2120 = vrot.lane.b32.xlu0 %v1868, 80
        %v2121 = vpop.permute.xlu0 %2120
        %v2122 = vsel %vm848, %v2111, 0
        %v2124 = vsel %vm848, %v2113, 0
        %v2126 = vsel %vm848, %v2115, 0
        %v2128 = vsel %vm848, %v2117, 0
        %v2130 = vsel %vm848, %v2119, 0
        %v2132 = vsel %vm848, %v2121, 0
        %2134 = vmatprep.subr.mxu0 0.0
        %2135 = vmatpush1.xpose.msra.mxu0 %v2128
        %2136 = vmatprep.subr.mxu0 0.0
        %2137 = vmatpush1.xpose.msra.mxu0 %v2130
        %2138 = vmatprep.subr.mxu0 0.0
        %2139 = vmatpush1.xpose.msra.mxu0 %v2132
        %2140 = vmatprep.subr.mxu0 0.0
        %2141 = vmatpush1.xpose.msra.mxu0 0.0
        %2142 = vmatprep.subr.mxu0 0.0
        %2143 = vmatpush1.xpose.msra.mxu0 0.0
        %2144 = vmatprep.subr.mxu0 0.0
        %2145 = vmatpush1.xpose.msra.mxu0 0.0
        %2146 = vmatprep.subr.mxu0 0.0
        %2147 = vmatpush1.xpose.msra.mxu0 0.0
        %2148 = vmatprep.subr.mxu0 0.0
        %2149 = vmatpush1.xpose.msra.mxu0 0.0
        %2150 = vmatprep.subr.mxu0 0.0
        %2151 = vmatpush1.xpose.msra.mxu0 0.0
        %2152 = vmatprep.subr.mxu0 0.0
        %2153 = vmatpush1.xpose.msra.mxu0 0.0
        %2154 = vmatprep.subr.mxu0 0.0
        %2155 = vmatpush1.xpose.msra.mxu0 0.0
        %2156 = vmatprep.subr.mxu0 0.0
        %2157 = vmatpush1.xpose.msra.mxu0 0.0
        %2158 = vmatprep.subr.mxu0 0.0
        %2159 = vmatpush1.xpose.msra.mxu0 0.0
        %2160 = vmatprep.subr.mxu0 0.0
        %2161 = vmatpush1.xpose.msra.mxu0 0.0
        %2162 = vmatprep.subr.mxu0 0.0
        %2163 = vmatpush1.xpose.msra.mxu0 0.0
        %2164 = vmatprep.subr.mxu0 0.0
        %2165 = vmatpush1.xpose.msra.mxu0 0.0
        %2166 = vmatprep.subr.mxu0 0.0
        %2167 = vmatpush1.xpose.msra.mxu0 0.0
        %2168 = vmatprep.subr.mxu0 0.0
        %2169 = vmatpush1.xpose.msra.mxu0 0.0
        %2170 = vmatprep.subr.mxu0 0.0
        %2171 = vmatpush1.xpose.msra.mxu0 0.0
        %2172 = vmatprep.subr.mxu0 0.0
        %2173 = vmatpush1.xpose.msra.mxu0 0.0
        %2174 = vmatprep.subr.mxu0 0.0
        %2175 = vmatpush1.xpose.msra.mxu0 0.0
        %2176 = vmatprep.subr.mxu0 0.0
        %2177 = vmatpush1.xpose.msra.mxu0 0.0
        %2178 = vmatprep.subr.mxu0 0.0
        %2179 = vmatpush1.xpose.msra.mxu0 0.0
        %2180 = vmatprep.subr.mxu0 0.0
        %2181 = vmatpush1.xpose.msra.mxu0 0.0
        %2182 = vmatprep.subr.mxu0 0.0
        %2183 = vmatpush1.xpose.msra.mxu0 0.0
        %2184 = vmatprep.subr.mxu0 0.0
        %2185 = vmatpush1.xpose.msra.mxu0 0.0
        %2186 = vmatprep.subr.mxu0 0.0
        %2187 = vmatpush1.xpose.msra.mxu0 0.0
        %2188 = vmatprep.subr.mxu0 0.0
        %2189 = vmatpush1.xpose.msra.mxu0 0.0
        %2190 = vmatprep.subr.mxu0 0.0
        %2191 = vmatpush1.xpose.msra.mxu0 0.0
        %2192 = vmatprep.subr.mxu0 0.0
        %2193 = vmatpush1.xpose.msra.mxu0 0.0
        %2194 = vmatprep.subr.mxu0 0.0
        %2195 = vmatpush1.xpose.msra.mxu0 0.0
        %2196 = vmatprep.subr.mxu0 0.0
        %2197 = vmatpush1.xpose.msra.mxu0 0.0
        %2198 = vmatprep.mubr.f32.mxu0 0.0
        %2199 = vmatmul.mubr.f32.gmra.mrb[0].mxu0 %v2122
        %v2200 = vpop.f32.mrb[0].mxu0
        %v2201 = vadd.f32 0.0, %v2200
        %v2202 = vpop.f32.mrb[0].mxu0
        %2203 = vmatprep.mubr.f32.mxu0 0.0
        %2204 = vmatmul.mubr.f32.gmra.mrb[0].mxu0 %v2124
        %v2205 = vpop.f32.mrb[0].mxu0
        %v2206 = vadd.f32 0.0, %v2205
        %v2207 = vpop.f32.mrb[0].mxu0
        %2208 = vmatprep.mubr.f32.mxu0 0.0
        %2209 = vmatmul.mubr.f32.gmra.mrb[0].mxu0 %v2126
        %v2210 = vpop.f32.mrb[0].mxu0
        %v2211 = vadd.f32 0.0, %v2210
        %v2212 = vpop.f32.mrb[0].mxu0
        %2213 = vdwg.mxu0
        %v2214 = vmul.f32 %v2201, 0.25
        %v2215 = vmul.f32 %v2206, 0.25
        %v2216 = vmul.f32 %v2211, 0.25
        %v2217 = vadd.f32 %v2214, %v682
        %v2218 = vadd.f32 %v2215, %v683
        %v2219 = vadd.f32 %v2216, %v684
        %v2220 = vsel %vm947, %v2217, -inf
        %2221 = vmax.xlane.f32.xlu0 %v2220
        %v2222 = vpop.xlane.xlu0 %2221
        %v2223 = vsel %vm947, %v2218, -inf
        %2224 = vmax.xlane.f32.xlu0 %v2223
        %v2225 = vpop.xlane.xlu0 %2224
        %v2226 = vsel %vm954, %v2219, -inf
        %2227 = vmax.xlane.f32.xlu0 %v2226
        %v2228 = vpop.xlane.xlu0 %2227
        %v2229 = vsub.f32 %v2217, %v2222
        %v2230 = vsub.f32 %v2218, %v2225
        %v2231 = vsub.f32 %v2219, %v2228
        %v2232 = vmul.f32 %v2229, 1.442695
        %v2233 = vpow.pop %v2232
        %v2234 = vmul.f32 %v2230, 1.442695
        %v2235 = vpow.pop %v2234
        %v2236 = vmul.f32 %v2231, 1.442695
        %v2237 = vpow.pop %v2236
        %v2238 = vsel %vm947, %v2233, 0.0
        %2239 = vadd.xlane.f32.xlu0 %v2238
        %v2240 = vpop.xlane.xlu0 %2239
        %v2241 = vsel %vm947, %v2235, 0.0
        %2242 = vadd.xlane.f32.xlu0 %v2241
        %v2243 = vpop.xlane.xlu0 %2242
        %v2244 = vsel %vm954, %v2237, 0.0
        %2245 = vadd.xlane.f32.xlu0 %v2244
        %v2246 = vpop.xlane.xlu0 %2245
        %v2247 = vrcp.pop %v2240
        %v2248 = vrcp.pop %v2243
        %v2249 = vrcp.pop %v2246
        %v2250 = vmul.f32 %v2233, %v2247
        %v2251 = vmul.f32 %v2235, %v2248
        %v2252 = vmul.f32 %v2237, %v2249
        %2253 = vrot.lane.b32.xlu0 %v1858, 48
        %v2254 = vpop.permute.xlu0 %2253
        %2255 = vrot.lane.b32.xlu0 %v1863, 48
        %v2256 = vpop.permute.xlu0 %2255
        %2257 = vrot.lane.b32.xlu0 %v1868, 48
        %v2258 = vpop.permute.xlu0 %2257
        %v2262 = vsel %vm947, %v2250, 0
        %v2265 = vsel %vm947, %v2251, 0
        %v2268 = vsel %vm947, %v2252, 0
        %v2270 = vsel %vm671, %v2258, 0
        %2272 = vmatprep.subr.mxu0 0.0
        %2273 = vmatpush1.msra.mxu0 %v2254
        %2274 = vmatprep.subr.mxu0 0.0
        %2275 = vmatpush1.msra.mxu0 %v2256
        %2276 = vmatprep.subr.mxu0 0.0
        %2277 = vmatpush1.msra.mxu0 %v2270
        %2278 = vmatprep.subr.mxu0 0.0
        %2279 = vmatpush1.msra.mxu0 0.0
        %2280 = vmatprep.subr.mxu0 0.0
        %2281 = vmatpush1.msra.mxu0 0.0
        %2282 = vmatprep.subr.mxu0 0.0
        %2283 = vmatpush1.msra.mxu0 0.0
        %2284 = vmatprep.subr.mxu0 0.0
        %2285 = vmatpush1.msra.mxu0 0.0
        %2286 = vmatprep.subr.mxu0 0.0
        %2287 = vmatpush1.msra.mxu0 0.0
        %2288 = vmatprep.subr.mxu0 0.0
        %2289 = vmatpush1.msra.mxu0 0.0
        %2290 = vmatprep.subr.mxu0 0.0
        %2291 = vmatpush1.msra.mxu0 0.0
        %2292 = vmatprep.subr.mxu0 0.0
        %2293 = vmatpush1.msra.mxu0 0.0
        %2294 = vmatprep.subr.mxu0 0.0
        %2295 = vmatpush1.msra.mxu0 0.0
        %2296 = vmatprep.subr.mxu0 0.0
        %2297 = vmatpush1.msra.mxu0 0.0
        %2298 = vmatprep.subr.mxu0 0.0
        %2299 = vmatpush1.msra.mxu0 0.0
        %2300 = vmatprep.subr.mxu0 0.0
        %2301 = vmatpush1.msra.mxu0 0.0
        %2302 = vmatprep.subr.mxu0 0.0
        %2303 = vmatpush1.msra.mxu0 0.0
        %2304 = vmatprep.subr.mxu0 0.0
        %2305 = vmatpush1.msra.mxu0 0.0
        %2306 = vmatprep.subr.mxu0 0.0
        %2307 = vmatpush1.msra.mxu0 0.0
        %2308 = vmatprep.subr.mxu0 0.0
        %2309 = vmatpush1.msra.mxu0 0.0
        %2310 = vmatprep.subr.mxu0 0.0
        %2311 = vmatpush1.msra.mxu0 0.0
        %2312 = vmatprep.subr.mxu0 0.0
        %2313 = vmatpush1.msra.mxu0 0.0
        %2314 = vmatprep.subr.mxu0 0.0
        %2315 = vmatpush1.msra.mxu0 0.0
        %2316 = vmatprep.subr.mxu0 0.0
        %2317 = vmatpush1.msra.mxu0 0.0
        %2318 = vmatprep.subr.mxu0 0.0
        %2319 = vmatpush1.msra.mxu0 0.0
        %2320 = vmatprep.subr.mxu0 0.0
        %2321 = vmatpush1.msra.mxu0 0.0
        %2322 = vmatprep.subr.mxu0 0.0
        %2323 = vmatpush1.msra.mxu0 0.0
        %2324 = vmatprep.subr.mxu0 0.0
        %2325 = vmatpush1.msra.mxu0 0.0
        %2326 = vmatprep.subr.mxu0 0.0
        %2327 = vmatpush1.msra.mxu0 0.0
        %2328 = vmatprep.subr.mxu0 0.0
        %2329 = vmatpush1.msra.mxu0 0.0
        %2330 = vmatprep.subr.mxu0 0.0
        %2331 = vmatpush1.msra.mxu0 0.0
        %2332 = vmatprep.subr.mxu0 0.0
        %2333 = vmatpush1.msra.mxu0 0.0
        %2334 = vmatprep.subr.mxu0 0.0
        %2335 = vmatpush1.msra.mxu0 0.0
        %2336 = vmatprep.mubr.f32.mxu0 0.0
        %2337 = vmatmul.mubr.f32.gmra.mrb[0].mxu0 %v2262
        %v2338 = vpop.f32.mrb[0].mxu0
        %v2339 = vadd.f32 0.0, %v2338
        %v2340 = vpop.f32.mrb[0].mxu0
        %2341 = vmatprep.mubr.f32.mxu0 0.0
        %2342 = vmatmul.mubr.f32.gmra.mrb[0].mxu0 %v2265
        %v2343 = vpop.f32.mrb[0].mxu0
        %v2344 = vadd.f32 0.0, %v2343
        %v2345 = vpop.f32.mrb[0].mxu0
        %2346 = vmatprep.mubr.f32.mxu0 0.0
        %2347 = vmatmul.mubr.f32.gmra.mrb[0].mxu0 %v2268
        %v2348 = vpop.f32.mrb[0].mxu0
        %v2349 = vadd.f32 0.0, %v2348
        %v2350 = vpop.f32.mrb[0].mxu0
        %2351 = vdwg.mxu0
        %2355 = vrot.lane.b32.xlu0 %v2339, 16
        %v2356 = vpop.permute.xlu0 %2355
        %2357 = vrot.lane.b32.xlu0 %v2344, 16
        %v2358 = vpop.permute.xlu0 %2357
        %2359 = vrot.lane.b32.xlu0 %v2349, 16
        %v2360 = vpop.permute.xlu0 %2359
        %v2364 = vsel %vm848, %v2097, %v2356
        %v2365 = vsel %vm848, %v2102, %v2358
        %v2366 = vsel %vm848, %v2107, %v2360
        %s2367 = scalar_lea.vmem %s5, 32
        %v2368 = vld [vmem:[%s2367] sm:$0xff]
        %v2369 = vld [vmem:[%s2367 + $0x8] sm:$0xff]
        %v2370 = vld [vmem:[%s2367 + $0x10] sm:$0xff]
        %v2371 = vld [vmem:[%s2367 + $0x18] sm:$0xff]
        %v2372 = vlaneseq
        %v2373 = vshrl.u32 %v2372, 7
        %v2374 = vsub.s32 3, %v2373
        %v2375 = vrot.slane %v1719, %v2374
        %v2377 = vsel %vm686, %v2364, 0
        %v2380 = vsel %vm686, %v2365, 0
        %v2383 = vsel %vm686, %v2366, 0
        %2385 = vmatprep.subr.mxu0 0.0
        %2386 = vmatpush1.msra.mxu0 %v2368
        %2387 = vmatprep.subr.mxu0 0.0
        %2388 = vmatpush1.msra.mxu0 %v2369
        %2389 = vmatprep.subr.mxu0 0.0
        %2390 = vmatpush1.msra.mxu0 %v2370
        %2391 = vmatprep.subr.mxu0 0.0
        %2392 = vmatpush1.msra.mxu0 %v2371
        %2393 = vmatprep.subr.mxu0 0.0
        %2394 = vmatpush1.msra.mxu0 0.0
        %2395 = vmatprep.subr.mxu0 0.0
        %2396 = vmatpush1.msra.mxu0 0.0
        %2397 = vmatprep.subr.mxu0 0.0
        %2398 = vmatpush1.msra.mxu0 0.0
        %2399 = vmatprep.subr.mxu0 0.0
        %2400 = vmatpush1.msra.mxu0 0.0
        %2401 = vmatprep.subr.mxu0 0.0
        %2402 = vmatpush1.msra.mxu0 0.0
        %2403 = vmatprep.subr.mxu0 0.0
        %2404 = vmatpush1.msra.mxu0 0.0
        %2405 = vmatprep.subr.mxu0 0.0
        %2406 = vmatpush1.msra.mxu0 0.0
        %2407 = vmatprep.subr.mxu0 0.0
        %2408 = vmatpush1.msra.mxu0 0.0
        %2409 = vmatprep.subr.mxu0 0.0
        %2410 = vmatpush1.msra.mxu0 0.0
        %2411 = vmatprep.subr.mxu0 0.0
        %2412 = vmatpush1.msra.mxu0 0.0
        %2413 = vmatprep.subr.mxu0 0.0
        %2414 = vmatpush1.msra.mxu0 0.0
        %2415 = vmatprep.subr.mxu0 0.0
        %2416 = vmatpush1.msra.mxu0 0.0
        %2417 = vmatprep.subr.mxu0 0.0
        %2418 = vmatpush1.msra.mxu0 0.0
        %2419 = vmatprep.subr.mxu0 0.0
        %2420 = vmatpush1.msra.mxu0 0.0
        %2421 = vmatprep.subr.mxu0 0.0
        %2422 = vmatpush1.msra.mxu0 0.0
        %2423 = vmatprep.subr.mxu0 0.0
        %2424 = vmatpush1.msra.mxu0 0.0
        %2425 = vmatprep.subr.mxu0 0.0
        %2426 = vmatpush1.msra.mxu0 0.0
        %2427 = vmatprep.subr.mxu0 0.0
        %2428 = vmatpush1.msra.mxu0 0.0
        %2429 = vmatprep.subr.mxu0 0.0
        %2430 = vmatpush1.msra.mxu0 0.0
        %2431 = vmatprep.subr.mxu0 0.0
        %2432 = vmatpush1.msra.mxu0 0.0
        %2433 = vmatprep.subr.mxu0 0.0
        %2434 = vmatpush1.msra.mxu0 0.0
        %2435 = vmatprep.subr.mxu0 0.0
        %2436 = vmatpush1.msra.mxu0 0.0
        %2437 = vmatprep.subr.mxu0 0.0
        %2438 = vmatpush1.msra.mxu0 0.0
        %2439 = vmatprep.subr.mxu0 0.0
        %2440 = vmatpush1.msra.mxu0 0.0
        %2441 = vmatprep.subr.mxu0 0.0
        %2442 = vmatpush1.msra.mxu0 0.0
        %2443 = vmatprep.subr.mxu0 0.0
        %2444 = vmatpush1.msra.mxu0 0.0
        %2445 = vmatprep.subr.mxu0 0.0
        %2446 = vmatpush1.msra.mxu0 0.0
        %2447 = vmatprep.subr.mxu0 0.0
        %2448 = vmatpush1.msra.mxu0 0.0
        %2449 = vmatprep.mubr.f32.mxu0 0.0
        %2450 = vmatmul.mubr.f32.gmra.mrb[0].mxu0 %v2377
        %v2451 = vpop.f32.mrb[0].mxu0
        %v2452 = vadd.f32 %v2375, %v2451
        %v2453 = vpop.f32.mrb[0].mxu0
        %2454 = vmatprep.mubr.f32.mxu0 0.0
        %2455 = vmatmul.mubr.f32.gmra.mrb[0].mxu0 %v2380
        %v2456 = vpop.f32.mrb[0].mxu0
        %v2457 = vadd.f32 %v2375, %v2456
        %v2458 = vpop.f32.mrb[0].mxu0
        %2459 = vmatprep.mubr.f32.mxu0 0.0
        %2460 = vmatmul.mubr.f32.gmra.mrb[0].mxu0 %v2383
        %v2461 = vpop.f32.mrb[0].mxu0
        %v2462 = vadd.f32 %v2375, %v2461
        %v2463 = vpop.f32.mrb[0].mxu0
        %2464 = vdwg.mxu0
        %v2465 = vadd.f32 %v1715, %v2452
        %v2466 = vadd.f32 %v1716, %v2457
        %v2467 = vadd.f32 %v1717, %v2462
        %v2468 = vsel %vm686, %v2465, 0.0
        %2469 = vadd.xlane.f32.xlu0 %v2468
        %v2470 = vpop.xlane.xlu0 %2469
        %v2471 = vsel %vm686, %v2466, 0.0
        %2472 = vadd.xlane.f32.xlu0 %v2471
        %v2473 = vpop.xlane.xlu0 %2472
        %v2474 = vsel %vm693, %v2467, 0.0
        %2475 = vadd.xlane.f32.xlu0 %v2474
        %v2476 = vpop.xlane.xlu0 %2475
        %v2477 = vmul.f32 %v2470, %v697
        %v2478 = vmul.f32 %v2473, %v697
        %v2479 = vmul.f32 %v2476, %v697
        %v2480 = vsub.f32 %v2465, %v2477
        %v2481 = vsub.f32 %v2466, %v2478
        %v2482 = vsub.f32 %v2467, %v2479
        %v2483 = vmul.f32 %v2480, %v2480
        %v2484 = vmul.f32 %v2481, %v2481
        %v2485 = vmul.f32 %v2482, %v2482
        %v2486 = vsel %vm686, %v2483, 0.0
        %2487 = vadd.xlane.f32.xlu0 %v2486
        %v2488 = vpop.xlane.xlu0 %2487
        %v2489 = vsel %vm686, %v2484, 0.0
        %2490 = vadd.xlane.f32.xlu0 %v2489
        %v2491 = vpop.xlane.xlu0 %2490
        %v2492 = vsel %vm693, %v2485, 0.0
        %2493 = vadd.xlane.f32.xlu0 %v2492
        %v2494 = vpop.xlane.xlu0 %2493
        %v2495 = vmul.f32 %v2488, %v697
        %v2496 = vmul.f32 %v2491, %v697
        %v2497 = vmul.f32 %v2494, %v697
        %v2498 = vadd.f32 %v2495, 1e-06
        %v2499 = vadd.f32 %v2496, 1e-06
        %v2500 = vadd.f32 %v2497, 1e-06
        %v2501 = vrsqrt.pop %v2498
        %v2502 = vrsqrt.pop %v2499
        %v2503 = vrsqrt.pop %v2500
        %v2504 = vmul.f32 %v2480, %v2501
        %v2505 = vmul.f32 %v2481, %v2502
        %v2506 = vmul.f32 %v2482, %v2503
        %v2507 = vlaneseq
        %v2508 = vshrl.u32 %v2507, 7
        %v2509 = vsub.s32 4, %v2508
        %v2510 = vrot.slane %v1719, %v2509
        %v2511 = vmul.f32 %v2504, %v2510
        %v2512 = vmul.f32 %v2505, %v2510
        %v2513 = vmul.f32 %v2506, %v2510
        %v2514 = vlaneseq
        %v2515 = vshrl.u32 %v2514, 7
        %v2516 = vsub.s32 5, %v2515
        %v2517 = vrot.slane %v1719, %v2516
        %v2518 = vadd.f32 %v2511, %v2517
        %v2519 = vadd.f32 %v2512, %v2517
        %v2520 = vadd.f32 %v2513, %v2517
        %s2521 = scalar_lea.vmem %s6, 32
        %v2522 = vld [vmem:[%s2521] sm:$0xff]
        %v2523 = vld [vmem:[%s2521 + $0x8] sm:$0xff]
        %v2524 = vld [vmem:[%s2521 + $0x10] sm:$0xff]
        %v2525 = vld [vmem:[%s2521 + $0x18] sm:$0xff]
        %v2526 = vlaneseq
        %v2527 = vshrl.u32 %v2526, 7
        %v2528 = vsub.s32 6, %v2527
        %v2529 = vrot.slane %v1719, %v2528
        %v2531 = vsel %vm686, %v2518, 0
        %v2534 = vsel %vm686, %v2519, 0
        %v2537 = vsel %vm686, %v2520, 0
        %2539 = vmatprep.subr.mxu0 0.0
        %2540 = vmatpush1.msra.mxu0 %v2522
        %2541 = vmatprep.subr.mxu0 0.0
        %2542 = vmatpush1.msra.mxu0 %v2523
        %2543 = vmatprep.subr.mxu0 0.0
        %2544 = vmatpush1.msra.mxu0 %v2524
        %2545 = vmatprep.subr.mxu0 0.0
        %2546 = vmatpush1.msra.mxu0 %v2525
        %2547 = vmatprep.subr.mxu0 0.0
        %2548 = vmatpush1.msra.mxu0 0.0
        %2549 = vmatprep.subr.mxu0 0.0
        %2550 = vmatpush1.msra.mxu0 0.0
        %2551 = vmatprep.subr.mxu0 0.0
        %2552 = vmatpush1.msra.mxu0 0.0
        %2553 = vmatprep.subr.mxu0 0.0
        %2554 = vmatpush1.msra.mxu0 0.0
        %2555 = vmatprep.subr.mxu0 0.0
        %2556 = vmatpush1.msra.mxu0 0.0
        %2557 = vmatprep.subr.mxu0 0.0
        %2558 = vmatpush1.msra.mxu0 0.0
        %2559 = vmatprep.subr.mxu0 0.0
        %2560 = vmatpush1.msra.mxu0 0.0
        %2561 = vmatprep.subr.mxu0 0.0
        %2562 = vmatpush1.msra.mxu0 0.0
        %2563 = vmatprep.subr.mxu0 0.0
        %2564 = vmatpush1.msra.mxu0 0.0
        %2565 = vmatprep.subr.mxu0 0.0
        %2566 = vmatpush1.msra.mxu0 0.0
        %2567 = vmatprep.subr.mxu0 0.0
        %2568 = vmatpush1.msra.mxu0 0.0
        %2569 = vmatprep.subr.mxu0 0.0
        %2570 = vmatpush1.msra.mxu0 0.0
        %2571 = vmatprep.subr.mxu0 0.0
        %2572 = vmatpush1.msra.mxu0 0.0
        %2573 = vmatprep.subr.mxu0 0.0
        %2574 = vmatpush1.msra.mxu0 0.0
        %2575 = vmatprep.subr.mxu0 0.0
        %2576 = vmatpush1.msra.mxu0 0.0
        %2577 = vmatprep.subr.mxu0 0.0
        %2578 = vmatpush1.msra.mxu0 0.0
        %2579 = vmatprep.subr.mxu0 0.0
        %2580 = vmatpush1.msra.mxu0 0.0
        %2581 = vmatprep.subr.mxu0 0.0
        %2582 = vmatpush1.msra.mxu0 0.0
        %2583 = vmatprep.subr.mxu0 0.0
        %2584 = vmatpush1.msra.mxu0 0.0
        %2585 = vmatprep.subr.mxu0 0.0
        %2586 = vmatpush1.msra.mxu0 0.0
        %2587 = vmatprep.subr.mxu0 0.0
        %2588 = vmatpush1.msra.mxu0 0.0
        %2589 = vmatprep.subr.mxu0 0.0
        %2590 = vmatpush1.msra.mxu0 0.0
        %2591 = vmatprep.subr.mxu0 0.0
        %2592 = vmatpush1.msra.mxu0 0.0
        %2593 = vmatprep.subr.mxu0 0.0
        %2594 = vmatpush1.msra.mxu0 0.0
        %2595 = vmatprep.subr.mxu0 0.0
        %2596 = vmatpush1.msra.mxu0 0.0
        %2597 = vmatprep.subr.mxu0 0.0
        %2598 = vmatpush1.msra.mxu0 0.0
        %2599 = vmatprep.subr.mxu0 0.0
        %2600 = vmatpush1.msra.mxu0 0.0
        %2601 = vmatprep.subr.mxu0 0.0
        %2602 = vmatpush1.msra.mxu0 0.0
        %2603 = vmatprep.mubr.f32.mxu0 0.0
        %2604 = vmatmul.mubr.f32.gmra.mrb[0].mxu0 %v2531
        %v2605 = vpop.f32.mrb[0].mxu0
        %v2606 = vadd.f32 %v2529, %v2605
        %v2607 = vpop.f32.mrb[0].mxu0
        %2608 = vmatprep.mubr.f32.mxu0 0.0
        %2609 = vmatmul.mubr.f32.gmra.mrb[0].mxu0 %v2534
        %v2610 = vpop.f32.mrb[0].mxu0
        %v2611 = vadd.f32 %v2529, %v2610
        %v2612 = vpop.f32.mrb[0].mxu0
        %2613 = vmatprep.mubr.f32.mxu0 0.0
        %2614 = vmatmul.mubr.f32.gmra.mrb[0].mxu0 %v2537
        %v2615 = vpop.f32.mrb[0].mxu0
        %v2616 = vadd.f32 %v2529, %v2615
        %v2617 = vpop.f32.mrb[0].mxu0
        %2618 = vdwg.mxu0
        %v2619 = vmul.f32 %v2606, %v2606
        %v2620 = vmul.f32 %v2611, %v2611
        %v2621 = vmul.f32 %v2616, %v2616
        %v2622 = vmul.f32 %v2606, %v2619
        %v2623 = vmul.f32 %v2611, %v2620
        %v2624 = vmul.f32 %v2616, %v2621
        %v2625 = vmul.f32 %v2622, 0.044715
        %v2626 = vmul.f32 %v2623, 0.044715
        %v2627 = vmul.f32 %v2624, 0.044715
        %v2628 = vadd.f32 %v2606, %v2625
        %v2629 = vadd.f32 %v2611, %v2626
        %v2630 = vadd.f32 %v2616, %v2627
        %v2631 = vmul.f32 %v2628, 0.7978846
        %v2632 = vmul.f32 %v2629, 0.7978846
        %v2633 = vmul.f32 %v2630, 0.7978846
        %v2634 = vtanh.pop %v2631
        %v2635 = vtanh.pop %v2632
        %v2636 = vtanh.pop %v2633
        %v2637 = vadd.f32 %v2634, 1.0
        %v2638 = vadd.f32 %v2635, 1.0
        %v2639 = vadd.f32 %v2636, 1.0
        %v2640 = vmul.f32 %v2637, 0.5
        %v2641 = vmul.f32 %v2638, 0.5
        %v2642 = vmul.f32 %v2639, 0.5
        %v2643 = vmul.f32 %v2606, %v2640
        %v2644 = vmul.f32 %v2611, %v2641
        %v2645 = vmul.f32 %v2616, %v2642
        %s2646 = scalar_lea.vmem %s7, 128
        %v2647 = vld [vmem:[%s2646] sm:$0xff]
        %v2648 = vld [vmem:[%s2646 + $0x8] sm:$0xff]
        %v2649 = vld [vmem:[%s2646 + $0x10] sm:$0xff]
        %v2650 = vld [vmem:[%s2646 + $0x18] sm:$0xff]
        %v2651 = vld [vmem:[%s2646 + $0x20] sm:$0xff]
        %v2652 = vld [vmem:[%s2646 + $0x28] sm:$0xff]
        %v2653 = vld [vmem:[%s2646 + $0x30] sm:$0xff]
        %v2654 = vld [vmem:[%s2646 + $0x38] sm:$0xff]
        %v2655 = vld [vmem:[%s2646 + $0x40] sm:$0xff]
        %v2656 = vld [vmem:[%s2646 + $0x48] sm:$0xff]
        %v2657 = vld [vmem:[%s2646 + $0x50] sm:$0xff]
        %v2658 = vld [vmem:[%s2646 + $0x58] sm:$0xff]
        %v2659 = vld [vmem:[%s2646 + $0x60] sm:$0xff]
        %v2660 = vld [vmem:[%s2646 + $0x68] sm:$0xff]
        %v2661 = vld [vmem:[%s2646 + $0x70] sm:$0xff]
        %v2662 = vld [vmem:[%s2646 + $0x78] sm:$0xff]
        %v2663 = vlaneseq
        %v2664 = vshrl.u32 %v2663, 7
        %v2665 = vsub.s32 7, %v2664
        %v2666 = vrot.slane %v1719, %v2665
        %2667 = vmatprep.subr.mxu0 0.0
        %2668 = vmatpush1.msra.mxu0 %v2647
        %2669 = vmatprep.subr.mxu0 0.0
        %2670 = vmatpush1.msra.mxu0 %v2648
        %2671 = vmatprep.subr.mxu0 0.0
        %2672 = vmatpush1.msra.mxu0 %v2649
        %2673 = vmatprep.subr.mxu0 0.0
        %2674 = vmatpush1.msra.mxu0 %v2650
        %2675 = vmatprep.subr.mxu0 0.0
        %2676 = vmatpush1.msra.mxu0 %v2651
        %2677 = vmatprep.subr.mxu0 0.0
        %2678 = vmatpush1.msra.mxu0 %v2652
        %2679 = vmatprep.subr.mxu0 0.0
        %2680 = vmatpush1.msra.mxu0 %v2653
        %2681 = vmatprep.subr.mxu0 0.0
        %2682 = vmatpush1.msra.mxu0 %v2654
        %2683 = vmatprep.subr.mxu0 0.0
        %2684 = vmatpush1.msra.mxu0 %v2655
        %2685 = vmatprep.subr.mxu0 0.0
        %2686 = vmatpush1.msra.mxu0 %v2656
        %2687 = vmatprep.subr.mxu0 0.0
        %2688 = vmatpush1.msra.mxu0 %v2657
        %2689 = vmatprep.subr.mxu0 0.0
        %2690 = vmatpush1.msra.mxu0 %v2658
        %2691 = vmatprep.subr.mxu0 0.0
        %2692 = vmatpush1.msra.mxu0 %v2659
        %2693 = vmatprep.subr.mxu0 0.0
        %2694 = vmatpush1.msra.mxu0 %v2660
        %2695 = vmatprep.subr.mxu0 0.0
        %2696 = vmatpush1.msra.mxu0 %v2661
        %2697 = vmatprep.subr.mxu0 0.0
        %2698 = vmatpush1.msra.mxu0 %v2662
        %2699 = vmatprep.subr.mxu0 0.0
        %2700 = vmatpush1.msra.mxu0 0.0
        %2701 = vmatprep.subr.mxu0 0.0
        %2702 = vmatpush1.msra.mxu0 0.0
        %2703 = vmatprep.subr.mxu0 0.0
        %2704 = vmatpush1.msra.mxu0 0.0
        %2705 = vmatprep.subr.mxu0 0.0
        %2706 = vmatpush1.msra.mxu0 0.0
        %2707 = vmatprep.subr.mxu0 0.0
        %2708 = vmatpush1.msra.mxu0 0.0
        %2709 = vmatprep.subr.mxu0 0.0
        %2710 = vmatpush1.msra.mxu0 0.0
        %2711 = vmatprep.subr.mxu0 0.0
        %2712 = vmatpush1.msra.mxu0 0.0
        %2713 = vmatprep.subr.mxu0 0.0
        %2714 = vmatpush1.msra.mxu0 0.0
        %2715 = vmatprep.subr.mxu0 0.0
        %2716 = vmatpush1.msra.mxu0 0.0
        %2717 = vmatprep.subr.mxu0 0.0
        %2718 = vmatpush1.msra.mxu0 0.0
        %2719 = vmatprep.subr.mxu0 0.0
        %2720 = vmatpush1.msra.mxu0 0.0
        %2721 = vmatprep.subr.mxu0 0.0
        %2722 = vmatpush1.msra.mxu0 0.0
        %2723 = vmatprep.subr.mxu0 0.0
        %2724 = vmatpush1.msra.mxu0 0.0
        %2725 = vmatprep.subr.mxu0 0.0
        %2726 = vmatpush1.msra.mxu0 0.0
        %2727 = vmatprep.subr.mxu0 0.0
        %2728 = vmatpush1.msra.mxu0 0.0
        %2729 = vmatprep.subr.mxu0 0.0
        %2730 = vmatpush1.msra.mxu0 0.0
        %2731 = vmatprep.mubr.f32.mxu0 0.0
        %2732 = vmatmul.mubr.f32.gmra.mrb[0].mxu0 %v2643
        %v2733 = vpop.f32.mrb[0].mxu0
        %v2734 = vadd.f32 %v2666, %v2733
        %v2735 = vpop.f32.mrb[0].mxu0
        %2736 = vmatprep.mubr.f32.mxu0 0.0
        %2737 = vmatmul.mubr.f32.gmra.mrb[0].mxu0 %v2644
        %v2738 = vpop.f32.mrb[0].mxu0
        %v2739 = vpop.f32.mrb[0].mxu0
        %2740 = vmatprep.mubr.f32.mxu0 0.0
        %2741 = vmatmul.mubr.f32.gmra.mrb[0].mxu0 %v2645
        %v2742 = vpop.f32.mrb[0].mxu0
        %v2743 = vpop.f32.mrb[0].mxu0
        %2744 = vdwg.mxu0
        %v2745 = vadd.f32 %v2465, %v2734
        %v2746 = vsel %vm693, %v2745, 0.0
        %2747 = vadd.xlane.f32.xlu0 %v2746
        %v2748 = vpop.xlane.xlu0 %2747
        %v2749 = vmul.f32 %v2748, %v697
        %v2750 = vsub.f32 %v2745, %v2749
        %v2751 = vmul.f32 %v2750, %v2750
        %v2752 = vsel %vm693, %v2751, 0.0
        %2753 = vadd.xlane.f32.xlu0 %v2752
        %v2754 = vpop.xlane.xlu0 %2753
        %v2755 = vmul.f32 %v2754, %v697
        %v2756 = vadd.f32 %v2755, 1e-06
        %v2757 = vrsqrt.pop %v2756
        %v2758 = vmul.f32 %v2750, %v2757
        %v2759 = vlaneseq
        %v2760 = vshrl.u32 %v2759, 7
        %v2761 = vsub.s32 0, %v2760
        %v2762 = vrot.slane %v667, %v2761
        %v2763 = vmul.f32 %v2758, %v2762
        %v2764 = vlaneseq
        %v2765 = vshrl.u32 %v2764, 7
        %v2766 = vsub.s32 0, %v2765
        %v2767 = vrot.slane %v668, %v2766
        %v2768 = vadd.f32 %v2763, %v2767
        %2769 = vst.msk [vmem:[%s325] sm:$0xf] %vm693, %v2768
        %s2770 = sand.u32 %s225, 1
        %s2771 = scalar_lea.sflag [#allocation3], %s2770
        %s2772 = sand.u32 %s225, 1
        %s2773 = smul.addr %s2772, 4
        %s2774 = scalar_lea.vmem [#allocation2], %s2773
        // Predicated region
        $region57: #{feature_generator_adapt_forward.1} parent=55 // pred_check
          %p2775 = pneg %p235
        $region58: #{feature_generator_adapt_forward.1} parent=55 // pred_check_branch
          %2777 = sbr.rel (%p2775) target = $region60
        $region59: #{feature_generator_adapt_forward.1} parent=55 // pred_region
          %s2779 = ssub.s32 64, 64
          %2780 = vsyncadd %s2771, %s2779
          %s2781 = smul.addr %s23, 64
          %s2782 = scalar_lea.hbm %s9, %s2781
          %s2784 = sshll.u32 %s2774, 4
          %s2785 = int_to_ptr.vmem [resolvable:$true] %s2784
          %2787 = dma.vmem_to_hbm [thread:$0]  %s2785, 64, %s2782, %s2771
        $region60: #{feature_generator_adapt_forward.1} parent=55 // pred_fallthru
          _
      $region56: #{feature_generator_adapt_forward.1} parent=5 // pred_fallthru
        _
      %p2788 = scmp.le.s32.totalorder 2, %s18
      // Predicated region
      $region61: #{feature_generator_adapt_forward.1} parent=5 // pred_check
        %p2789 = pneg %p2788
      $region62: #{feature_generator_adapt_forward.1} parent=5 // pred_check_branch
        %2791 = sbr.rel (%p2789) target = $region64
      $region63: #{feature_generator_adapt_forward.1} parent=5 // pred_region
        %s2792 = ssub.s32 %s18, 2
        // Predicated region
        $region65: #{feature_generator_adapt_forward.1} parent=63 // pred_check
          %p2793 = pneg %p241
        $region66: #{feature_generator_adapt_forward.1} parent=63 // pred_check_branch
          %2795 = sbr.rel (%p2793) target = $region68
        $region67: #{feature_generator_adapt_forward.1} parent=63 // pred_region
          %s2796 = sand.u32 %s226, 1
          %s2797 = scalar_lea.sflag [#allocation3], %s2796
          %s2798 = sand.u32 %s226, 1
          %s2799 = smul.addr %s2798, 4
          %s2800 = scalar_lea.vmem [#allocation2], %s2799
          %2801 = dma.done %s2797, 64
        $region68: #{feature_generator_adapt_forward.1} parent=63 // pred_fallthru
          _
      $region64: #{feature_generator_adapt_forward.1} parent=5 // pred_fallthru
        _
    $region6: #{feature_generator_adapt_forward.1} parent=1 // loop_footer
      %s22 = sadd.s32 1, %s18
    $region7: #{feature_generator_adapt_forward.1} parent=1 // loop_footer_branch
      %17 = sbr.rel target = $region3
    $region8: #{feature_generator_adapt_forward.1} parent=1 // loop_exit
      _
    %2802 = vsyncpa [#allocation3], 1
    %s2803 = scalar_lea.sflag [#allocation3], 1
    %2804 = vsyncpa %s2803, 1

</llo_original>
